<compile_context>
chip_gen: v5e
topology: v5e:2x2
jax: 0.10.0
libtpu: 0.0.40
codegen_flags: <defaults>
</compile_context>

<pallas_src>
import jax
import jax.numpy as jnp
import numpy as np
from jax import lax
from jax.experimental import pallas as pl
from jax.experimental.pallas import tpu as pltpu


# ----------------------------------------------------------------------------
# Fused whole-network kernel (batch on lanes, SMEM scalar weights)
# ----------------------------------------------------------------------------
def _make_kernel(n_classes):
    # Offsets into the packed 1-D SMEM parameter vector (row order (kh,kw,cin,cout)).
    W1, B1 = 0, 18                 # conv1 weight (3*3*1*2), bias (2)
    W2, B2 = 20, 74                # conv2 weight (3*3*2*3), bias (3)
    W3, B3 = 77, 269               # conv3 weight (2*2*3*16), bias (16)
    WF = 285                       # fc weight (16*n_classes), packed (in, out)
    BF = 285 + 16 * n_classes      # fc bias (n_classes)

    def kernel(p_ref, x_ref, o_ref):
        """p_ref: (285+17*ncls,) f32 in SMEM.  x_ref: (8, 8, TB) = (h, w, batch).
        o_ref: (n_classes, TB)."""
        x = x_ref[...]                                           # (8, 8, TB) f32

        # ---- conv1: 1 -> 2, k=3, s=1, VALID, ReLU  -> two (6, 6, TB) maps
        acc1 = [None, None]
        for i in range(3):
            for j in range(3):
                xs = x[i:i + 6, j:j + 6, :]                      # shared across cout
                for c in range(2):
                    t = xs * p_ref[W1 + (i * 3 + j) * 2 + c]
                    acc1[c] = t if acc1[c] is None else acc1[c] + t
        y1 = [jnp.maximum(acc1[c] + p_ref[B1 + c], 0.0) for c in range(2)]

        # ---- conv2: 2 -> 3, k=3, s=2, VALID, ReLU  -> 12 rows of (1, TB)
        # Stride-2 taps are plain row reads of y1 (no concatenates).
        y2 = [None] * 12                                         # idx = (oh*2+ow)*3 + co
        for oh in range(2):
            for ow in range(2):
                acc2 = [None, None, None]
                for i in range(3):
                    for j in range(3):
                        for ci in range(2):
                            row = y1[ci][2 * oh + i, 2 * ow + j:2 * ow + j + 1, :]
                            for co in range(3):
                                w = p_ref[W2 + ((i * 3 + j) * 2 + ci) * 3 + co]
                                t = row * w
                                acc2[co] = t if acc2[co] is None else acc2[co] + t
                for co in range(3):
                    y2[(oh * 2 + ow) * 3 + co] = jnp.maximum(
                        acc2[co] + p_ref[B2 + co], 0.0)          # (1, TB)

        # ---- conv3: 3 -> 16, k=2, s=1, VALID, ReLU  -> 16 rows of (1, TB)
        y3 = []
        for co in range(16):
            acc3 = None
            for i in range(2):
                for j in range(2):
                    for ci in range(3):
                        w = p_ref[W3 + ((i * 2 + j) * 3 + ci) * 16 + co]
                        t = y2[(i * 2 + j) * 3 + ci] * w
                        acc3 = t if acc3 is None else acc3 + t
            y3.append(jnp.maximum(acc3 + p_ref[B3 + co], 0.0))

        # ---- fc: 16 -> n_classes (no ReLU)  -> one lane-dense (n_classes, TB) store
        out_rows = []
        for n in range(n_classes):
            acc = None
            for k in range(16):
                t = y3[k] * p_ref[WF + k * n_classes + n]
                acc = t if acc is None else acc + t
            out_rows.append(acc + p_ref[BF + n])                 # (1, TB)
        o_ref[...] = jnp.concatenate(out_rows, axis=0)           # (n_classes, TB)

    return kernel


def _round_up(v, m):
    return ((v + m - 1) // m) * m


def _choose_tile(batch):
    """Pick (TB, padded_batch): TB multiple of 128, >=2 grid steps when the
    padded batch exceeds one tile (v7x megacore), capped at 512."""
    bp = _round_up(max(batch, 1), 128)
    if bp <= 128:
        return 128, 128
    tb = min(512, _round_up(pl.cdiv(bp, 2), 128))
    bp = _round_up(bp, tb)
    return tb, bp


def tiny_cnn_forward(packed_params, x):
    """packed_params: 1-D f32 packed weights (see prepare_kernel_params).
    x: (B, 1, 8, 8) float32 NCHW (sklearn digits).  Returns (B, n_classes)."""
    B, C, H, W = x.shape
    assert C == 1 and H == 8 and W == 8, (C, H, W)
    n_classes = (packed_params.shape[0] - 285) // 17

    # Batch-on-lanes layout: (B,1,8,8) -> (8, 8, B); transpose done once here.
    xT = jnp.transpose(x.reshape(B, 8, 8).astype(jnp.float32), (1, 2, 0))

    TB, Bp = _choose_tile(B)
    if Bp != B:
        xT = jnp.pad(xT, ((0, 0), (0, 0), (0, Bp - B)))

    out = pl.pallas_call(
        _make_kernel(n_classes),
        out_shape=jax.ShapeDtypeStruct((n_classes, Bp), jnp.float32),
        grid=(Bp // TB,),
        in_specs=[
            pl.BlockSpec(memory_space=pltpu.MemorySpace.SMEM),   # packed weights/biases
            pl.BlockSpec((8, 8, TB), lambda b: (0, 0, b)),       # input, batch on lanes
        ],
        out_specs=pl.BlockSpec((n_classes, TB), lambda b: (0, b)),
        compiler_params=pltpu.CompilerParams(
            dimension_semantics=("parallel",)),
    )(packed_params, xT)

    # (n_classes, Bp) -> (B, n_classes); drop padded batch lanes.
    return out[:, :B].T


tiny_cnn_forward = jax.jit(tiny_cnn_forward)


# ----------------------------------------------------------------------------
# Parameter init (torch defaults) + pruning emulation + kernel packing
# ----------------------------------------------------------------------------
def _init_conv(key, cout, cin, kh, kw):
    kw_, kb_ = jax.random.split(key)
    fan_in = cin * kh * kw
    bound = 1.0 / np.sqrt(fan_in)
    w = jax.random.uniform(kw_, (cout, cin, kh, kw), jnp.float32, -bound, bound)
    b = jax.random.uniform(kb_, (cout,), jnp.float32, -bound, bound)
    return w, b


def _init_linear(key, in_f, out_f):
    kw_, kb_ = jax.random.split(key)
    bound = 1.0 / np.sqrt(in_f)
    w = jax.random.uniform(kw_, (out_f, in_f), jnp.float32, -bound, bound)
    b = jax.random.uniform(kb_, (out_f,), jnp.float32, -bound, bound)
    return w, b


def prune_l1_unstructured(w, n_active):
    """Emulates torch prune.l1_unstructured: globally zero the smallest-|w|
    entries, amount = (fan_in - n_active) * cout."""
    cout = w.shape[0]
    fan_in = int(np.prod(w.shape[1:]))
    if fan_in <= n_active:
        return w
    n_prune = (fan_in - n_active) * cout
    flat = w.reshape(-1)
    idx = jnp.argsort(jnp.abs(flat))[:n_prune]
    mask = jnp.ones_like(flat).at[idx].set(0.0)
    return (flat * mask).reshape(w.shape)


def init_tiny_cnn_params(key, n_classes=10, n_active=10):
    k1, k2, k3, k4 = jax.random.split(key, 4)
    w1, b1 = _init_conv(k1, 2, 1, 3, 3)    # conv1: 1 -> 2, k=3, s=1
    w2, b2 = _init_conv(k2, 3, 2, 3, 3)    # conv2: 2 -> 3, k=3, s=2
    w3, b3 = _init_conv(k3, 16, 3, 2, 2)   # conv3: 3 -> 16, k=2, s=1
    wf, bf = _init_linear(k4, 16, n_classes)
    # toggle_pruning(True)
    w1 = prune_l1_unstructured(w1, n_active)
    w2 = prune_l1_unstructured(w2, n_active)
    w3 = prune_l1_unstructured(w3, n_active)
    return dict(w1=w1, b1=b1, w2=w2, b2=b2, w3=w3, b3=b3, wf=wf, bf=bf)


def prepare_kernel_params(params):
    """Pack all weights/biases into ONE 1-D f32 vector (SMEM-resident in kernel).
    Conv weights are re-laid out with (kh, kw, cin, cout) order; fc weight is
    pre-transposed to (in_features, out_features)."""
    pieces = [
        jnp.transpose(params["w1"], (2, 3, 1, 0)).reshape(-1),   # 18
        params["b1"].reshape(-1),                                # 2
        jnp.transpose(params["w2"], (2, 3, 1, 0)).reshape(-1),   # 54
        params["b2"].reshape(-1),                                # 3
        jnp.transpose(params["w3"], (2, 3, 1, 0)).reshape(-1),   # 192
        params["b3"].reshape(-1),                                # 16
        params["wf"].T.reshape(-1),                              # 16*ncls
        params["bf"].reshape(-1),                                # ncls
    ]
    return jnp.concatenate(pieces).astype(jnp.float32)


# ----------------------------------------------------------------------------
# Plain-JAX reference (lax.conv) for sanity checking
# ----------------------------------------------------------------------------
def _ref_forward(params, x):
    dn = ("NCHW", "OIHW", "NCHW")
    y = lax.conv_general_dilated(x, params["w1"], (1, 1), "VALID",
                                 dimension_numbers=dn) + params["b1"][None, :, None, None]
    y = jnp.maximum(y, 0.0)
    y = lax.conv_general_dilated(y, params["w2"], (2, 2), "VALID",
                                 dimension_numbers=dn) + params["b2"][None, :, None, None]
    y = jnp.maximum(y, 0.0)
    y = lax.conv_general_dilated(y, params["w3"], (1, 1), "VALID",
                                 dimension_numbers=dn) + params["b3"][None, :, None, None]
    y = jnp.maximum(y, 0.0)
    y = y.reshape(-1, 16)
    return y @ params["wf"].T + params["bf"]


if __name__ == "__main__":
    key = jax.random.PRNGKey(0)
    k_params, k_x = jax.random.split(key)

    n_classes, n_bits, n_active = 10, 3, 10
    params = init_tiny_cnn_params(k_params, n_classes=n_classes, n_active=n_active)
    packed = prepare_kernel_params(params)

    # sklearn digits: 8x8 single-channel images
    x = jax.random.normal(k_x, (2, 1, 8, 8), dtype=jnp.float32)

    out = jax.block_until_ready(tiny_cnn_forward(packed, x))
    assert out.shape == (2, n_classes), out.shape

    ref = jax.block_until_ready(_ref_forward(params, x))
    np.testing.assert_allclose(np.asarray(out), np.asarray(ref), atol=1e-4, rtol=1e-4)

    print("KERNEL_OK")
</pallas_src>

<mosaic_0001>
module attributes {stable_mosaic.version = 11 : i64} {
  func.func @kernel(%arg0: i32, %arg1: memref<455xf32, #tpu.memory_space<smem>>, %arg2: memref<8x8x128xf32, #tpu.memory_space<vmem>>, %arg3: memref<10x128xf32, #tpu.memory_space<vmem>>) attributes {dimension_semantics = [#tpu.dimension_semantics<parallel>], iteration_bounds = array<i64: 1>, scalar_prefetch = 0 : i64, scratch_operands = 0 : i64, tpu.core_type = #tpu.core_type<tc>, window_params = [{transform_indices = @transform_0, window_bounds = array<i64: 455>}, {transform_indices = @transform_1, window_bounds = array<i64: 8, 8, 128>}, {transform_indices = @transform_2, window_bounds = array<i64: 10, 128>}]} {
    %c0 = arith.constant 0 : index
    %c0_0 = arith.constant 0 : index
    %c0_1 = arith.constant 0 : index
    %0 = vector.load %arg2[%c0, %c0_0, %c0_1] : memref<8x8x128xf32, #tpu.memory_space<vmem>>, vector<8x8x128xf32>
    %1 = vector.extract_strided_slice %0 {offsets = [0, 0, 0], sizes = [6, 6, 128], strides = [1, 1, 1]} : vector<8x8x128xf32> to vector<6x6x128xf32>
    %c0_2 = arith.constant 0 : index
    %2 = memref.load %arg1[%c0_2] : memref<455xf32, #tpu.memory_space<smem>>
    %3 = vector.broadcast %2 : f32 to vector<6x6x128xf32>
    %4 = arith.mulf %1, %3 : vector<6x6x128xf32>
    %c1 = arith.constant 1 : index
    %5 = memref.load %arg1[%c1] : memref<455xf32, #tpu.memory_space<smem>>
    %6 = vector.broadcast %5 : f32 to vector<6x6x128xf32>
    %7 = arith.mulf %1, %6 : vector<6x6x128xf32>
    %8 = vector.extract_strided_slice %0 {offsets = [0, 1, 0], sizes = [6, 6, 128], strides = [1, 1, 1]} : vector<8x8x128xf32> to vector<6x6x128xf32>
    %c2 = arith.constant 2 : index
    %9 = memref.load %arg1[%c2] : memref<455xf32, #tpu.memory_space<smem>>
    %10 = vector.broadcast %9 : f32 to vector<6x6x128xf32>
    %11 = arith.mulf %8, %10 : vector<6x6x128xf32>
    %12 = arith.addf %4, %11 : vector<6x6x128xf32>
    %c3 = arith.constant 3 : index
    %13 = memref.load %arg1[%c3] : memref<455xf32, #tpu.memory_space<smem>>
    %14 = vector.broadcast %13 : f32 to vector<6x6x128xf32>
    %15 = arith.mulf %8, %14 : vector<6x6x128xf32>
    %16 = arith.addf %7, %15 : vector<6x6x128xf32>
    %17 = vector.extract_strided_slice %0 {offsets = [0, 2, 0], sizes = [6, 6, 128], strides = [1, 1, 1]} : vector<8x8x128xf32> to vector<6x6x128xf32>
    %c4 = arith.constant 4 : index
    %18 = memref.load %arg1[%c4] : memref<455xf32, #tpu.memory_space<smem>>
    %19 = vector.broadcast %18 : f32 to vector<6x6x128xf32>
    %20 = arith.mulf %17, %19 : vector<6x6x128xf32>
    %21 = arith.addf %12, %20 : vector<6x6x128xf32>
    %c5 = arith.constant 5 : index
    %22 = memref.load %arg1[%c5] : memref<455xf32, #tpu.memory_space<smem>>
    %23 = vector.broadcast %22 : f32 to vector<6x6x128xf32>
    %24 = arith.mulf %17, %23 : vector<6x6x128xf32>
    %25 = arith.addf %16, %24 : vector<6x6x128xf32>
    %26 = vector.extract_strided_slice %0 {offsets = [1, 0, 0], sizes = [6, 6, 128], strides = [1, 1, 1]} : vector<8x8x128xf32> to vector<6x6x128xf32>
    %c6 = arith.constant 6 : index
    %27 = memref.load %arg1[%c6] : memref<455xf32, #tpu.memory_space<smem>>
    %28 = vector.broadcast %27 : f32 to vector<6x6x128xf32>
    %29 = arith.mulf %26, %28 : vector<6x6x128xf32>
    %30 = arith.addf %21, %29 : vector<6x6x128xf32>
    %c7 = arith.constant 7 : index
    %31 = memref.load %arg1[%c7] : memref<455xf32, #tpu.memory_space<smem>>
    %32 = vector.broadcast %31 : f32 to vector<6x6x128xf32>
    %33 = arith.mulf %26, %32 : vector<6x6x128xf32>
    %34 = arith.addf %25, %33 : vector<6x6x128xf32>
    %35 = vector.extract_strided_slice %0 {offsets = [1, 1, 0], sizes = [6, 6, 128], strides = [1, 1, 1]} : vector<8x8x128xf32> to vector<6x6x128xf32>
    %c8 = arith.constant 8 : index
    %36 = memref.load %arg1[%c8] : memref<455xf32, #tpu.memory_space<smem>>
    %37 = vector.broadcast %36 : f32 to vector<6x6x128xf32>
    %38 = arith.mulf %35, %37 : vector<6x6x128xf32>
    %39 = arith.addf %30, %38 : vector<6x6x128xf32>
    %c9 = arith.constant 9 : index
    %40 = memref.load %arg1[%c9] : memref<455xf32, #tpu.memory_space<smem>>
    %41 = vector.broadcast %40 : f32 to vector<6x6x128xf32>
    %42 = arith.mulf %35, %41 : vector<6x6x128xf32>
    %43 = arith.addf %34, %42 : vector<6x6x128xf32>
    %44 = vector.extract_strided_slice %0 {offsets = [1, 2, 0], sizes = [6, 6, 128], strides = [1, 1, 1]} : vector<8x8x128xf32> to vector<6x6x128xf32>
    %c10 = arith.constant 10 : index
    %45 = memref.load %arg1[%c10] : memref<455xf32, #tpu.memory_space<smem>>
    %46 = vector.broadcast %45 : f32 to vector<6x6x128xf32>
    %47 = arith.mulf %44, %46 : vector<6x6x128xf32>
    %48 = arith.addf %39, %47 : vector<6x6x128xf32>
    %c11 = arith.constant 11 : index
    %49 = memref.load %arg1[%c11] : memref<455xf32, #tpu.memory_space<smem>>
    %50 = vector.broadcast %49 : f32 to vector<6x6x128xf32>
    %51 = arith.mulf %44, %50 : vector<6x6x128xf32>
    %52 = arith.addf %43, %51 : vector<6x6x128xf32>
    %53 = vector.extract_strided_slice %0 {offsets = [2, 0, 0], sizes = [6, 6, 128], strides = [1, 1, 1]} : vector<8x8x128xf32> to vector<6x6x128xf32>
    %c12 = arith.constant 12 : index
    %54 = memref.load %arg1[%c12] : memref<455xf32, #tpu.memory_space<smem>>
    %55 = vector.broadcast %54 : f32 to vector<6x6x128xf32>
    %56 = arith.mulf %53, %55 : vector<6x6x128xf32>
    %57 = arith.addf %48, %56 : vector<6x6x128xf32>
    %c13 = arith.constant 13 : index
    %58 = memref.load %arg1[%c13] : memref<455xf32, #tpu.memory_space<smem>>
    %59 = vector.broadcast %58 : f32 to vector<6x6x128xf32>
    %60 = arith.mulf %53, %59 : vector<6x6x128xf32>
    %61 = arith.addf %52, %60 : vector<6x6x128xf32>
    %62 = vector.extract_strided_slice %0 {offsets = [2, 1, 0], sizes = [6, 6, 128], strides = [1, 1, 1]} : vector<8x8x128xf32> to vector<6x6x128xf32>
    %c14 = arith.constant 14 : index
    %63 = memref.load %arg1[%c14] : memref<455xf32, #tpu.memory_space<smem>>
    %64 = vector.broadcast %63 : f32 to vector<6x6x128xf32>
    %65 = arith.mulf %62, %64 : vector<6x6x128xf32>
    %66 = arith.addf %57, %65 : vector<6x6x128xf32>
    %c15 = arith.constant 15 : index
    %67 = memref.load %arg1[%c15] : memref<455xf32, #tpu.memory_space<smem>>
    %68 = vector.broadcast %67 : f32 to vector<6x6x128xf32>
    %69 = arith.mulf %62, %68 : vector<6x6x128xf32>
    %70 = arith.addf %61, %69 : vector<6x6x128xf32>
    %71 = vector.extract_strided_slice %0 {offsets = [2, 2, 0], sizes = [6, 6, 128], strides = [1, 1, 1]} : vector<8x8x128xf32> to vector<6x6x128xf32>
    %c16 = arith.constant 16 : index
    %72 = memref.load %arg1[%c16] : memref<455xf32, #tpu.memory_space<smem>>
    %73 = vector.broadcast %72 : f32 to vector<6x6x128xf32>
    %74 = arith.mulf %71, %73 : vector<6x6x128xf32>
    %75 = arith.addf %66, %74 : vector<6x6x128xf32>
    %c17 = arith.constant 17 : index
    %76 = memref.load %arg1[%c17] : memref<455xf32, #tpu.memory_space<smem>>
    %77 = vector.broadcast %76 : f32 to vector<6x6x128xf32>
    %78 = arith.mulf %71, %77 : vector<6x6x128xf32>
    %79 = arith.addf %70, %78 : vector<6x6x128xf32>
    %c18 = arith.constant 18 : index
    %80 = memref.load %arg1[%c18] : memref<455xf32, #tpu.memory_space<smem>>
    %81 = vector.broadcast %80 : f32 to vector<6x6x128xf32>
    %82 = arith.addf %75, %81 : vector<6x6x128xf32>
    %cst = arith.constant 0.000000e+00 : f32
    %83 = vector.broadcast %cst : f32 to vector<6x6x128xf32>
    %84 = arith.maximumf %82, %83 : vector<6x6x128xf32>
    %c19 = arith.constant 19 : index
    %85 = memref.load %arg1[%c19] : memref<455xf32, #tpu.memory_space<smem>>
    %86 = vector.broadcast %85 : f32 to vector<6x6x128xf32>
    %87 = arith.addf %79, %86 : vector<6x6x128xf32>
    %cst_3 = arith.constant 0.000000e+00 : f32
    %88 = vector.broadcast %cst_3 : f32 to vector<6x6x128xf32>
    %89 = arith.maximumf %87, %88 : vector<6x6x128xf32>
    %90 = vector.extract_strided_slice %84 {offsets = [0, 0, 0], sizes = [1, 1, 128], strides = [1, 1, 1]} : vector<6x6x128xf32> to vector<1x1x128xf32>
    %91 = vector.shape_cast %90 : vector<1x1x128xf32> to vector<1x128xf32>
    %c20 = arith.constant 20 : index
    %92 = memref.load %arg1[%c20] : memref<455xf32, #tpu.memory_space<smem>>
    %93 = vector.broadcast %92 : f32 to vector<1x128xf32>
    %94 = arith.mulf %91, %93 : vector<1x128xf32>
    %c21 = arith.constant 21 : index
    %95 = memref.load %arg1[%c21] : memref<455xf32, #tpu.memory_space<smem>>
    %96 = vector.broadcast %95 : f32 to vector<1x128xf32>
    %97 = arith.mulf %91, %96 : vector<1x128xf32>
    %c22 = arith.constant 22 : index
    %98 = memref.load %arg1[%c22] : memref<455xf32, #tpu.memory_space<smem>>
    %99 = vector.broadcast %98 : f32 to vector<1x128xf32>
    %100 = arith.mulf %91, %99 : vector<1x128xf32>
    %101 = vector.extract_strided_slice %89 {offsets = [0, 0, 0], sizes = [1, 1, 128], strides = [1, 1, 1]} : vector<6x6x128xf32> to vector<1x1x128xf32>
    %102 = vector.shape_cast %101 : vector<1x1x128xf32> to vector<1x128xf32>
    %c23 = arith.constant 23 : index
    %103 = memref.load %arg1[%c23] : memref<455xf32, #tpu.memory_space<smem>>
    %104 = vector.broadcast %103 : f32 to vector<1x128xf32>
    %105 = arith.mulf %102, %104 : vector<1x128xf32>
    %106 = arith.addf %94, %105 : vector<1x128xf32>
    %c24 = arith.constant 24 : index
    %107 = memref.load %arg1[%c24] : memref<455xf32, #tpu.memory_space<smem>>
    %108 = vector.broadcast %107 : f32 to vector<1x128xf32>
    %109 = arith.mulf %102, %108 : vector<1x128xf32>
    %110 = arith.addf %97, %109 : vector<1x128xf32>
    %c25 = arith.constant 25 : index
    %111 = memref.load %arg1[%c25] : memref<455xf32, #tpu.memory_space<smem>>
    %112 = vector.broadcast %111 : f32 to vector<1x128xf32>
    %113 = arith.mulf %102, %112 : vector<1x128xf32>
    %114 = arith.addf %100, %113 : vector<1x128xf32>
    %115 = vector.extract_strided_slice %84 {offsets = [0, 1, 0], sizes = [1, 1, 128], strides = [1, 1, 1]} : vector<6x6x128xf32> to vector<1x1x128xf32>
    %116 = vector.shape_cast %115 : vector<1x1x128xf32> to vector<1x128xf32>
    %c26 = arith.constant 26 : index
    %117 = memref.load %arg1[%c26] : memref<455xf32, #tpu.memory_space<smem>>
    %118 = vector.broadcast %117 : f32 to vector<1x128xf32>
    %119 = arith.mulf %116, %118 : vector<1x128xf32>
    %120 = arith.addf %106, %119 : vector<1x128xf32>
    %c27 = arith.constant 27 : index
    %121 = memref.load %arg1[%c27] : memref<455xf32, #tpu.memory_space<smem>>
    %122 = vector.broadcast %121 : f32 to vector<1x128xf32>
    %123 = arith.mulf %116, %122 : vector<1x128xf32>
    %124 = arith.addf %110, %123 : vector<1x128xf32>
    %c28 = arith.constant 28 : index
    %125 = memref.load %arg1[%c28] : memref<455xf32, #tpu.memory_space<smem>>
    %126 = vector.broadcast %125 : f32 to vector<1x128xf32>
    %127 = arith.mulf %116, %126 : vector<1x128xf32>
    %128 = arith.addf %114, %127 : vector<1x128xf32>
    %129 = vector.extract_strided_slice %89 {offsets = [0, 1, 0], sizes = [1, 1, 128], strides = [1, 1, 1]} : vector<6x6x128xf32> to vector<1x1x128xf32>
    %130 = vector.shape_cast %129 : vector<1x1x128xf32> to vector<1x128xf32>
    %c29 = arith.constant 29 : index
    %131 = memref.load %arg1[%c29] : memref<455xf32, #tpu.memory_space<smem>>
    %132 = vector.broadcast %131 : f32 to vector<1x128xf32>
    %133 = arith.mulf %130, %132 : vector<1x128xf32>
    %134 = arith.addf %120, %133 : vector<1x128xf32>
    %c30 = arith.constant 30 : index
    %135 = memref.load %arg1[%c30] : memref<455xf32, #tpu.memory_space<smem>>
    %136 = vector.broadcast %135 : f32 to vector<1x128xf32>
    %137 = arith.mulf %130, %136 : vector<1x128xf32>
    %138 = arith.addf %124, %137 : vector<1x128xf32>
    %c31 = arith.constant 31 : index
    %139 = memref.load %arg1[%c31] : memref<455xf32, #tpu.memory_space<smem>>
    %140 = vector.broadcast %139 : f32 to vector<1x128xf32>
    %141 = arith.mulf %130, %140 : vector<1x128xf32>
    %142 = arith.addf %128, %141 : vector<1x128xf32>
    %143 = vector.extract_strided_slice %84 {offsets = [0, 2, 0], sizes = [1, 1, 128], strides = [1, 1, 1]} : vector<6x6x128xf32> to vector<1x1x128xf32>
    %144 = vector.shape_cast %143 : vector<1x1x128xf32> to vector<1x128xf32>
    %c32 = arith.constant 32 : index
    %145 = memref.load %arg1[%c32] : memref<455xf32, #tpu.memory_space<smem>>
    %146 = vector.broadcast %145 : f32 to vector<1x128xf32>
    %147 = arith.mulf %144, %146 : vector<1x128xf32>
    %148 = arith.addf %134, %147 : vector<1x128xf32>
    %c33 = arith.constant 33 : index
    %149 = memref.load %arg1[%c33] : memref<455xf32, #tpu.memory_space<smem>>
    %150 = vector.broadcast %149 : f32 to vector<1x128xf32>
    %151 = arith.mulf %144, %150 : vector<1x128xf32>
    %152 = arith.addf %138, %151 : vector<1x128xf32>
    %c34 = arith.constant 34 : index
    %153 = memref.load %arg1[%c34] : memref<455xf32, #tpu.memory_space<smem>>
    %154 = vector.broadcast %153 : f32 to vector<1x128xf32>
    %155 = arith.mulf %144, %154 : vector<1x128xf32>
    %156 = arith.addf %142, %155 : vector<1x128xf32>
    %157 = vector.extract_strided_slice %89 {offsets = [0, 2, 0], sizes = [1, 1, 128], strides = [1, 1, 1]} : vector<6x6x128xf32> to vector<1x1x128xf32>
    %158 = vector.shape_cast %157 : vector<1x1x128xf32> to vector<1x128xf32>
    %c35 = arith.constant 35 : index
    %159 = memref.load %arg1[%c35] : memref<455xf32, #tpu.memory_space<smem>>
    %160 = vector.broadcast %159 : f32 to vector<1x128xf32>
    %161 = arith.mulf %158, %160 : vector<1x128xf32>
    %162 = arith.addf %148, %161 : vector<1x128xf32>
    %c36 = arith.constant 36 : index
    %163 = memref.load %arg1[%c36] : memref<455xf32, #tpu.memory_space<smem>>
    %164 = vector.broadcast %163 : f32 to vector<1x128xf32>
    %165 = arith.mulf %158, %164 : vector<1x128xf32>
    %166 = arith.addf %152, %165 : vector<1x128xf32>
    %c37 = arith.constant 37 : index
    %167 = memref.load %arg1[%c37] : memref<455xf32, #tpu.memory_space<smem>>
    %168 = vector.broadcast %167 : f32 to vector<1x128xf32>
    %169 = arith.mulf %158, %168 : vector<1x128xf32>
    %170 = arith.addf %156, %169 : vector<1x128xf32>
    %171 = vector.extract_strided_slice %84 {offsets = [1, 0, 0], sizes = [1, 1, 128], strides = [1, 1, 1]} : vector<6x6x128xf32> to vector<1x1x128xf32>
    %172 = vector.shape_cast %171 : vector<1x1x128xf32> to vector<1x128xf32>
    %c38 = arith.constant 38 : index
    %173 = memref.load %arg1[%c38] : memref<455xf32, #tpu.memory_space<smem>>
    %174 = vector.broadcast %173 : f32 to vector<1x128xf32>
    %175 = arith.mulf %172, %174 : vector<1x128xf32>
    %176 = arith.addf %162, %175 : vector<1x128xf32>
    %c39 = arith.constant 39 : index
    %177 = memref.load %arg1[%c39] : memref<455xf32, #tpu.memory_space<smem>>
    %178 = vector.broadcast %177 : f32 to vector<1x128xf32>
    %179 = arith.mulf %172, %178 : vector<1x128xf32>
    %180 = arith.addf %166, %179 : vector<1x128xf32>
    %c40 = arith.constant 40 : index
    %181 = memref.load %arg1[%c40] : memref<455xf32, #tpu.memory_space<smem>>
    %182 = vector.broadcast %181 : f32 to vector<1x128xf32>
    %183 = arith.mulf %172, %182 : vector<1x128xf32>
    %184 = arith.addf %170, %183 : vector<1x128xf32>
    %185 = vector.extract_strided_slice %89 {offsets = [1, 0, 0], sizes = [1, 1, 128], strides = [1, 1, 1]} : vector<6x6x128xf32> to vector<1x1x128xf32>
    %186 = vector.shape_cast %185 : vector<1x1x128xf32> to vector<1x128xf32>
    %c41 = arith.constant 41 : index
    %187 = memref.load %arg1[%c41] : memref<455xf32, #tpu.memory_space<smem>>
    %188 = vector.broadcast %187 : f32 to vector<1x128xf32>
    %189 = arith.mulf %186, %188 : vector<1x128xf32>
    %190 = arith.addf %176, %189 : vector<1x128xf32>
    %c42 = arith.constant 42 : index
    %191 = memref.load %arg1[%c42] : memref<455xf32, #tpu.memory_space<smem>>
    %192 = vector.broadcast %191 : f32 to vector<1x128xf32>
    %193 = arith.mulf %186, %192 : vector<1x128xf32>
    %194 = arith.addf %180, %193 : vector<1x128xf32>
    %c43 = arith.constant 43 : index
    %195 = memref.load %arg1[%c43] : memref<455xf32, #tpu.memory_space<smem>>
    %196 = vector.broadcast %195 : f32 to vector<1x128xf32>
    %197 = arith.mulf %186, %196 : vector<1x128xf32>
    %198 = arith.addf %184, %197 : vector<1x128xf32>
    %199 = vector.extract_strided_slice %84 {offsets = [1, 1, 0], sizes = [1, 1, 128], strides = [1, 1, 1]} : vector<6x6x128xf32> to vector<1x1x128xf32>
    %200 = vector.shape_cast %199 : vector<1x1x128xf32> to vector<1x128xf32>
    %c44 = arith.constant 44 : index
    %201 = memref.load %arg1[%c44] : memref<455xf32, #tpu.memory_space<smem>>
    %202 = vector.broadcast %201 : f32 to vector<1x128xf32>
    %203 = arith.mulf %200, %202 : vector<1x128xf32>
    %204 = arith.addf %190, %203 : vector<1x128xf32>
    %c45 = arith.constant 45 : index
    %205 = memref.load %arg1[%c45] : memref<455xf32, #tpu.memory_space<smem>>
    %206 = vector.broadcast %205 : f32 to vector<1x128xf32>
    %207 = arith.mulf %200, %206 : vector<1x128xf32>
    %208 = arith.addf %194, %207 : vector<1x128xf32>
    %c46 = arith.constant 46 : index
    %209 = memref.load %arg1[%c46] : memref<455xf32, #tpu.memory_space<smem>>
    %210 = vector.broadcast %209 : f32 to vector<1x128xf32>
    %211 = arith.mulf %200, %210 : vector<1x128xf32>
    %212 = arith.addf %198, %211 : vector<1x128xf32>
    %213 = vector.extract_strided_slice %89 {offsets = [1, 1, 0], sizes = [1, 1, 128], strides = [1, 1, 1]} : vector<6x6x128xf32> to vector<1x1x128xf32>
    %214 = vector.shape_cast %213 : vector<1x1x128xf32> to vector<1x128xf32>
    %c47 = arith.constant 47 : index
    %215 = memref.load %arg1[%c47] : memref<455xf32, #tpu.memory_space<smem>>
    %216 = vector.broadcast %215 : f32 to vector<1x128xf32>
    %217 = arith.mulf %214, %216 : vector<1x128xf32>
    %218 = arith.addf %204, %217 : vector<1x128xf32>
    %c48 = arith.constant 48 : index
    %219 = memref.load %arg1[%c48] : memref<455xf32, #tpu.memory_space<smem>>
    %220 = vector.broadcast %219 : f32 to vector<1x128xf32>
    %221 = arith.mulf %214, %220 : vector<1x128xf32>
    %222 = arith.addf %208, %221 : vector<1x128xf32>
    %c49 = arith.constant 49 : index
    %223 = memref.load %arg1[%c49] : memref<455xf32, #tpu.memory_space<smem>>
    %224 = vector.broadcast %223 : f32 to vector<1x128xf32>
    %225 = arith.mulf %214, %224 : vector<1x128xf32>
    %226 = arith.addf %212, %225 : vector<1x128xf32>
    %227 = vector.extract_strided_slice %84 {offsets = [1, 2, 0], sizes = [1, 1, 128], strides = [1, 1, 1]} : vector<6x6x128xf32> to vector<1x1x128xf32>
    %228 = vector.shape_cast %227 : vector<1x1x128xf32> to vector<1x128xf32>
    %c50 = arith.constant 50 : index
    %229 = memref.load %arg1[%c50] : memref<455xf32, #tpu.memory_space<smem>>
    %230 = vector.broadcast %229 : f32 to vector<1x128xf32>
    %231 = arith.mulf %228, %230 : vector<1x128xf32>
    %232 = arith.addf %218, %231 : vector<1x128xf32>
    %c51 = arith.constant 51 : index
    %233 = memref.load %arg1[%c51] : memref<455xf32, #tpu.memory_space<smem>>
    %234 = vector.broadcast %233 : f32 to vector<1x128xf32>
    %235 = arith.mulf %228, %234 : vector<1x128xf32>
    %236 = arith.addf %222, %235 : vector<1x128xf32>
    %c52 = arith.constant 52 : index
    %237 = memref.load %arg1[%c52] : memref<455xf32, #tpu.memory_space<smem>>
    %238 = vector.broadcast %237 : f32 to vector<1x128xf32>
    %239 = arith.mulf %228, %238 : vector<1x128xf32>
    %240 = arith.addf %226, %239 : vector<1x128xf32>
    %241 = vector.extract_strided_slice %89 {offsets = [1, 2, 0], sizes = [1, 1, 128], strides = [1, 1, 1]} : vector<6x6x128xf32> to vector<1x1x128xf32>
    %242 = vector.shape_cast %241 : vector<1x1x128xf32> to vector<1x128xf32>
    %c53 = arith.constant 53 : index
    %243 = memref.load %arg1[%c53] : memref<455xf32, #tpu.memory_space<smem>>
    %244 = vector.broadcast %243 : f32 to vector<1x128xf32>
    %245 = arith.mulf %242, %244 : vector<1x128xf32>
    %246 = arith.addf %232, %245 : vector<1x128xf32>
    %c54 = arith.constant 54 : index
    %247 = memref.load %arg1[%c54] : memref<455xf32, #tpu.memory_space<smem>>
    %248 = vector.broadcast %247 : f32 to vector<1x128xf32>
    %249 = arith.mulf %242, %248 : vector<1x128xf32>
    %250 = arith.addf %236, %249 : vector<1x128xf32>
    %c55 = arith.constant 55 : index
    %251 = memref.load %arg1[%c55] : memref<455xf32, #tpu.memory_space<smem>>
    %252 = vector.broadcast %251 : f32 to vector<1x128xf32>
    %253 = arith.mulf %242, %252 : vector<1x128xf32>
    %254 = arith.addf %240, %253 : vector<1x128xf32>
    %255 = vector.extract_strided_slice %84 {offsets = [2, 0, 0], sizes = [1, 1, 128], strides = [1, 1, 1]} : vector<6x6x128xf32> to vector<1x1x128xf32>
    %256 = vector.shape_cast %255 : vector<1x1x128xf32> to vector<1x128xf32>
    %c56 = arith.constant 56 : index
    %257 = memref.load %arg1[%c56] : memref<455xf32, #tpu.memory_space<smem>>
    %258 = vector.broadcast %257 : f32 to vector<1x128xf32>
    %259 = arith.mulf %256, %258 : vector<1x128xf32>
    %260 = arith.addf %246, %259 : vector<1x128xf32>
    %c57 = arith.constant 57 : index
    %261 = memref.load %arg1[%c57] : memref<455xf32, #tpu.memory_space<smem>>
    %262 = vector.broadcast %261 : f32 to vector<1x128xf32>
    %263 = arith.mulf %256, %262 : vector<1x128xf32>
    %264 = arith.addf %250, %263 : vector<1x128xf32>
    %c58 = arith.constant 58 : index
    %265 = memref.load %arg1[%c58] : memref<455xf32, #tpu.memory_space<smem>>
    %266 = vector.broadcast %265 : f32 to vector<1x128xf32>
    %267 = arith.mulf %256, %266 : vector<1x128xf32>
    %268 = arith.addf %254, %267 : vector<1x128xf32>
    %269 = vector.extract_strided_slice %89 {offsets = [2, 0, 0], sizes = [1, 1, 128], strides = [1, 1, 1]} : vector<6x6x128xf32> to vector<1x1x128xf32>
    %270 = vector.shape_cast %269 : vector<1x1x128xf32> to vector<1x128xf32>
    %c59 = arith.constant 59 : index
    %271 = memref.load %arg1[%c59] : memref<455xf32, #tpu.memory_space<smem>>
    %272 = vector.broadcast %271 : f32 to vector<1x128xf32>
    %273 = arith.mulf %270, %272 : vector<1x128xf32>
    %274 = arith.addf %260, %273 : vector<1x128xf32>
    %c60 = arith.constant 60 : index
    %275 = memref.load %arg1[%c60] : memref<455xf32, #tpu.memory_space<smem>>
    %276 = vector.broadcast %275 : f32 to vector<1x128xf32>
    %277 = arith.mulf %270, %276 : vector<1x128xf32>
    %278 = arith.addf %264, %277 : vector<1x128xf32>
    %c61 = arith.constant 61 : index
    %279 = memref.load %arg1[%c61] : memref<455xf32, #tpu.memory_space<smem>>
    %280 = vector.broadcast %279 : f32 to vector<1x128xf32>
    %281 = arith.mulf %270, %280 : vector<1x128xf32>
    %282 = arith.addf %268, %281 : vector<1x128xf32>
    %283 = vector.extract_strided_slice %84 {offsets = [2, 1, 0], sizes = [1, 1, 128], strides = [1, 1, 1]} : vector<6x6x128xf32> to vector<1x1x128xf32>
    %284 = vector.shape_cast %283 : vector<1x1x128xf32> to vector<1x128xf32>
    %c62 = arith.constant 62 : index
    %285 = memref.load %arg1[%c62] : memref<455xf32, #tpu.memory_space<smem>>
    %286 = vector.broadcast %285 : f32 to vector<1x128xf32>
    %287 = arith.mulf %284, %286 : vector<1x128xf32>
    %288 = arith.addf %274, %287 : vector<1x128xf32>
    %c63 = arith.constant 63 : index
    %289 = memref.load %arg1[%c63] : memref<455xf32, #tpu.memory_space<smem>>
    %290 = vector.broadcast %289 : f32 to vector<1x128xf32>
    %291 = arith.mulf %284, %290 : vector<1x128xf32>
    %292 = arith.addf %278, %291 : vector<1x128xf32>
    %c64 = arith.constant 64 : index
    %293 = memref.load %arg1[%c64] : memref<455xf32, #tpu.memory_space<smem>>
    %294 = vector.broadcast %293 : f32 to vector<1x128xf32>
    %295 = arith.mulf %284, %294 : vector<1x128xf32>
    %296 = arith.addf %282, %295 : vector<1x128xf32>
    %297 = vector.extract_strided_slice %89 {offsets = [2, 1, 0], sizes = [1, 1, 128], strides = [1, 1, 1]} : vector<6x6x128xf32> to vector<1x1x128xf32>
    %298 = vector.shape_cast %297 : vector<1x1x128xf32> to vector<1x128xf32>
    %c65 = arith.constant 65 : index
    %299 = memref.load %arg1[%c65] : memref<455xf32, #tpu.memory_space<smem>>
    %300 = vector.broadcast %299 : f32 to vector<1x128xf32>
    %301 = arith.mulf %298, %300 : vector<1x128xf32>
    %302 = arith.addf %288, %301 : vector<1x128xf32>
    %c66 = arith.constant 66 : index
    %303 = memref.load %arg1[%c66] : memref<455xf32, #tpu.memory_space<smem>>
    %304 = vector.broadcast %303 : f32 to vector<1x128xf32>
    %305 = arith.mulf %298, %304 : vector<1x128xf32>
    %306 = arith.addf %292, %305 : vector<1x128xf32>
    %c67 = arith.constant 67 : index
    %307 = memref.load %arg1[%c67] : memref<455xf32, #tpu.memory_space<smem>>
    %308 = vector.broadcast %307 : f32 to vector<1x128xf32>
    %309 = arith.mulf %298, %308 : vector<1x128xf32>
    %310 = arith.addf %296, %309 : vector<1x128xf32>
    %311 = vector.extract_strided_slice %84 {offsets = [2, 2, 0], sizes = [1, 1, 128], strides = [1, 1, 1]} : vector<6x6x128xf32> to vector<1x1x128xf32>
    %312 = vector.shape_cast %311 : vector<1x1x128xf32> to vector<1x128xf32>
    %c68 = arith.constant 68 : index
    %313 = memref.load %arg1[%c68] : memref<455xf32, #tpu.memory_space<smem>>
    %314 = vector.broadcast %313 : f32 to vector<1x128xf32>
    %315 = arith.mulf %312, %314 : vector<1x128xf32>
    %316 = arith.addf %302, %315 : vector<1x128xf32>
    %c69 = arith.constant 69 : index
    %317 = memref.load %arg1[%c69] : memref<455xf32, #tpu.memory_space<smem>>
    %318 = vector.broadcast %317 : f32 to vector<1x128xf32>
    %319 = arith.mulf %312, %318 : vector<1x128xf32>
    %320 = arith.addf %306, %319 : vector<1x128xf32>
    %c70 = arith.constant 70 : index
    %321 = memref.load %arg1[%c70] : memref<455xf32, #tpu.memory_space<smem>>
    %322 = vector.broadcast %321 : f32 to vector<1x128xf32>
    %323 = arith.mulf %312, %322 : vector<1x128xf32>
    %324 = arith.addf %310, %323 : vector<1x128xf32>
    %325 = vector.extract_strided_slice %89 {offsets = [2, 2, 0], sizes = [1, 1, 128], strides = [1, 1, 1]} : vector<6x6x128xf32> to vector<1x1x128xf32>
    %326 = vector.shape_cast %325 : vector<1x1x128xf32> to vector<1x128xf32>
    %c71 = arith.constant 71 : index
    %327 = memref.load %arg1[%c71] : memref<455xf32, #tpu.memory_space<smem>>
    %328 = vector.broadcast %327 : f32 to vector<1x128xf32>
    %329 = arith.mulf %326, %328 : vector<1x128xf32>
    %330 = arith.addf %316, %329 : vector<1x128xf32>
    %c72 = arith.constant 72 : index
    %331 = memref.load %arg1[%c72] : memref<455xf32, #tpu.memory_space<smem>>
    %332 = vector.broadcast %331 : f32 to vector<1x128xf32>
    %333 = arith.mulf %326, %332 : vector<1x128xf32>
    %334 = arith.addf %320, %333 : vector<1x128xf32>
    %c73 = arith.constant 73 : index
    %335 = memref.load %arg1[%c73] : memref<455xf32, #tpu.memory_space<smem>>
    %336 = vector.broadcast %335 : f32 to vector<1x128xf32>
    %337 = arith.mulf %326, %336 : vector<1x128xf32>
    %338 = arith.addf %324, %337 : vector<1x128xf32>
    %c74 = arith.constant 74 : index
    %339 = memref.load %arg1[%c74] : memref<455xf32, #tpu.memory_space<smem>>
    %340 = vector.broadcast %339 : f32 to vector<1x128xf32>
    %341 = arith.addf %330, %340 : vector<1x128xf32>
    %cst_4 = arith.constant 0.000000e+00 : f32
    %342 = vector.broadcast %cst_4 : f32 to vector<1x128xf32>
    %343 = arith.maximumf %341, %342 : vector<1x128xf32>
    %c75 = arith.constant 75 : index
    %344 = memref.load %arg1[%c75] : memref<455xf32, #tpu.memory_space<smem>>
    %345 = vector.broadcast %344 : f32 to vector<1x128xf32>
    %346 = arith.addf %334, %345 : vector<1x128xf32>
    %cst_5 = arith.constant 0.000000e+00 : f32
    %347 = vector.broadcast %cst_5 : f32 to vector<1x128xf32>
    %348 = arith.maximumf %346, %347 : vector<1x128xf32>
    %c76 = arith.constant 76 : index
    %349 = memref.load %arg1[%c76] : memref<455xf32, #tpu.memory_space<smem>>
    %350 = vector.broadcast %349 : f32 to vector<1x128xf32>
    %351 = arith.addf %338, %350 : vector<1x128xf32>
    %cst_6 = arith.constant 0.000000e+00 : f32
    %352 = vector.broadcast %cst_6 : f32 to vector<1x128xf32>
    %353 = arith.maximumf %351, %352 : vector<1x128xf32>
    %354 = vector.extract_strided_slice %84 {offsets = [0, 2, 0], sizes = [1, 1, 128], strides = [1, 1, 1]} : vector<6x6x128xf32> to vector<1x1x128xf32>
    %355 = vector.shape_cast %354 : vector<1x1x128xf32> to vector<1x128xf32>
    %c20_7 = arith.constant 20 : index
    %356 = memref.load %arg1[%c20_7] : memref<455xf32, #tpu.memory_space<smem>>
    %357 = vector.broadcast %356 : f32 to vector<1x128xf32>
    %358 = arith.mulf %355, %357 : vector<1x128xf32>
    %c21_8 = arith.constant 21 : index
    %359 = memref.load %arg1[%c21_8] : memref<455xf32, #tpu.memory_space<smem>>
    %360 = vector.broadcast %359 : f32 to vector<1x128xf32>
    %361 = arith.mulf %355, %360 : vector<1x128xf32>
    %c22_9 = arith.constant 22 : index
    %362 = memref.load %arg1[%c22_9] : memref<455xf32, #tpu.memory_space<smem>>
    %363 = vector.broadcast %362 : f32 to vector<1x128xf32>
    %364 = arith.mulf %355, %363 : vector<1x128xf32>
    %365 = vector.extract_strided_slice %89 {offsets = [0, 2, 0], sizes = [1, 1, 128], strides = [1, 1, 1]} : vector<6x6x128xf32> to vector<1x1x128xf32>
    %366 = vector.shape_cast %365 : vector<1x1x128xf32> to vector<1x128xf32>
    %c23_10 = arith.constant 23 : index
    %367 = memref.load %arg1[%c23_10] : memref<455xf32, #tpu.memory_space<smem>>
    %368 = vector.broadcast %367 : f32 to vector<1x128xf32>
    %369 = arith.mulf %366, %368 : vector<1x128xf32>
    %370 = arith.addf %358, %369 : vector<1x128xf32>
    %c24_11 = arith.constant 24 : index
    %371 = memref.load %arg1[%c24_11] : memref<455xf32, #tpu.memory_space<smem>>
    %372 = vector.broadcast %371 : f32 to vector<1x128xf32>
    %373 = arith.mulf %366, %372 : vector<1x128xf32>
    %374 = arith.addf %361, %373 : vector<1x128xf32>
    %c25_12 = arith.constant 25 : index
    %375 = memref.load %arg1[%c25_12] : memref<455xf32, #tpu.memory_space<smem>>
    %376 = vector.broadcast %375 : f32 to vector<1x128xf32>
    %377 = arith.mulf %366, %376 : vector<1x128xf32>
    %378 = arith.addf %364, %377 : vector<1x128xf32>
    %379 = vector.extract_strided_slice %84 {offsets = [0, 3, 0], sizes = [1, 1, 128], strides = [1, 1, 1]} : vector<6x6x128xf32> to vector<1x1x128xf32>
    %380 = vector.shape_cast %379 : vector<1x1x128xf32> to vector<1x128xf32>
    %c26_13 = arith.constant 26 : index
    %381 = memref.load %arg1[%c26_13] : memref<455xf32, #tpu.memory_space<smem>>
    %382 = vector.broadcast %381 : f32 to vector<1x128xf32>
    %383 = arith.mulf %380, %382 : vector<1x128xf32>
    %384 = arith.addf %370, %383 : vector<1x128xf32>
    %c27_14 = arith.constant 27 : index
    %385 = memref.load %arg1[%c27_14] : memref<455xf32, #tpu.memory_space<smem>>
    %386 = vector.broadcast %385 : f32 to vector<1x128xf32>
    %387 = arith.mulf %380, %386 : vector<1x128xf32>
    %388 = arith.addf %374, %387 : vector<1x128xf32>
    %c28_15 = arith.constant 28 : index
    %389 = memref.load %arg1[%c28_15] : memref<455xf32, #tpu.memory_space<smem>>
    %390 = vector.broadcast %389 : f32 to vector<1x128xf32>
    %391 = arith.mulf %380, %390 : vector<1x128xf32>
    %392 = arith.addf %378, %391 : vector<1x128xf32>
    %393 = vector.extract_strided_slice %89 {offsets = [0, 3, 0], sizes = [1, 1, 128], strides = [1, 1, 1]} : vector<6x6x128xf32> to vector<1x1x128xf32>
    %394 = vector.shape_cast %393 : vector<1x1x128xf32> to vector<1x128xf32>
    %c29_16 = arith.constant 29 : index
    %395 = memref.load %arg1[%c29_16] : memref<455xf32, #tpu.memory_space<smem>>
    %396 = vector.broadcast %395 : f32 to vector<1x128xf32>
    %397 = arith.mulf %394, %396 : vector<1x128xf32>
    %398 = arith.addf %384, %397 : vector<1x128xf32>
    %c30_17 = arith.constant 30 : index
    %399 = memref.load %arg1[%c30_17] : memref<455xf32, #tpu.memory_space<smem>>
    %400 = vector.broadcast %399 : f32 to vector<1x128xf32>
    %401 = arith.mulf %394, %400 : vector<1x128xf32>
    %402 = arith.addf %388, %401 : vector<1x128xf32>
    %c31_18 = arith.constant 31 : index
    %403 = memref.load %arg1[%c31_18] : memref<455xf32, #tpu.memory_space<smem>>
    %404 = vector.broadcast %403 : f32 to vector<1x128xf32>
    %405 = arith.mulf %394, %404 : vector<1x128xf32>
    %406 = arith.addf %392, %405 : vector<1x128xf32>
    %407 = vector.extract_strided_slice %84 {offsets = [0, 4, 0], sizes = [1, 1, 128], strides = [1, 1, 1]} : vector<6x6x128xf32> to vector<1x1x128xf32>
    %408 = vector.shape_cast %407 : vector<1x1x128xf32> to vector<1x128xf32>
    %c32_19 = arith.constant 32 : index
    %409 = memref.load %arg1[%c32_19] : memref<455xf32, #tpu.memory_space<smem>>
    %410 = vector.broadcast %409 : f32 to vector<1x128xf32>
    %411 = arith.mulf %408, %410 : vector<1x128xf32>
    %412 = arith.addf %398, %411 : vector<1x128xf32>
    %c33_20 = arith.constant 33 : index
    %413 = memref.load %arg1[%c33_20] : memref<455xf32, #tpu.memory_space<smem>>
    %414 = vector.broadcast %413 : f32 to vector<1x128xf32>
    %415 = arith.mulf %408, %414 : vector<1x128xf32>
    %416 = arith.addf %402, %415 : vector<1x128xf32>
    %c34_21 = arith.constant 34 : index
    %417 = memref.load %arg1[%c34_21] : memref<455xf32, #tpu.memory_space<smem>>
    %418 = vector.broadcast %417 : f32 to vector<1x128xf32>
    %419 = arith.mulf %408, %418 : vector<1x128xf32>
    %420 = arith.addf %406, %419 : vector<1x128xf32>
    %421 = vector.extract_strided_slice %89 {offsets = [0, 4, 0], sizes = [1, 1, 128], strides = [1, 1, 1]} : vector<6x6x128xf32> to vector<1x1x128xf32>
    %422 = vector.shape_cast %421 : vector<1x1x128xf32> to vector<1x128xf32>
    %c35_22 = arith.constant 35 : index
    %423 = memref.load %arg1[%c35_22] : memref<455xf32, #tpu.memory_space<smem>>
    %424 = vector.broadcast %423 : f32 to vector<1x128xf32>
    %425 = arith.mulf %422, %424 : vector<1x128xf32>
    %426 = arith.addf %412, %425 : vector<1x128xf32>
    %c36_23 = arith.constant 36 : index
    %427 = memref.load %arg1[%c36_23] : memref<455xf32, #tpu.memory_space<smem>>
    %428 = vector.broadcast %427 : f32 to vector<1x128xf32>
    %429 = arith.mulf %422, %428 : vector<1x128xf32>
    %430 = arith.addf %416, %429 : vector<1x128xf32>
    %c37_24 = arith.constant 37 : index
    %431 = memref.load %arg1[%c37_24] : memref<455xf32, #tpu.memory_space<smem>>
    %432 = vector.broadcast %431 : f32 to vector<1x128xf32>
    %433 = arith.mulf %422, %432 : vector<1x128xf32>
    %434 = arith.addf %420, %433 : vector<1x128xf32>
    %435 = vector.extract_strided_slice %84 {offsets = [1, 2, 0], sizes = [1, 1, 128], strides = [1, 1, 1]} : vector<6x6x128xf32> to vector<1x1x128xf32>
    %436 = vector.shape_cast %435 : vector<1x1x128xf32> to vector<1x128xf32>
    %c38_25 = arith.constant 38 : index
    %437 = memref.load %arg1[%c38_25] : memref<455xf32, #tpu.memory_space<smem>>
    %438 = vector.broadcast %437 : f32 to vector<1x128xf32>
    %439 = arith.mulf %436, %438 : vector<1x128xf32>
    %440 = arith.addf %426, %439 : vector<1x128xf32>
    %c39_26 = arith.constant 39 : index
    %441 = memref.load %arg1[%c39_26] : memref<455xf32, #tpu.memory_space<smem>>
    %442 = vector.broadcast %441 : f32 to vector<1x128xf32>
    %443 = arith.mulf %436, %442 : vector<1x128xf32>
    %444 = arith.addf %430, %443 : vector<1x128xf32>
    %c40_27 = arith.constant 40 : index
    %445 = memref.load %arg1[%c40_27] : memref<455xf32, #tpu.memory_space<smem>>
    %446 = vector.broadcast %445 : f32 to vector<1x128xf32>
    %447 = arith.mulf %436, %446 : vector<1x128xf32>
    %448 = arith.addf %434, %447 : vector<1x128xf32>
    %449 = vector.extract_strided_slice %89 {offsets = [1, 2, 0], sizes = [1, 1, 128], strides = [1, 1, 1]} : vector<6x6x128xf32> to vector<1x1x128xf32>
    %450 = vector.shape_cast %449 : vector<1x1x128xf32> to vector<1x128xf32>
    %c41_28 = arith.constant 41 : index
    %451 = memref.load %arg1[%c41_28] : memref<455xf32, #tpu.memory_space<smem>>
    %452 = vector.broadcast %451 : f32 to vector<1x128xf32>
    %453 = arith.mulf %450, %452 : vector<1x128xf32>
    %454 = arith.addf %440, %453 : vector<1x128xf32>
    %c42_29 = arith.constant 42 : index
    %455 = memref.load %arg1[%c42_29] : memref<455xf32, #tpu.memory_space<smem>>
    %456 = vector.broadcast %455 : f32 to vector<1x128xf32>
    %457 = arith.mulf %450, %456 : vector<1x128xf32>
    %458 = arith.addf %444, %457 : vector<1x128xf32>
    %c43_30 = arith.constant 43 : index
    %459 = memref.load %arg1[%c43_30] : memref<455xf32, #tpu.memory_space<smem>>
    %460 = vector.broadcast %459 : f32 to vector<1x128xf32>
    %461 = arith.mulf %450, %460 : vector<1x128xf32>
    %462 = arith.addf %448, %461 : vector<1x128xf32>
    %463 = vector.extract_strided_slice %84 {offsets = [1, 3, 0], sizes = [1, 1, 128], strides = [1, 1, 1]} : vector<6x6x128xf32> to vector<1x1x128xf32>
    %464 = vector.shape_cast %463 : vector<1x1x128xf32> to vector<1x128xf32>
    %c44_31 = arith.constant 44 : index
    %465 = memref.load %arg1[%c44_31] : memref<455xf32, #tpu.memory_space<smem>>
    %466 = vector.broadcast %465 : f32 to vector<1x128xf32>
    %467 = arith.mulf %464, %466 : vector<1x128xf32>
    %468 = arith.addf %454, %467 : vector<1x128xf32>
    %c45_32 = arith.constant 45 : index
    %469 = memref.load %arg1[%c45_32] : memref<455xf32, #tpu.memory_space<smem>>
    %470 = vector.broadcast %469 : f32 to vector<1x128xf32>
    %471 = arith.mulf %464, %470 : vector<1x128xf32>
    %472 = arith.addf %458, %471 : vector<1x128xf32>
    %c46_33 = arith.constant 46 : index
    %473 = memref.load %arg1[%c46_33] : memref<455xf32, #tpu.memory_space<smem>>
    %474 = vector.broadcast %473 : f32 to vector<1x128xf32>
    %475 = arith.mulf %464, %474 : vector<1x128xf32>
    %476 = arith.addf %462, %475 : vector<1x128xf32>
    %477 = vector.extract_strided_slice %89 {offsets = [1, 3, 0], sizes = [1, 1, 128], strides = [1, 1, 1]} : vector<6x6x128xf32> to vector<1x1x128xf32>
    %478 = vector.shape_cast %477 : vector<1x1x128xf32> to vector<1x128xf32>
    %c47_34 = arith.constant 47 : index
    %479 = memref.load %arg1[%c47_34] : memref<455xf32, #tpu.memory_space<smem>>
    %480 = vector.broadcast %479 : f32 to vector<1x128xf32>
    %481 = arith.mulf %478, %480 : vector<1x128xf32>
    %482 = arith.addf %468, %481 : vector<1x128xf32>
    %c48_35 = arith.constant 48 : index
    %483 = memref.load %arg1[%c48_35] : memref<455xf32, #tpu.memory_space<smem>>
    %484 = vector.broadcast %483 : f32 to vector<1x128xf32>
    %485 = arith.mulf %478, %484 : vector<1x128xf32>
    %486 = arith.addf %472, %485 : vector<1x128xf32>
    %c49_36 = arith.constant 49 : index
    %487 = memref.load %arg1[%c49_36] : memref<455xf32, #tpu.memory_space<smem>>
    %488 = vector.broadcast %487 : f32 to vector<1x128xf32>
    %489 = arith.mulf %478, %488 : vector<1x128xf32>
    %490 = arith.addf %476, %489 : vector<1x128xf32>
    %491 = vector.extract_strided_slice %84 {offsets = [1, 4, 0], sizes = [1, 1, 128], strides = [1, 1, 1]} : vector<6x6x128xf32> to vector<1x1x128xf32>
    %492 = vector.shape_cast %491 : vector<1x1x128xf32> to vector<1x128xf32>
    %c50_37 = arith.constant 50 : index
    %493 = memref.load %arg1[%c50_37] : memref<455xf32, #tpu.memory_space<smem>>
    %494 = vector.broadcast %493 : f32 to vector<1x128xf32>
    %495 = arith.mulf %492, %494 : vector<1x128xf32>
    %496 = arith.addf %482, %495 : vector<1x128xf32>
    %c51_38 = arith.constant 51 : index
    %497 = memref.load %arg1[%c51_38] : memref<455xf32, #tpu.memory_space<smem>>
    %498 = vector.broadcast %497 : f32 to vector<1x128xf32>
    %499 = arith.mulf %492, %498 : vector<1x128xf32>
    %500 = arith.addf %486, %499 : vector<1x128xf32>
    %c52_39 = arith.constant 52 : index
    %501 = memref.load %arg1[%c52_39] : memref<455xf32, #tpu.memory_space<smem>>
    %502 = vector.broadcast %501 : f32 to vector<1x128xf32>
    %503 = arith.mulf %492, %502 : vector<1x128xf32>
    %504 = arith.addf %490, %503 : vector<1x128xf32>
    %505 = vector.extract_strided_slice %89 {offsets = [1, 4, 0], sizes = [1, 1, 128], strides = [1, 1, 1]} : vector<6x6x128xf32> to vector<1x1x128xf32>
    %506 = vector.shape_cast %505 : vector<1x1x128xf32> to vector<1x128xf32>
    %c53_40 = arith.constant 53 : index
    %507 = memref.load %arg1[%c53_40] : memref<455xf32, #tpu.memory_space<smem>>
    %508 = vector.broadcast %507 : f32 to vector<1x128xf32>
    %509 = arith.mulf %506, %508 : vector<1x128xf32>
    %510 = arith.addf %496, %509 : vector<1x128xf32>
    %c54_41 = arith.constant 54 : index
    %511 = memref.load %arg1[%c54_41] : memref<455xf32, #tpu.memory_space<smem>>
    %512 = vector.broadcast %511 : f32 to vector<1x128xf32>
    %513 = arith.mulf %506, %512 : vector<1x128xf32>
    %514 = arith.addf %500, %513 : vector<1x128xf32>
    %c55_42 = arith.constant 55 : index
    %515 = memref.load %arg1[%c55_42] : memref<455xf32, #tpu.memory_space<smem>>
    %516 = vector.broadcast %515 : f32 to vector<1x128xf32>
    %517 = arith.mulf %506, %516 : vector<1x128xf32>
    %518 = arith.addf %504, %517 : vector<1x128xf32>
    %519 = vector.extract_strided_slice %84 {offsets = [2, 2, 0], sizes = [1, 1, 128], strides = [1, 1, 1]} : vector<6x6x128xf32> to vector<1x1x128xf32>
    %520 = vector.shape_cast %519 : vector<1x1x128xf32> to vector<1x128xf32>
    %c56_43 = arith.constant 56 : index
    %521 = memref.load %arg1[%c56_43] : memref<455xf32, #tpu.memory_space<smem>>
    %522 = vector.broadcast %521 : f32 to vector<1x128xf32>
    %523 = arith.mulf %520, %522 : vector<1x128xf32>
    %524 = arith.addf %510, %523 : vector<1x128xf32>
    %c57_44 = arith.constant 57 : index
    %525 = memref.load %arg1[%c57_44] : memref<455xf32, #tpu.memory_space<smem>>
    %526 = vector.broadcast %525 : f32 to vector<1x128xf32>
    %527 = arith.mulf %520, %526 : vector<1x128xf32>
    %528 = arith.addf %514, %527 : vector<1x128xf32>
    %c58_45 = arith.constant 58 : index
    %529 = memref.load %arg1[%c58_45] : memref<455xf32, #tpu.memory_space<smem>>
    %530 = vector.broadcast %529 : f32 to vector<1x128xf32>
    %531 = arith.mulf %520, %530 : vector<1x128xf32>
    %532 = arith.addf %518, %531 : vector<1x128xf32>
    %533 = vector.extract_strided_slice %89 {offsets = [2, 2, 0], sizes = [1, 1, 128], strides = [1, 1, 1]} : vector<6x6x128xf32> to vector<1x1x128xf32>
    %534 = vector.shape_cast %533 : vector<1x1x128xf32> to vector<1x128xf32>
    %c59_46 = arith.constant 59 : index
    %535 = memref.load %arg1[%c59_46] : memref<455xf32, #tpu.memory_space<smem>>
    %536 = vector.broadcast %535 : f32 to vector<1x128xf32>
    %537 = arith.mulf %534, %536 : vector<1x128xf32>
    %538 = arith.addf %524, %537 : vector<1x128xf32>
    %c60_47 = arith.constant 60 : index
    %539 = memref.load %arg1[%c60_47] : memref<455xf32, #tpu.memory_space<smem>>
    %540 = vector.broadcast %539 : f32 to vector<1x128xf32>
    %541 = arith.mulf %534, %540 : vector<1x128xf32>
    %542 = arith.addf %528, %541 : vector<1x128xf32>
    %c61_48 = arith.constant 61 : index
    %543 = memref.load %arg1[%c61_48] : memref<455xf32, #tpu.memory_space<smem>>
    %544 = vector.broadcast %543 : f32 to vector<1x128xf32>
    %545 = arith.mulf %534, %544 : vector<1x128xf32>
    %546 = arith.addf %532, %545 : vector<1x128xf32>
    %547 = vector.extract_strided_slice %84 {offsets = [2, 3, 0], sizes = [1, 1, 128], strides = [1, 1, 1]} : vector<6x6x128xf32> to vector<1x1x128xf32>
    %548 = vector.shape_cast %547 : vector<1x1x128xf32> to vector<1x128xf32>
    %c62_49 = arith.constant 62 : index
    %549 = memref.load %arg1[%c62_49] : memref<455xf32, #tpu.memory_space<smem>>
    %550 = vector.broadcast %549 : f32 to vector<1x128xf32>
    %551 = arith.mulf %548, %550 : vector<1x128xf32>
    %552 = arith.addf %538, %551 : vector<1x128xf32>
    %c63_50 = arith.constant 63 : index
    %553 = memref.load %arg1[%c63_50] : memref<455xf32, #tpu.memory_space<smem>>
    %554 = vector.broadcast %553 : f32 to vector<1x128xf32>
    %555 = arith.mulf %548, %554 : vector<1x128xf32>
    %556 = arith.addf %542, %555 : vector<1x128xf32>
    %c64_51 = arith.constant 64 : index
    %557 = memref.load %arg1[%c64_51] : memref<455xf32, #tpu.memory_space<smem>>
    %558 = vector.broadcast %557 : f32 to vector<1x128xf32>
    %559 = arith.mulf %548, %558 : vector<1x128xf32>
    %560 = arith.addf %546, %559 : vector<1x128xf32>
    %561 = vector.extract_strided_slice %89 {offsets = [2, 3, 0], sizes = [1, 1, 128], strides = [1, 1, 1]} : vector<6x6x128xf32> to vector<1x1x128xf32>
    %562 = vector.shape_cast %561 : vector<1x1x128xf32> to vector<1x128xf32>
    %c65_52 = arith.constant 65 : index
    %563 = memref.load %arg1[%c65_52] : memref<455xf32, #tpu.memory_space<smem>>
    %564 = vector.broadcast %563 : f32 to vector<1x128xf32>
    %565 = arith.mulf %562, %564 : vector<1x128xf32>
    %566 = arith.addf %552, %565 : vector<1x128xf32>
    %c66_53 = arith.constant 66 : index
    %567 = memref.load %arg1[%c66_53] : memref<455xf32, #tpu.memory_space<smem>>
    %568 = vector.broadcast %567 : f32 to vector<1x128xf32>
    %569 = arith.mulf %562, %568 : vector<1x128xf32>
    %570 = arith.addf %556, %569 : vector<1x128xf32>
    %c67_54 = arith.constant 67 : index
    %571 = memref.load %arg1[%c67_54] : memref<455xf32, #tpu.memory_space<smem>>
    %572 = vector.broadcast %571 : f32 to vector<1x128xf32>
    %573 = arith.mulf %562, %572 : vector<1x128xf32>
    %574 = arith.addf %560, %573 : vector<1x128xf32>
    %575 = vector.extract_strided_slice %84 {offsets = [2, 4, 0], sizes = [1, 1, 128], strides = [1, 1, 1]} : vector<6x6x128xf32> to vector<1x1x128xf32>
    %576 = vector.shape_cast %575 : vector<1x1x128xf32> to vector<1x128xf32>
    %c68_55 = arith.constant 68 : index
    %577 = memref.load %arg1[%c68_55] : memref<455xf32, #tpu.memory_space<smem>>
    %578 = vector.broadcast %577 : f32 to vector<1x128xf32>
    %579 = arith.mulf %576, %578 : vector<1x128xf32>
    %580 = arith.addf %566, %579 : vector<1x128xf32>
    %c69_56 = arith.constant 69 : index
    %581 = memref.load %arg1[%c69_56] : memref<455xf32, #tpu.memory_space<smem>>
    %582 = vector.broadcast %581 : f32 to vector<1x128xf32>
    %583 = arith.mulf %576, %582 : vector<1x128xf32>
    %584 = arith.addf %570, %583 : vector<1x128xf32>
    %c70_57 = arith.constant 70 : index
    %585 = memref.load %arg1[%c70_57] : memref<455xf32, #tpu.memory_space<smem>>
    %586 = vector.broadcast %585 : f32 to vector<1x128xf32>
    %587 = arith.mulf %576, %586 : vector<1x128xf32>
    %588 = arith.addf %574, %587 : vector<1x128xf32>
    %589 = vector.extract_strided_slice %89 {offsets = [2, 4, 0], sizes = [1, 1, 128], strides = [1, 1, 1]} : vector<6x6x128xf32> to vector<1x1x128xf32>
    %590 = vector.shape_cast %589 : vector<1x1x128xf32> to vector<1x128xf32>
    %c71_58 = arith.constant 71 : index
    %591 = memref.load %arg1[%c71_58] : memref<455xf32, #tpu.memory_space<smem>>
    %592 = vector.broadcast %591 : f32 to vector<1x128xf32>
    %593 = arith.mulf %590, %592 : vector<1x128xf32>
    %594 = arith.addf %580, %593 : vector<1x128xf32>
    %c72_59 = arith.constant 72 : index
    %595 = memref.load %arg1[%c72_59] : memref<455xf32, #tpu.memory_space<smem>>
    %596 = vector.broadcast %595 : f32 to vector<1x128xf32>
    %597 = arith.mulf %590, %596 : vector<1x128xf32>
    %598 = arith.addf %584, %597 : vector<1x128xf32>
    %c73_60 = arith.constant 73 : index
    %599 = memref.load %arg1[%c73_60] : memref<455xf32, #tpu.memory_space<smem>>
    %600 = vector.broadcast %599 : f32 to vector<1x128xf32>
    %601 = arith.mulf %590, %600 : vector<1x128xf32>
    %602 = arith.addf %588, %601 : vector<1x128xf32>
    %c74_61 = arith.constant 74 : index
    %603 = memref.load %arg1[%c74_61] : memref<455xf32, #tpu.memory_space<smem>>
    %604 = vector.broadcast %603 : f32 to vector<1x128xf32>
    %605 = arith.addf %594, %604 : vector<1x128xf32>
    %cst_62 = arith.constant 0.000000e+00 : f32
    %606 = vector.broadcast %cst_62 : f32 to vector<1x128xf32>
    %607 = arith.maximumf %605, %606 : vector<1x128xf32>
    %c75_63 = arith.constant 75 : index
    %608 = memref.load %arg1[%c75_63] : memref<455xf32, #tpu.memory_space<smem>>
    %609 = vector.broadcast %608 : f32 to vector<1x128xf32>
    %610 = arith.addf %598, %609 : vector<1x128xf32>
    %cst_64 = arith.constant 0.000000e+00 : f32
    %611 = vector.broadcast %cst_64 : f32 to vector<1x128xf32>
    %612 = arith.maximumf %610, %611 : vector<1x128xf32>
    %c76_65 = arith.constant 76 : index
    %613 = memref.load %arg1[%c76_65] : memref<455xf32, #tpu.memory_space<smem>>
    %614 = vector.broadcast %613 : f32 to vector<1x128xf32>
    %615 = arith.addf %602, %614 : vector<1x128xf32>
    %cst_66 = arith.constant 0.000000e+00 : f32
    %616 = vector.broadcast %cst_66 : f32 to vector<1x128xf32>
    %617 = arith.maximumf %615, %616 : vector<1x128xf32>
    %618 = vector.extract_strided_slice %84 {offsets = [2, 0, 0], sizes = [1, 1, 128], strides = [1, 1, 1]} : vector<6x6x128xf32> to vector<1x1x128xf32>
    %619 = vector.shape_cast %618 : vector<1x1x128xf32> to vector<1x128xf32>
    %c20_67 = arith.constant 20 : index
    %620 = memref.load %arg1[%c20_67] : memref<455xf32, #tpu.memory_space<smem>>
    %621 = vector.broadcast %620 : f32 to vector<1x128xf32>
    %622 = arith.mulf %619, %621 : vector<1x128xf32>
    %c21_68 = arith.constant 21 : index
    %623 = memref.load %arg1[%c21_68] : memref<455xf32, #tpu.memory_space<smem>>
    %624 = vector.broadcast %623 : f32 to vector<1x128xf32>
    %625 = arith.mulf %619, %624 : vector<1x128xf32>
    %c22_69 = arith.constant 22 : index
    %626 = memref.load %arg1[%c22_69] : memref<455xf32, #tpu.memory_space<smem>>
    %627 = vector.broadcast %626 : f32 to vector<1x128xf32>
    %628 = arith.mulf %619, %627 : vector<1x128xf32>
    %629 = vector.extract_strided_slice %89 {offsets = [2, 0, 0], sizes = [1, 1, 128], strides = [1, 1, 1]} : vector<6x6x128xf32> to vector<1x1x128xf32>
    %630 = vector.shape_cast %629 : vector<1x1x128xf32> to vector<1x128xf32>
    %c23_70 = arith.constant 23 : index
    %631 = memref.load %arg1[%c23_70] : memref<455xf32, #tpu.memory_space<smem>>
    %632 = vector.broadcast %631 : f32 to vector<1x128xf32>
    %633 = arith.mulf %630, %632 : vector<1x128xf32>
    %634 = arith.addf %622, %633 : vector<1x128xf32>
    %c24_71 = arith.constant 24 : index
    %635 = memref.load %arg1[%c24_71] : memref<455xf32, #tpu.memory_space<smem>>
    %636 = vector.broadcast %635 : f32 to vector<1x128xf32>
    %637 = arith.mulf %630, %636 : vector<1x128xf32>
    %638 = arith.addf %625, %637 : vector<1x128xf32>
    %c25_72 = arith.constant 25 : index
    %639 = memref.load %arg1[%c25_72] : memref<455xf32, #tpu.memory_space<smem>>
    %640 = vector.broadcast %639 : f32 to vector<1x128xf32>
    %641 = arith.mulf %630, %640 : vector<1x128xf32>
    %642 = arith.addf %628, %641 : vector<1x128xf32>
    %643 = vector.extract_strided_slice %84 {offsets = [2, 1, 0], sizes = [1, 1, 128], strides = [1, 1, 1]} : vector<6x6x128xf32> to vector<1x1x128xf32>
    %644 = vector.shape_cast %643 : vector<1x1x128xf32> to vector<1x128xf32>
    %c26_73 = arith.constant 26 : index
    %645 = memref.load %arg1[%c26_73] : memref<455xf32, #tpu.memory_space<smem>>
    %646 = vector.broadcast %645 : f32 to vector<1x128xf32>
    %647 = arith.mulf %644, %646 : vector<1x128xf32>
    %648 = arith.addf %634, %647 : vector<1x128xf32>
    %c27_74 = arith.constant 27 : index
    %649 = memref.load %arg1[%c27_74] : memref<455xf32, #tpu.memory_space<smem>>
    %650 = vector.broadcast %649 : f32 to vector<1x128xf32>
    %651 = arith.mulf %644, %650 : vector<1x128xf32>
    %652 = arith.addf %638, %651 : vector<1x128xf32>
    %c28_75 = arith.constant 28 : index
    %653 = memref.load %arg1[%c28_75] : memref<455xf32, #tpu.memory_space<smem>>
    %654 = vector.broadcast %653 : f32 to vector<1x128xf32>
    %655 = arith.mulf %644, %654 : vector<1x128xf32>
    %656 = arith.addf %642, %655 : vector<1x128xf32>
    %657 = vector.extract_strided_slice %89 {offsets = [2, 1, 0], sizes = [1, 1, 128], strides = [1, 1, 1]} : vector<6x6x128xf32> to vector<1x1x128xf32>
    %658 = vector.shape_cast %657 : vector<1x1x128xf32> to vector<1x128xf32>
    %c29_76 = arith.constant 29 : index
    %659 = memref.load %arg1[%c29_76] : memref<455xf32, #tpu.memory_space<smem>>
    %660 = vector.broadcast %659 : f32 to vector<1x128xf32>
    %661 = arith.mulf %658, %660 : vector<1x128xf32>
    %662 = arith.addf %648, %661 : vector<1x128xf32>
    %c30_77 = arith.constant 30 : index
    %663 = memref.load %arg1[%c30_77] : memref<455xf32, #tpu.memory_space<smem>>
    %664 = vector.broadcast %663 : f32 to vector<1x128xf32>
    %665 = arith.mulf %658, %664 : vector<1x128xf32>
    %666 = arith.addf %652, %665 : vector<1x128xf32>
    %c31_78 = arith.constant 31 : index
    %667 = memref.load %arg1[%c31_78] : memref<455xf32, #tpu.memory_space<smem>>
    %668 = vector.broadcast %667 : f32 to vector<1x128xf32>
    %669 = arith.mulf %658, %668 : vector<1x128xf32>
    %670 = arith.addf %656, %669 : vector<1x128xf32>
    %671 = vector.extract_strided_slice %84 {offsets = [2, 2, 0], sizes = [1, 1, 128], strides = [1, 1, 1]} : vector<6x6x128xf32> to vector<1x1x128xf32>
    %672 = vector.shape_cast %671 : vector<1x1x128xf32> to vector<1x128xf32>
    %c32_79 = arith.constant 32 : index
    %673 = memref.load %arg1[%c32_79] : memref<455xf32, #tpu.memory_space<smem>>
    %674 = vector.broadcast %673 : f32 to vector<1x128xf32>
    %675 = arith.mulf %672, %674 : vector<1x128xf32>
    %676 = arith.addf %662, %675 : vector<1x128xf32>
    %c33_80 = arith.constant 33 : index
    %677 = memref.load %arg1[%c33_80] : memref<455xf32, #tpu.memory_space<smem>>
    %678 = vector.broadcast %677 : f32 to vector<1x128xf32>
    %679 = arith.mulf %672, %678 : vector<1x128xf32>
    %680 = arith.addf %666, %679 : vector<1x128xf32>
    %c34_81 = arith.constant 34 : index
    %681 = memref.load %arg1[%c34_81] : memref<455xf32, #tpu.memory_space<smem>>
    %682 = vector.broadcast %681 : f32 to vector<1x128xf32>
    %683 = arith.mulf %672, %682 : vector<1x128xf32>
    %684 = arith.addf %670, %683 : vector<1x128xf32>
    %685 = vector.extract_strided_slice %89 {offsets = [2, 2, 0], sizes = [1, 1, 128], strides = [1, 1, 1]} : vector<6x6x128xf32> to vector<1x1x128xf32>
    %686 = vector.shape_cast %685 : vector<1x1x128xf32> to vector<1x128xf32>
    %c35_82 = arith.constant 35 : index
    %687 = memref.load %arg1[%c35_82] : memref<455xf32, #tpu.memory_space<smem>>
    %688 = vector.broadcast %687 : f32 to vector<1x128xf32>
    %689 = arith.mulf %686, %688 : vector<1x128xf32>
    %690 = arith.addf %676, %689 : vector<1x128xf32>
    %c36_83 = arith.constant 36 : index
    %691 = memref.load %arg1[%c36_83] : memref<455xf32, #tpu.memory_space<smem>>
    %692 = vector.broadcast %691 : f32 to vector<1x128xf32>
    %693 = arith.mulf %686, %692 : vector<1x128xf32>
    %694 = arith.addf %680, %693 : vector<1x128xf32>
    %c37_84 = arith.constant 37 : index
    %695 = memref.load %arg1[%c37_84] : memref<455xf32, #tpu.memory_space<smem>>
    %696 = vector.broadcast %695 : f32 to vector<1x128xf32>
    %697 = arith.mulf %686, %696 : vector<1x128xf32>
    %698 = arith.addf %684, %697 : vector<1x128xf32>
    %699 = vector.extract_strided_slice %84 {offsets = [3, 0, 0], sizes = [1, 1, 128], strides = [1, 1, 1]} : vector<6x6x128xf32> to vector<1x1x128xf32>
    %700 = vector.shape_cast %699 : vector<1x1x128xf32> to vector<1x128xf32>
    %c38_85 = arith.constant 38 : index
    %701 = memref.load %arg1[%c38_85] : memref<455xf32, #tpu.memory_space<smem>>
    %702 = vector.broadcast %701 : f32 to vector<1x128xf32>
    %703 = arith.mulf %700, %702 : vector<1x128xf32>
    %704 = arith.addf %690, %703 : vector<1x128xf32>
    %c39_86 = arith.constant 39 : index
    %705 = memref.load %arg1[%c39_86] : memref<455xf32, #tpu.memory_space<smem>>
    %706 = vector.broadcast %705 : f32 to vector<1x128xf32>
    %707 = arith.mulf %700, %706 : vector<1x128xf32>
    %708 = arith.addf %694, %707 : vector<1x128xf32>
    %c40_87 = arith.constant 40 : index
    %709 = memref.load %arg1[%c40_87] : memref<455xf32, #tpu.memory_space<smem>>
    %710 = vector.broadcast %709 : f32 to vector<1x128xf32>
    %711 = arith.mulf %700, %710 : vector<1x128xf32>
    %712 = arith.addf %698, %711 : vector<1x128xf32>
    %713 = vector.extract_strided_slice %89 {offsets = [3, 0, 0], sizes = [1, 1, 128], strides = [1, 1, 1]} : vector<6x6x128xf32> to vector<1x1x128xf32>
    %714 = vector.shape_cast %713 : vector<1x1x128xf32> to vector<1x128xf32>
    %c41_88 = arith.constant 41 : index
    %715 = memref.load %arg1[%c41_88] : memref<455xf32, #tpu.memory_space<smem>>
    %716 = vector.broadcast %715 : f32 to vector<1x128xf32>
    %717 = arith.mulf %714, %716 : vector<1x128xf32>
    %718 = arith.addf %704, %717 : vector<1x128xf32>
    %c42_89 = arith.constant 42 : index
    %719 = memref.load %arg1[%c42_89] : memref<455xf32, #tpu.memory_space<smem>>
    %720 = vector.broadcast %719 : f32 to vector<1x128xf32>
    %721 = arith.mulf %714, %720 : vector<1x128xf32>
    %722 = arith.addf %708, %721 : vector<1x128xf32>
    %c43_90 = arith.constant 43 : index
    %723 = memref.load %arg1[%c43_90] : memref<455xf32, #tpu.memory_space<smem>>
    %724 = vector.broadcast %723 : f32 to vector<1x128xf32>
    %725 = arith.mulf %714, %724 : vector<1x128xf32>
    %726 = arith.addf %712, %725 : vector<1x128xf32>
    %727 = vector.extract_strided_slice %84 {offsets = [3, 1, 0], sizes = [1, 1, 128], strides = [1, 1, 1]} : vector<6x6x128xf32> to vector<1x1x128xf32>
    %728 = vector.shape_cast %727 : vector<1x1x128xf32> to vector<1x128xf32>
    %c44_91 = arith.constant 44 : index
    %729 = memref.load %arg1[%c44_91] : memref<455xf32, #tpu.memory_space<smem>>
    %730 = vector.broadcast %729 : f32 to vector<1x128xf32>
    %731 = arith.mulf %728, %730 : vector<1x128xf32>
    %732 = arith.addf %718, %731 : vector<1x128xf32>
    %c45_92 = arith.constant 45 : index
    %733 = memref.load %arg1[%c45_92] : memref<455xf32, #tpu.memory_space<smem>>
    %734 = vector.broadcast %733 : f32 to vector<1x128xf32>
    %735 = arith.mulf %728, %734 : vector<1x128xf32>
    %736 = arith.addf %722, %735 : vector<1x128xf32>
    %c46_93 = arith.constant 46 : index
    %737 = memref.load %arg1[%c46_93] : memref<455xf32, #tpu.memory_space<smem>>
    %738 = vector.broadcast %737 : f32 to vector<1x128xf32>
    %739 = arith.mulf %728, %738 : vector<1x128xf32>
    %740 = arith.addf %726, %739 : vector<1x128xf32>
    %741 = vector.extract_strided_slice %89 {offsets = [3, 1, 0], sizes = [1, 1, 128], strides = [1, 1, 1]} : vector<6x6x128xf32> to vector<1x1x128xf32>
    %742 = vector.shape_cast %741 : vector<1x1x128xf32> to vector<1x128xf32>
    %c47_94 = arith.constant 47 : index
    %743 = memref.load %arg1[%c47_94] : memref<455xf32, #tpu.memory_space<smem>>
    %744 = vector.broadcast %743 : f32 to vector<1x128xf32>
    %745 = arith.mulf %742, %744 : vector<1x128xf32>
    %746 = arith.addf %732, %745 : vector<1x128xf32>
    %c48_95 = arith.constant 48 : index
    %747 = memref.load %arg1[%c48_95] : memref<455xf32, #tpu.memory_space<smem>>
    %748 = vector.broadcast %747 : f32 to vector<1x128xf32>
    %749 = arith.mulf %742, %748 : vector<1x128xf32>
    %750 = arith.addf %736, %749 : vector<1x128xf32>
    %c49_96 = arith.constant 49 : index
    %751 = memref.load %arg1[%c49_96] : memref<455xf32, #tpu.memory_space<smem>>
    %752 = vector.broadcast %751 : f32 to vector<1x128xf32>
    %753 = arith.mulf %742, %752 : vector<1x128xf32>
    %754 = arith.addf %740, %753 : vector<1x128xf32>
    %755 = vector.extract_strided_slice %84 {offsets = [3, 2, 0], sizes = [1, 1, 128], strides = [1, 1, 1]} : vector<6x6x128xf32> to vector<1x1x128xf32>
    %756 = vector.shape_cast %755 : vector<1x1x128xf32> to vector<1x128xf32>
    %c50_97 = arith.constant 50 : index
    %757 = memref.load %arg1[%c50_97] : memref<455xf32, #tpu.memory_space<smem>>
    %758 = vector.broadcast %757 : f32 to vector<1x128xf32>
    %759 = arith.mulf %756, %758 : vector<1x128xf32>
    %760 = arith.addf %746, %759 : vector<1x128xf32>
    %c51_98 = arith.constant 51 : index
    %761 = memref.load %arg1[%c51_98] : memref<455xf32, #tpu.memory_space<smem>>
    %762 = vector.broadcast %761 : f32 to vector<1x128xf32>
    %763 = arith.mulf %756, %762 : vector<1x128xf32>
    %764 = arith.addf %750, %763 : vector<1x128xf32>
    %c52_99 = arith.constant 52 : index
    %765 = memref.load %arg1[%c52_99] : memref<455xf32, #tpu.memory_space<smem>>
    %766 = vector.broadcast %765 : f32 to vector<1x128xf32>
    %767 = arith.mulf %756, %766 : vector<1x128xf32>
    %768 = arith.addf %754, %767 : vector<1x128xf32>
    %769 = vector.extract_strided_slice %89 {offsets = [3, 2, 0], sizes = [1, 1, 128], strides = [1, 1, 1]} : vector<6x6x128xf32> to vector<1x1x128xf32>
    %770 = vector.shape_cast %769 : vector<1x1x128xf32> to vector<1x128xf32>
    %c53_100 = arith.constant 53 : index
    %771 = memref.load %arg1[%c53_100] : memref<455xf32, #tpu.memory_space<smem>>
    %772 = vector.broadcast %771 : f32 to vector<1x128xf32>
    %773 = arith.mulf %770, %772 : vector<1x128xf32>
    %774 = arith.addf %760, %773 : vector<1x128xf32>
    %c54_101 = arith.constant 54 : index
    %775 = memref.load %arg1[%c54_101] : memref<455xf32, #tpu.memory_space<smem>>
    %776 = vector.broadcast %775 : f32 to vector<1x128xf32>
    %777 = arith.mulf %770, %776 : vector<1x128xf32>
    %778 = arith.addf %764, %777 : vector<1x128xf32>
    %c55_102 = arith.constant 55 : index
    %779 = memref.load %arg1[%c55_102] : memref<455xf32, #tpu.memory_space<smem>>
    %780 = vector.broadcast %779 : f32 to vector<1x128xf32>
    %781 = arith.mulf %770, %780 : vector<1x128xf32>
    %782 = arith.addf %768, %781 : vector<1x128xf32>
    %783 = vector.extract_strided_slice %84 {offsets = [4, 0, 0], sizes = [1, 1, 128], strides = [1, 1, 1]} : vector<6x6x128xf32> to vector<1x1x128xf32>
    %784 = vector.shape_cast %783 : vector<1x1x128xf32> to vector<1x128xf32>
    %c56_103 = arith.constant 56 : index
    %785 = memref.load %arg1[%c56_103] : memref<455xf32, #tpu.memory_space<smem>>
    %786 = vector.broadcast %785 : f32 to vector<1x128xf32>
    %787 = arith.mulf %784, %786 : vector<1x128xf32>
    %788 = arith.addf %774, %787 : vector<1x128xf32>
    %c57_104 = arith.constant 57 : index
    %789 = memref.load %arg1[%c57_104] : memref<455xf32, #tpu.memory_space<smem>>
    %790 = vector.broadcast %789 : f32 to vector<1x128xf32>
    %791 = arith.mulf %784, %790 : vector<1x128xf32>
    %792 = arith.addf %778, %791 : vector<1x128xf32>
    %c58_105 = arith.constant 58 : index
    %793 = memref.load %arg1[%c58_105] : memref<455xf32, #tpu.memory_space<smem>>
    %794 = vector.broadcast %793 : f32 to vector<1x128xf32>
    %795 = arith.mulf %784, %794 : vector<1x128xf32>
    %796 = arith.addf %782, %795 : vector<1x128xf32>
    %797 = vector.extract_strided_slice %89 {offsets = [4, 0, 0], sizes = [1, 1, 128], strides = [1, 1, 1]} : vector<6x6x128xf32> to vector<1x1x128xf32>
    %798 = vector.shape_cast %797 : vector<1x1x128xf32> to vector<1x128xf32>
    %c59_106 = arith.constant 59 : index
    %799 = memref.load %arg1[%c59_106] : memref<455xf32, #tpu.memory_space<smem>>
    %800 = vector.broadcast %799 : f32 to vector<1x128xf32>
    %801 = arith.mulf %798, %800 : vector<1x128xf32>
    %802 = arith.addf %788, %801 : vector<1x128xf32>
    %c60_107 = arith.constant 60 : index
    %803 = memref.load %arg1[%c60_107] : memref<455xf32, #tpu.memory_space<smem>>
    %804 = vector.broadcast %803 : f32 to vector<1x128xf32>
    %805 = arith.mulf %798, %804 : vector<1x128xf32>
    %806 = arith.addf %792, %805 : vector<1x128xf32>
    %c61_108 = arith.constant 61 : index
    %807 = memref.load %arg1[%c61_108] : memref<455xf32, #tpu.memory_space<smem>>
    %808 = vector.broadcast %807 : f32 to vector<1x128xf32>
    %809 = arith.mulf %798, %808 : vector<1x128xf32>
    %810 = arith.addf %796, %809 : vector<1x128xf32>
    %811 = vector.extract_strided_slice %84 {offsets = [4, 1, 0], sizes = [1, 1, 128], strides = [1, 1, 1]} : vector<6x6x128xf32> to vector<1x1x128xf32>
    %812 = vector.shape_cast %811 : vector<1x1x128xf32> to vector<1x128xf32>
    %c62_109 = arith.constant 62 : index
    %813 = memref.load %arg1[%c62_109] : memref<455xf32, #tpu.memory_space<smem>>
    %814 = vector.broadcast %813 : f32 to vector<1x128xf32>
    %815 = arith.mulf %812, %814 : vector<1x128xf32>
    %816 = arith.addf %802, %815 : vector<1x128xf32>
    %c63_110 = arith.constant 63 : index
    %817 = memref.load %arg1[%c63_110] : memref<455xf32, #tpu.memory_space<smem>>
    %818 = vector.broadcast %817 : f32 to vector<1x128xf32>
    %819 = arith.mulf %812, %818 : vector<1x128xf32>
    %820 = arith.addf %806, %819 : vector<1x128xf32>
    %c64_111 = arith.constant 64 : index
    %821 = memref.load %arg1[%c64_111] : memref<455xf32, #tpu.memory_space<smem>>
    %822 = vector.broadcast %821 : f32 to vector<1x128xf32>
    %823 = arith.mulf %812, %822 : vector<1x128xf32>
    %824 = arith.addf %810, %823 : vector<1x128xf32>
    %825 = vector.extract_strided_slice %89 {offsets = [4, 1, 0], sizes = [1, 1, 128], strides = [1, 1, 1]} : vector<6x6x128xf32> to vector<1x1x128xf32>
    %826 = vector.shape_cast %825 : vector<1x1x128xf32> to vector<1x128xf32>
    %c65_112 = arith.constant 65 : index
    %827 = memref.load %arg1[%c65_112] : memref<455xf32, #tpu.memory_space<smem>>
    %828 = vector.broadcast %827 : f32 to vector<1x128xf32>
    %829 = arith.mulf %826, %828 : vector<1x128xf32>
    %830 = arith.addf %816, %829 : vector<1x128xf32>
    %c66_113 = arith.constant 66 : index
    %831 = memref.load %arg1[%c66_113] : memref<455xf32, #tpu.memory_space<smem>>
    %832 = vector.broadcast %831 : f32 to vector<1x128xf32>
    %833 = arith.mulf %826, %832 : vector<1x128xf32>
    %834 = arith.addf %820, %833 : vector<1x128xf32>
    %c67_114 = arith.constant 67 : index
    %835 = memref.load %arg1[%c67_114] : memref<455xf32, #tpu.memory_space<smem>>
    %836 = vector.broadcast %835 : f32 to vector<1x128xf32>
    %837 = arith.mulf %826, %836 : vector<1x128xf32>
    %838 = arith.addf %824, %837 : vector<1x128xf32>
    %839 = vector.extract_strided_slice %84 {offsets = [4, 2, 0], sizes = [1, 1, 128], strides = [1, 1, 1]} : vector<6x6x128xf32> to vector<1x1x128xf32>
    %840 = vector.shape_cast %839 : vector<1x1x128xf32> to vector<1x128xf32>
    %c68_115 = arith.constant 68 : index
    %841 = memref.load %arg1[%c68_115] : memref<455xf32, #tpu.memory_space<smem>>
    %842 = vector.broadcast %841 : f32 to vector<1x128xf32>
    %843 = arith.mulf %840, %842 : vector<1x128xf32>
    %844 = arith.addf %830, %843 : vector<1x128xf32>
    %c69_116 = arith.constant 69 : index
    %845 = memref.load %arg1[%c69_116] : memref<455xf32, #tpu.memory_space<smem>>
    %846 = vector.broadcast %845 : f32 to vector<1x128xf32>
    %847 = arith.mulf %840, %846 : vector<1x128xf32>
    %848 = arith.addf %834, %847 : vector<1x128xf32>
    %c70_117 = arith.constant 70 : index
    %849 = memref.load %arg1[%c70_117] : memref<455xf32, #tpu.memory_space<smem>>
    %850 = vector.broadcast %849 : f32 to vector<1x128xf32>
    %851 = arith.mulf %840, %850 : vector<1x128xf32>
    %852 = arith.addf %838, %851 : vector<1x128xf32>
    %853 = vector.extract_strided_slice %89 {offsets = [4, 2, 0], sizes = [1, 1, 128], strides = [1, 1, 1]} : vector<6x6x128xf32> to vector<1x1x128xf32>
    %854 = vector.shape_cast %853 : vector<1x1x128xf32> to vector<1x128xf32>
    %c71_118 = arith.constant 71 : index
    %855 = memref.load %arg1[%c71_118] : memref<455xf32, #tpu.memory_space<smem>>
    %856 = vector.broadcast %855 : f32 to vector<1x128xf32>
    %857 = arith.mulf %854, %856 : vector<1x128xf32>
    %858 = arith.addf %844, %857 : vector<1x128xf32>
    %c72_119 = arith.constant 72 : index
    %859 = memref.load %arg1[%c72_119] : memref<455xf32, #tpu.memory_space<smem>>
    %860 = vector.broadcast %859 : f32 to vector<1x128xf32>
    %861 = arith.mulf %854, %860 : vector<1x128xf32>
    %862 = arith.addf %848, %861 : vector<1x128xf32>
    %c73_120 = arith.constant 73 : index
    %863 = memref.load %arg1[%c73_120] : memref<455xf32, #tpu.memory_space<smem>>
    %864 = vector.broadcast %863 : f32 to vector<1x128xf32>
    %865 = arith.mulf %854, %864 : vector<1x128xf32>
    %866 = arith.addf %852, %865 : vector<1x128xf32>
    %c74_121 = arith.constant 74 : index
    %867 = memref.load %arg1[%c74_121] : memref<455xf32, #tpu.memory_space<smem>>
    %868 = vector.broadcast %867 : f32 to vector<1x128xf32>
    %869 = arith.addf %858, %868 : vector<1x128xf32>
    %cst_122 = arith.constant 0.000000e+00 : f32
    %870 = vector.broadcast %cst_122 : f32 to vector<1x128xf32>
    %871 = arith.maximumf %869, %870 : vector<1x128xf32>
    %c75_123 = arith.constant 75 : index
    %872 = memref.load %arg1[%c75_123] : memref<455xf32, #tpu.memory_space<smem>>
    %873 = vector.broadcast %872 : f32 to vector<1x128xf32>
    %874 = arith.addf %862, %873 : vector<1x128xf32>
    %cst_124 = arith.constant 0.000000e+00 : f32
    %875 = vector.broadcast %cst_124 : f32 to vector<1x128xf32>
    %876 = arith.maximumf %874, %875 : vector<1x128xf32>
    %c76_125 = arith.constant 76 : index
    %877 = memref.load %arg1[%c76_125] : memref<455xf32, #tpu.memory_space<smem>>
    %878 = vector.broadcast %877 : f32 to vector<1x128xf32>
    %879 = arith.addf %866, %878 : vector<1x128xf32>
    %cst_126 = arith.constant 0.000000e+00 : f32
    %880 = vector.broadcast %cst_126 : f32 to vector<1x128xf32>
    %881 = arith.maximumf %879, %880 : vector<1x128xf32>
    %882 = vector.extract_strided_slice %84 {offsets = [2, 2, 0], sizes = [1, 1, 128], strides = [1, 1, 1]} : vector<6x6x128xf32> to vector<1x1x128xf32>
    %883 = vector.shape_cast %882 : vector<1x1x128xf32> to vector<1x128xf32>
    %c20_127 = arith.constant 20 : index
    %884 = memref.load %arg1[%c20_127] : memref<455xf32, #tpu.memory_space<smem>>
    %885 = vector.broadcast %884 : f32 to vector<1x128xf32>
    %886 = arith.mulf %883, %885 : vector<1x128xf32>
    %c21_128 = arith.constant 21 : index
    %887 = memref.load %arg1[%c21_128] : memref<455xf32, #tpu.memory_space<smem>>
    %888 = vector.broadcast %887 : f32 to vector<1x128xf32>
    %889 = arith.mulf %883, %888 : vector<1x128xf32>
    %c22_129 = arith.constant 22 : index
    %890 = memref.load %arg1[%c22_129] : memref<455xf32, #tpu.memory_space<smem>>
    %891 = vector.broadcast %890 : f32 to vector<1x128xf32>
    %892 = arith.mulf %883, %891 : vector<1x128xf32>
    %893 = vector.extract_strided_slice %89 {offsets = [2, 2, 0], sizes = [1, 1, 128], strides = [1, 1, 1]} : vector<6x6x128xf32> to vector<1x1x128xf32>
    %894 = vector.shape_cast %893 : vector<1x1x128xf32> to vector<1x128xf32>
    %c23_130 = arith.constant 23 : index
    %895 = memref.load %arg1[%c23_130] : memref<455xf32, #tpu.memory_space<smem>>
    %896 = vector.broadcast %895 : f32 to vector<1x128xf32>
    %897 = arith.mulf %894, %896 : vector<1x128xf32>
    %898 = arith.addf %886, %897 : vector<1x128xf32>
    %c24_131 = arith.constant 24 : index
    %899 = memref.load %arg1[%c24_131] : memref<455xf32, #tpu.memory_space<smem>>
    %900 = vector.broadcast %899 : f32 to vector<1x128xf32>
    %901 = arith.mulf %894, %900 : vector<1x128xf32>
    %902 = arith.addf %889, %901 : vector<1x128xf32>
    %c25_132 = arith.constant 25 : index
    %903 = memref.load %arg1[%c25_132] : memref<455xf32, #tpu.memory_space<smem>>
    %904 = vector.broadcast %903 : f32 to vector<1x128xf32>
    %905 = arith.mulf %894, %904 : vector<1x128xf32>
    %906 = arith.addf %892, %905 : vector<1x128xf32>
    %907 = vector.extract_strided_slice %84 {offsets = [2, 3, 0], sizes = [1, 1, 128], strides = [1, 1, 1]} : vector<6x6x128xf32> to vector<1x1x128xf32>
    %908 = vector.shape_cast %907 : vector<1x1x128xf32> to vector<1x128xf32>
    %c26_133 = arith.constant 26 : index
    %909 = memref.load %arg1[%c26_133] : memref<455xf32, #tpu.memory_space<smem>>
    %910 = vector.broadcast %909 : f32 to vector<1x128xf32>
    %911 = arith.mulf %908, %910 : vector<1x128xf32>
    %912 = arith.addf %898, %911 : vector<1x128xf32>
    %c27_134 = arith.constant 27 : index
    %913 = memref.load %arg1[%c27_134] : memref<455xf32, #tpu.memory_space<smem>>
    %914 = vector.broadcast %913 : f32 to vector<1x128xf32>
    %915 = arith.mulf %908, %914 : vector<1x128xf32>
    %916 = arith.addf %902, %915 : vector<1x128xf32>
    %c28_135 = arith.constant 28 : index
    %917 = memref.load %arg1[%c28_135] : memref<455xf32, #tpu.memory_space<smem>>
    %918 = vector.broadcast %917 : f32 to vector<1x128xf32>
    %919 = arith.mulf %908, %918 : vector<1x128xf32>
    %920 = arith.addf %906, %919 : vector<1x128xf32>
    %921 = vector.extract_strided_slice %89 {offsets = [2, 3, 0], sizes = [1, 1, 128], strides = [1, 1, 1]} : vector<6x6x128xf32> to vector<1x1x128xf32>
    %922 = vector.shape_cast %921 : vector<1x1x128xf32> to vector<1x128xf32>
    %c29_136 = arith.constant 29 : index
    %923 = memref.load %arg1[%c29_136] : memref<455xf32, #tpu.memory_space<smem>>
    %924 = vector.broadcast %923 : f32 to vector<1x128xf32>
    %925 = arith.mulf %922, %924 : vector<1x128xf32>
    %926 = arith.addf %912, %925 : vector<1x128xf32>
    %c30_137 = arith.constant 30 : index
    %927 = memref.load %arg1[%c30_137] : memref<455xf32, #tpu.memory_space<smem>>
    %928 = vector.broadcast %927 : f32 to vector<1x128xf32>
    %929 = arith.mulf %922, %928 : vector<1x128xf32>
    %930 = arith.addf %916, %929 : vector<1x128xf32>
    %c31_138 = arith.constant 31 : index
    %931 = memref.load %arg1[%c31_138] : memref<455xf32, #tpu.memory_space<smem>>
    %932 = vector.broadcast %931 : f32 to vector<1x128xf32>
    %933 = arith.mulf %922, %932 : vector<1x128xf32>
    %934 = arith.addf %920, %933 : vector<1x128xf32>
    %935 = vector.extract_strided_slice %84 {offsets = [2, 4, 0], sizes = [1, 1, 128], strides = [1, 1, 1]} : vector<6x6x128xf32> to vector<1x1x128xf32>
    %936 = vector.shape_cast %935 : vector<1x1x128xf32> to vector<1x128xf32>
    %c32_139 = arith.constant 32 : index
    %937 = memref.load %arg1[%c32_139] : memref<455xf32, #tpu.memory_space<smem>>
    %938 = vector.broadcast %937 : f32 to vector<1x128xf32>
    %939 = arith.mulf %936, %938 : vector<1x128xf32>
    %940 = arith.addf %926, %939 : vector<1x128xf32>
    %c33_140 = arith.constant 33 : index
    %941 = memref.load %arg1[%c33_140] : memref<455xf32, #tpu.memory_space<smem>>
    %942 = vector.broadcast %941 : f32 to vector<1x128xf32>
    %943 = arith.mulf %936, %942 : vector<1x128xf32>
    %944 = arith.addf %930, %943 : vector<1x128xf32>
    %c34_141 = arith.constant 34 : index
    %945 = memref.load %arg1[%c34_141] : memref<455xf32, #tpu.memory_space<smem>>
    %946 = vector.broadcast %945 : f32 to vector<1x128xf32>
    %947 = arith.mulf %936, %946 : vector<1x128xf32>
    %948 = arith.addf %934, %947 : vector<1x128xf32>
    %949 = vector.extract_strided_slice %89 {offsets = [2, 4, 0], sizes = [1, 1, 128], strides = [1, 1, 1]} : vector<6x6x128xf32> to vector<1x1x128xf32>
    %950 = vector.shape_cast %949 : vector<1x1x128xf32> to vector<1x128xf32>
    %c35_142 = arith.constant 35 : index
    %951 = memref.load %arg1[%c35_142] : memref<455xf32, #tpu.memory_space<smem>>
    %952 = vector.broadcast %951 : f32 to vector<1x128xf32>
    %953 = arith.mulf %950, %952 : vector<1x128xf32>
    %954 = arith.addf %940, %953 : vector<1x128xf32>
    %c36_143 = arith.constant 36 : index
    %955 = memref.load %arg1[%c36_143] : memref<455xf32, #tpu.memory_space<smem>>
    %956 = vector.broadcast %955 : f32 to vector<1x128xf32>
    %957 = arith.mulf %950, %956 : vector<1x128xf32>
    %958 = arith.addf %944, %957 : vector<1x128xf32>
    %c37_144 = arith.constant 37 : index
    %959 = memref.load %arg1[%c37_144] : memref<455xf32, #tpu.memory_space<smem>>
    %960 = vector.broadcast %959 : f32 to vector<1x128xf32>
    %961 = arith.mulf %950, %960 : vector<1x128xf32>
    %962 = arith.addf %948, %961 : vector<1x128xf32>
    %963 = vector.extract_strided_slice %84 {offsets = [3, 2, 0], sizes = [1, 1, 128], strides = [1, 1, 1]} : vector<6x6x128xf32> to vector<1x1x128xf32>
    %964 = vector.shape_cast %963 : vector<1x1x128xf32> to vector<1x128xf32>
    %c38_145 = arith.constant 38 : index
    %965 = memref.load %arg1[%c38_145] : memref<455xf32, #tpu.memory_space<smem>>
    %966 = vector.broadcast %965 : f32 to vector<1x128xf32>
    %967 = arith.mulf %964, %966 : vector<1x128xf32>
    %968 = arith.addf %954, %967 : vector<1x128xf32>
    %c39_146 = arith.constant 39 : index
    %969 = memref.load %arg1[%c39_146] : memref<455xf32, #tpu.memory_space<smem>>
    %970 = vector.broadcast %969 : f32 to vector<1x128xf32>
    %971 = arith.mulf %964, %970 : vector<1x128xf32>
    %972 = arith.addf %958, %971 : vector<1x128xf32>
    %c40_147 = arith.constant 40 : index
    %973 = memref.load %arg1[%c40_147] : memref<455xf32, #tpu.memory_space<smem>>
    %974 = vector.broadcast %973 : f32 to vector<1x128xf32>
    %975 = arith.mulf %964, %974 : vector<1x128xf32>
    %976 = arith.addf %962, %975 : vector<1x128xf32>
    %977 = vector.extract_strided_slice %89 {offsets = [3, 2, 0], sizes = [1, 1, 128], strides = [1, 1, 1]} : vector<6x6x128xf32> to vector<1x1x128xf32>
    %978 = vector.shape_cast %977 : vector<1x1x128xf32> to vector<1x128xf32>
    %c41_148 = arith.constant 41 : index
    %979 = memref.load %arg1[%c41_148] : memref<455xf32, #tpu.memory_space<smem>>
    %980 = vector.broadcast %979 : f32 to vector<1x128xf32>
    %981 = arith.mulf %978, %980 : vector<1x128xf32>
    %982 = arith.addf %968, %981 : vector<1x128xf32>
    %c42_149 = arith.constant 42 : index
    %983 = memref.load %arg1[%c42_149] : memref<455xf32, #tpu.memory_space<smem>>
    %984 = vector.broadcast %983 : f32 to vector<1x128xf32>
    %985 = arith.mulf %978, %984 : vector<1x128xf32>
    %986 = arith.addf %972, %985 : vector<1x128xf32>
    %c43_150 = arith.constant 43 : index
    %987 = memref.load %arg1[%c43_150] : memref<455xf32, #tpu.memory_space<smem>>
    %988 = vector.broadcast %987 : f32 to vector<1x128xf32>
    %989 = arith.mulf %978, %988 : vector<1x128xf32>
    %990 = arith.addf %976, %989 : vector<1x128xf32>
    %991 = vector.extract_strided_slice %84 {offsets = [3, 3, 0], sizes = [1, 1, 128], strides = [1, 1, 1]} : vector<6x6x128xf32> to vector<1x1x128xf32>
    %992 = vector.shape_cast %991 : vector<1x1x128xf32> to vector<1x128xf32>
    %c44_151 = arith.constant 44 : index
    %993 = memref.load %arg1[%c44_151] : memref<455xf32, #tpu.memory_space<smem>>
    %994 = vector.broadcast %993 : f32 to vector<1x128xf32>
    %995 = arith.mulf %992, %994 : vector<1x128xf32>
    %996 = arith.addf %982, %995 : vector<1x128xf32>
    %c45_152 = arith.constant 45 : index
    %997 = memref.load %arg1[%c45_152] : memref<455xf32, #tpu.memory_space<smem>>
    %998 = vector.broadcast %997 : f32 to vector<1x128xf32>
    %999 = arith.mulf %992, %998 : vector<1x128xf32>
    %1000 = arith.addf %986, %999 : vector<1x128xf32>
    %c46_153 = arith.constant 46 : index
    %1001 = memref.load %arg1[%c46_153] : memref<455xf32, #tpu.memory_space<smem>>
    %1002 = vector.broadcast %1001 : f32 to vector<1x128xf32>
    %1003 = arith.mulf %992, %1002 : vector<1x128xf32>
    %1004 = arith.addf %990, %1003 : vector<1x128xf32>
    %1005 = vector.extract_strided_slice %89 {offsets = [3, 3, 0], sizes = [1, 1, 128], strides = [1, 1, 1]} : vector<6x6x128xf32> to vector<1x1x128xf32>
    %1006 = vector.shape_cast %1005 : vector<1x1x128xf32> to vector<1x128xf32>
    %c47_154 = arith.constant 47 : index
    %1007 = memref.load %arg1[%c47_154] : memref<455xf32, #tpu.memory_space<smem>>
    %1008 = vector.broadcast %1007 : f32 to vector<1x128xf32>
    %1009 = arith.mulf %1006, %1008 : vector<1x128xf32>
    %1010 = arith.addf %996, %1009 : vector<1x128xf32>
    %c48_155 = arith.constant 48 : index
    %1011 = memref.load %arg1[%c48_155] : memref<455xf32, #tpu.memory_space<smem>>
    %1012 = vector.broadcast %1011 : f32 to vector<1x128xf32>
    %1013 = arith.mulf %1006, %1012 : vector<1x128xf32>
    %1014 = arith.addf %1000, %1013 : vector<1x128xf32>
    %c49_156 = arith.constant 49 : index
    %1015 = memref.load %arg1[%c49_156] : memref<455xf32, #tpu.memory_space<smem>>
    %1016 = vector.broadcast %1015 : f32 to vector<1x128xf32>
    %1017 = arith.mulf %1006, %1016 : vector<1x128xf32>
    %1018 = arith.addf %1004, %1017 : vector<1x128xf32>
    %1019 = vector.extract_strided_slice %84 {offsets = [3, 4, 0], sizes = [1, 1, 128], strides = [1, 1, 1]} : vector<6x6x128xf32> to vector<1x1x128xf32>
    %1020 = vector.shape_cast %1019 : vector<1x1x128xf32> to vector<1x128xf32>
    %c50_157 = arith.constant 50 : index
    %1021 = memref.load %arg1[%c50_157] : memref<455xf32, #tpu.memory_space<smem>>
    %1022 = vector.broadcast %1021 : f32 to vector<1x128xf32>
    %1023 = arith.mulf %1020, %1022 : vector<1x128xf32>
    %1024 = arith.addf %1010, %1023 : vector<1x128xf32>
    %c51_158 = arith.constant 51 : index
    %1025 = memref.load %arg1[%c51_158] : memref<455xf32, #tpu.memory_space<smem>>
    %1026 = vector.broadcast %1025 : f32 to vector<1x128xf32>
    %1027 = arith.mulf %1020, %1026 : vector<1x128xf32>
    %1028 = arith.addf %1014, %1027 : vector<1x128xf32>
    %c52_159 = arith.constant 52 : index
    %1029 = memref.load %arg1[%c52_159] : memref<455xf32, #tpu.memory_space<smem>>
    %1030 = vector.broadcast %1029 : f32 to vector<1x128xf32>
    %1031 = arith.mulf %1020, %1030 : vector<1x128xf32>
    %1032 = arith.addf %1018, %1031 : vector<1x128xf32>
    %1033 = vector.extract_strided_slice %89 {offsets = [3, 4, 0], sizes = [1, 1, 128], strides = [1, 1, 1]} : vector<6x6x128xf32> to vector<1x1x128xf32>
    %1034 = vector.shape_cast %1033 : vector<1x1x128xf32> to vector<1x128xf32>
    %c53_160 = arith.constant 53 : index
    %1035 = memref.load %arg1[%c53_160] : memref<455xf32, #tpu.memory_space<smem>>
    %1036 = vector.broadcast %1035 : f32 to vector<1x128xf32>
    %1037 = arith.mulf %1034, %1036 : vector<1x128xf32>
    %1038 = arith.addf %1024, %1037 : vector<1x128xf32>
    %c54_161 = arith.constant 54 : index
    %1039 = memref.load %arg1[%c54_161] : memref<455xf32, #tpu.memory_space<smem>>
    %1040 = vector.broadcast %1039 : f32 to vector<1x128xf32>
    %1041 = arith.mulf %1034, %1040 : vector<1x128xf32>
    %1042 = arith.addf %1028, %1041 : vector<1x128xf32>
    %c55_162 = arith.constant 55 : index
    %1043 = memref.load %arg1[%c55_162] : memref<455xf32, #tpu.memory_space<smem>>
    %1044 = vector.broadcast %1043 : f32 to vector<1x128xf32>
    %1045 = arith.mulf %1034, %1044 : vector<1x128xf32>
    %1046 = arith.addf %1032, %1045 : vector<1x128xf32>
    %1047 = vector.extract_strided_slice %84 {offsets = [4, 2, 0], sizes = [1, 1, 128], strides = [1, 1, 1]} : vector<6x6x128xf32> to vector<1x1x128xf32>
    %1048 = vector.shape_cast %1047 : vector<1x1x128xf32> to vector<1x128xf32>
    %c56_163 = arith.constant 56 : index
    %1049 = memref.load %arg1[%c56_163] : memref<455xf32, #tpu.memory_space<smem>>
    %1050 = vector.broadcast %1049 : f32 to vector<1x128xf32>
    %1051 = arith.mulf %1048, %1050 : vector<1x128xf32>
    %1052 = arith.addf %1038, %1051 : vector<1x128xf32>
    %c57_164 = arith.constant 57 : index
    %1053 = memref.load %arg1[%c57_164] : memref<455xf32, #tpu.memory_space<smem>>
    %1054 = vector.broadcast %1053 : f32 to vector<1x128xf32>
    %1055 = arith.mulf %1048, %1054 : vector<1x128xf32>
    %1056 = arith.addf %1042, %1055 : vector<1x128xf32>
    %c58_165 = arith.constant 58 : index
    %1057 = memref.load %arg1[%c58_165] : memref<455xf32, #tpu.memory_space<smem>>
    %1058 = vector.broadcast %1057 : f32 to vector<1x128xf32>
    %1059 = arith.mulf %1048, %1058 : vector<1x128xf32>
    %1060 = arith.addf %1046, %1059 : vector<1x128xf32>
    %1061 = vector.extract_strided_slice %89 {offsets = [4, 2, 0], sizes = [1, 1, 128], strides = [1, 1, 1]} : vector<6x6x128xf32> to vector<1x1x128xf32>
    %1062 = vector.shape_cast %1061 : vector<1x1x128xf32> to vector<1x128xf32>
    %c59_166 = arith.constant 59 : index
    %1063 = memref.load %arg1[%c59_166] : memref<455xf32, #tpu.memory_space<smem>>
    %1064 = vector.broadcast %1063 : f32 to vector<1x128xf32>
    %1065 = arith.mulf %1062, %1064 : vector<1x128xf32>
    %1066 = arith.addf %1052, %1065 : vector<1x128xf32>
    %c60_167 = arith.constant 60 : index
    %1067 = memref.load %arg1[%c60_167] : memref<455xf32, #tpu.memory_space<smem>>
    %1068 = vector.broadcast %1067 : f32 to vector<1x128xf32>
    %1069 = arith.mulf %1062, %1068 : vector<1x128xf32>
    %1070 = arith.addf %1056, %1069 : vector<1x128xf32>
    %c61_168 = arith.constant 61 : index
    %1071 = memref.load %arg1[%c61_168] : memref<455xf32, #tpu.memory_space<smem>>
    %1072 = vector.broadcast %1071 : f32 to vector<1x128xf32>
    %1073 = arith.mulf %1062, %1072 : vector<1x128xf32>
    %1074 = arith.addf %1060, %1073 : vector<1x128xf32>
    %1075 = vector.extract_strided_slice %84 {offsets = [4, 3, 0], sizes = [1, 1, 128], strides = [1, 1, 1]} : vector<6x6x128xf32> to vector<1x1x128xf32>
    %1076 = vector.shape_cast %1075 : vector<1x1x128xf32> to vector<1x128xf32>
    %c62_169 = arith.constant 62 : index
    %1077 = memref.load %arg1[%c62_169] : memref<455xf32, #tpu.memory_space<smem>>
    %1078 = vector.broadcast %1077 : f32 to vector<1x128xf32>
    %1079 = arith.mulf %1076, %1078 : vector<1x128xf32>
    %1080 = arith.addf %1066, %1079 : vector<1x128xf32>
    %c63_170 = arith.constant 63 : index
    %1081 = memref.load %arg1[%c63_170] : memref<455xf32, #tpu.memory_space<smem>>
    %1082 = vector.broadcast %1081 : f32 to vector<1x128xf32>
    %1083 = arith.mulf %1076, %1082 : vector<1x128xf32>
    %1084 = arith.addf %1070, %1083 : vector<1x128xf32>
    %c64_171 = arith.constant 64 : index
    %1085 = memref.load %arg1[%c64_171] : memref<455xf32, #tpu.memory_space<smem>>
    %1086 = vector.broadcast %1085 : f32 to vector<1x128xf32>
    %1087 = arith.mulf %1076, %1086 : vector<1x128xf32>
    %1088 = arith.addf %1074, %1087 : vector<1x128xf32>
    %1089 = vector.extract_strided_slice %89 {offsets = [4, 3, 0], sizes = [1, 1, 128], strides = [1, 1, 1]} : vector<6x6x128xf32> to vector<1x1x128xf32>
    %1090 = vector.shape_cast %1089 : vector<1x1x128xf32> to vector<1x128xf32>
    %c65_172 = arith.constant 65 : index
    %1091 = memref.load %arg1[%c65_172] : memref<455xf32, #tpu.memory_space<smem>>
    %1092 = vector.broadcast %1091 : f32 to vector<1x128xf32>
    %1093 = arith.mulf %1090, %1092 : vector<1x128xf32>
    %1094 = arith.addf %1080, %1093 : vector<1x128xf32>
    %c66_173 = arith.constant 66 : index
    %1095 = memref.load %arg1[%c66_173] : memref<455xf32, #tpu.memory_space<smem>>
    %1096 = vector.broadcast %1095 : f32 to vector<1x128xf32>
    %1097 = arith.mulf %1090, %1096 : vector<1x128xf32>
    %1098 = arith.addf %1084, %1097 : vector<1x128xf32>
    %c67_174 = arith.constant 67 : index
    %1099 = memref.load %arg1[%c67_174] : memref<455xf32, #tpu.memory_space<smem>>
    %1100 = vector.broadcast %1099 : f32 to vector<1x128xf32>
    %1101 = arith.mulf %1090, %1100 : vector<1x128xf32>
    %1102 = arith.addf %1088, %1101 : vector<1x128xf32>
    %1103 = vector.extract_strided_slice %84 {offsets = [4, 4, 0], sizes = [1, 1, 128], strides = [1, 1, 1]} : vector<6x6x128xf32> to vector<1x1x128xf32>
    %1104 = vector.shape_cast %1103 : vector<1x1x128xf32> to vector<1x128xf32>
    %c68_175 = arith.constant 68 : index
    %1105 = memref.load %arg1[%c68_175] : memref<455xf32, #tpu.memory_space<smem>>
    %1106 = vector.broadcast %1105 : f32 to vector<1x128xf32>
    %1107 = arith.mulf %1104, %1106 : vector<1x128xf32>
    %1108 = arith.addf %1094, %1107 : vector<1x128xf32>
    %c69_176 = arith.constant 69 : index
    %1109 = memref.load %arg1[%c69_176] : memref<455xf32, #tpu.memory_space<smem>>
    %1110 = vector.broadcast %1109 : f32 to vector<1x128xf32>
    %1111 = arith.mulf %1104, %1110 : vector<1x128xf32>
    %1112 = arith.addf %1098, %1111 : vector<1x128xf32>
    %c70_177 = arith.constant 70 : index
    %1113 = memref.load %arg1[%c70_177] : memref<455xf32, #tpu.memory_space<smem>>
    %1114 = vector.broadcast %1113 : f32 to vector<1x128xf32>
    %1115 = arith.mulf %1104, %1114 : vector<1x128xf32>
    %1116 = arith.addf %1102, %1115 : vector<1x128xf32>
    %1117 = vector.extract_strided_slice %89 {offsets = [4, 4, 0], sizes = [1, 1, 128], strides = [1, 1, 1]} : vector<6x6x128xf32> to vector<1x1x128xf32>
    %1118 = vector.shape_cast %1117 : vector<1x1x128xf32> to vector<1x128xf32>
    %c71_178 = arith.constant 71 : index
    %1119 = memref.load %arg1[%c71_178] : memref<455xf32, #tpu.memory_space<smem>>
    %1120 = vector.broadcast %1119 : f32 to vector<1x128xf32>
    %1121 = arith.mulf %1118, %1120 : vector<1x128xf32>
    %1122 = arith.addf %1108, %1121 : vector<1x128xf32>
    %c72_179 = arith.constant 72 : index
    %1123 = memref.load %arg1[%c72_179] : memref<455xf32, #tpu.memory_space<smem>>
    %1124 = vector.broadcast %1123 : f32 to vector<1x128xf32>
    %1125 = arith.mulf %1118, %1124 : vector<1x128xf32>
    %1126 = arith.addf %1112, %1125 : vector<1x128xf32>
    %c73_180 = arith.constant 73 : index
    %1127 = memref.load %arg1[%c73_180] : memref<455xf32, #tpu.memory_space<smem>>
    %1128 = vector.broadcast %1127 : f32 to vector<1x128xf32>
    %1129 = arith.mulf %1118, %1128 : vector<1x128xf32>
    %1130 = arith.addf %1116, %1129 : vector<1x128xf32>
    %c74_181 = arith.constant 74 : index
    %1131 = memref.load %arg1[%c74_181] : memref<455xf32, #tpu.memory_space<smem>>
    %1132 = vector.broadcast %1131 : f32 to vector<1x128xf32>
    %1133 = arith.addf %1122, %1132 : vector<1x128xf32>
    %cst_182 = arith.constant 0.000000e+00 : f32
    %1134 = vector.broadcast %cst_182 : f32 to vector<1x128xf32>
    %1135 = arith.maximumf %1133, %1134 : vector<1x128xf32>
    %c75_183 = arith.constant 75 : index
    %1136 = memref.load %arg1[%c75_183] : memref<455xf32, #tpu.memory_space<smem>>
    %1137 = vector.broadcast %1136 : f32 to vector<1x128xf32>
    %1138 = arith.addf %1126, %1137 : vector<1x128xf32>
    %cst_184 = arith.constant 0.000000e+00 : f32
    %1139 = vector.broadcast %cst_184 : f32 to vector<1x128xf32>
    %1140 = arith.maximumf %1138, %1139 : vector<1x128xf32>
    %c76_185 = arith.constant 76 : index
    %1141 = memref.load %arg1[%c76_185] : memref<455xf32, #tpu.memory_space<smem>>
    %1142 = vector.broadcast %1141 : f32 to vector<1x128xf32>
    %1143 = arith.addf %1130, %1142 : vector<1x128xf32>
    %cst_186 = arith.constant 0.000000e+00 : f32
    %1144 = vector.broadcast %cst_186 : f32 to vector<1x128xf32>
    %1145 = arith.maximumf %1143, %1144 : vector<1x128xf32>
    %c77 = arith.constant 77 : index
    %1146 = memref.load %arg1[%c77] : memref<455xf32, #tpu.memory_space<smem>>
    %1147 = vector.broadcast %1146 : f32 to vector<1x128xf32>
    %1148 = arith.mulf %343, %1147 : vector<1x128xf32>
    %c93 = arith.constant 93 : index
    %1149 = memref.load %arg1[%c93] : memref<455xf32, #tpu.memory_space<smem>>
    %1150 = vector.broadcast %1149 : f32 to vector<1x128xf32>
    %1151 = arith.mulf %348, %1150 : vector<1x128xf32>
    %1152 = arith.addf %1148, %1151 : vector<1x128xf32>
    %c109 = arith.constant 109 : index
    %1153 = memref.load %arg1[%c109] : memref<455xf32, #tpu.memory_space<smem>>
    %1154 = vector.broadcast %1153 : f32 to vector<1x128xf32>
    %1155 = arith.mulf %353, %1154 : vector<1x128xf32>
    %1156 = arith.addf %1152, %1155 : vector<1x128xf32>
    %c125 = arith.constant 125 : index
    %1157 = memref.load %arg1[%c125] : memref<455xf32, #tpu.memory_space<smem>>
    %1158 = vector.broadcast %1157 : f32 to vector<1x128xf32>
    %1159 = arith.mulf %607, %1158 : vector<1x128xf32>
    %1160 = arith.addf %1156, %1159 : vector<1x128xf32>
    %c141 = arith.constant 141 : index
    %1161 = memref.load %arg1[%c141] : memref<455xf32, #tpu.memory_space<smem>>
    %1162 = vector.broadcast %1161 : f32 to vector<1x128xf32>
    %1163 = arith.mulf %612, %1162 : vector<1x128xf32>
    %1164 = arith.addf %1160, %1163 : vector<1x128xf32>
    %c157 = arith.constant 157 : index
    %1165 = memref.load %arg1[%c157] : memref<455xf32, #tpu.memory_space<smem>>
    %1166 = vector.broadcast %1165 : f32 to vector<1x128xf32>
    %1167 = arith.mulf %617, %1166 : vector<1x128xf32>
    %1168 = arith.addf %1164, %1167 : vector<1x128xf32>
    %c173 = arith.constant 173 : index
    %1169 = memref.load %arg1[%c173] : memref<455xf32, #tpu.memory_space<smem>>
    %1170 = vector.broadcast %1169 : f32 to vector<1x128xf32>
    %1171 = arith.mulf %871, %1170 : vector<1x128xf32>
    %1172 = arith.addf %1168, %1171 : vector<1x128xf32>
    %c189 = arith.constant 189 : index
    %1173 = memref.load %arg1[%c189] : memref<455xf32, #tpu.memory_space<smem>>
    %1174 = vector.broadcast %1173 : f32 to vector<1x128xf32>
    %1175 = arith.mulf %876, %1174 : vector<1x128xf32>
    %1176 = arith.addf %1172, %1175 : vector<1x128xf32>
    %c205 = arith.constant 205 : index
    %1177 = memref.load %arg1[%c205] : memref<455xf32, #tpu.memory_space<smem>>
    %1178 = vector.broadcast %1177 : f32 to vector<1x128xf32>
    %1179 = arith.mulf %881, %1178 : vector<1x128xf32>
    %1180 = arith.addf %1176, %1179 : vector<1x128xf32>
    %c221 = arith.constant 221 : index
    %1181 = memref.load %arg1[%c221] : memref<455xf32, #tpu.memory_space<smem>>
    %1182 = vector.broadcast %1181 : f32 to vector<1x128xf32>
    %1183 = arith.mulf %1135, %1182 : vector<1x128xf32>
    %1184 = arith.addf %1180, %1183 : vector<1x128xf32>
    %c237 = arith.constant 237 : index
    %1185 = memref.load %arg1[%c237] : memref<455xf32, #tpu.memory_space<smem>>
    %1186 = vector.broadcast %1185 : f32 to vector<1x128xf32>
    %1187 = arith.mulf %1140, %1186 : vector<1x128xf32>
    %1188 = arith.addf %1184, %1187 : vector<1x128xf32>
    %c253 = arith.constant 253 : index
    %1189 = memref.load %arg1[%c253] : memref<455xf32, #tpu.memory_space<smem>>
    %1190 = vector.broadcast %1189 : f32 to vector<1x128xf32>
    %1191 = arith.mulf %1145, %1190 : vector<1x128xf32>
    %1192 = arith.addf %1188, %1191 : vector<1x128xf32>
    %c269 = arith.constant 269 : index
    %1193 = memref.load %arg1[%c269] : memref<455xf32, #tpu.memory_space<smem>>
    %1194 = vector.broadcast %1193 : f32 to vector<1x128xf32>
    %1195 = arith.addf %1192, %1194 : vector<1x128xf32>
    %cst_187 = arith.constant 0.000000e+00 : f32
    %1196 = vector.broadcast %cst_187 : f32 to vector<1x128xf32>
    %1197 = arith.maximumf %1195, %1196 : vector<1x128xf32>
    %c78 = arith.constant 78 : index
    %1198 = memref.load %arg1[%c78] : memref<455xf32, #tpu.memory_space<smem>>
    %1199 = vector.broadcast %1198 : f32 to vector<1x128xf32>
    %1200 = arith.mulf %343, %1199 : vector<1x128xf32>
    %c94 = arith.constant 94 : index
    %1201 = memref.load %arg1[%c94] : memref<455xf32, #tpu.memory_space<smem>>
    %1202 = vector.broadcast %1201 : f32 to vector<1x128xf32>
    %1203 = arith.mulf %348, %1202 : vector<1x128xf32>
    %1204 = arith.addf %1200, %1203 : vector<1x128xf32>
    %c110 = arith.constant 110 : index
    %1205 = memref.load %arg1[%c110] : memref<455xf32, #tpu.memory_space<smem>>
    %1206 = vector.broadcast %1205 : f32 to vector<1x128xf32>
    %1207 = arith.mulf %353, %1206 : vector<1x128xf32>
    %1208 = arith.addf %1204, %1207 : vector<1x128xf32>
    %c126 = arith.constant 126 : index
    %1209 = memref.load %arg1[%c126] : memref<455xf32, #tpu.memory_space<smem>>
    %1210 = vector.broadcast %1209 : f32 to vector<1x128xf32>
    %1211 = arith.mulf %607, %1210 : vector<1x128xf32>
    %1212 = arith.addf %1208, %1211 : vector<1x128xf32>
    %c142 = arith.constant 142 : index
    %1213 = memref.load %arg1[%c142] : memref<455xf32, #tpu.memory_space<smem>>
    %1214 = vector.broadcast %1213 : f32 to vector<1x128xf32>
    %1215 = arith.mulf %612, %1214 : vector<1x128xf32>
    %1216 = arith.addf %1212, %1215 : vector<1x128xf32>
    %c158 = arith.constant 158 : index
    %1217 = memref.load %arg1[%c158] : memref<455xf32, #tpu.memory_space<smem>>
    %1218 = vector.broadcast %1217 : f32 to vector<1x128xf32>
    %1219 = arith.mulf %617, %1218 : vector<1x128xf32>
    %1220 = arith.addf %1216, %1219 : vector<1x128xf32>
    %c174 = arith.constant 174 : index
    %1221 = memref.load %arg1[%c174] : memref<455xf32, #tpu.memory_space<smem>>
    %1222 = vector.broadcast %1221 : f32 to vector<1x128xf32>
    %1223 = arith.mulf %871, %1222 : vector<1x128xf32>
    %1224 = arith.addf %1220, %1223 : vector<1x128xf32>
    %c190 = arith.constant 190 : index
    %1225 = memref.load %arg1[%c190] : memref<455xf32, #tpu.memory_space<smem>>
    %1226 = vector.broadcast %1225 : f32 to vector<1x128xf32>
    %1227 = arith.mulf %876, %1226 : vector<1x128xf32>
    %1228 = arith.addf %1224, %1227 : vector<1x128xf32>
    %c206 = arith.constant 206 : index
    %1229 = memref.load %arg1[%c206] : memref<455xf32, #tpu.memory_space<smem>>
    %1230 = vector.broadcast %1229 : f32 to vector<1x128xf32>
    %1231 = arith.mulf %881, %1230 : vector<1x128xf32>
    %1232 = arith.addf %1228, %1231 : vector<1x128xf32>
    %c222 = arith.constant 222 : index
    %1233 = memref.load %arg1[%c222] : memref<455xf32, #tpu.memory_space<smem>>
    %1234 = vector.broadcast %1233 : f32 to vector<1x128xf32>
    %1235 = arith.mulf %1135, %1234 : vector<1x128xf32>
    %1236 = arith.addf %1232, %1235 : vector<1x128xf32>
    %c238 = arith.constant 238 : index
    %1237 = memref.load %arg1[%c238] : memref<455xf32, #tpu.memory_space<smem>>
    %1238 = vector.broadcast %1237 : f32 to vector<1x128xf32>
    %1239 = arith.mulf %1140, %1238 : vector<1x128xf32>
    %1240 = arith.addf %1236, %1239 : vector<1x128xf32>
    %c254 = arith.constant 254 : index
    %1241 = memref.load %arg1[%c254] : memref<455xf32, #tpu.memory_space<smem>>
    %1242 = vector.broadcast %1241 : f32 to vector<1x128xf32>
    %1243 = arith.mulf %1145, %1242 : vector<1x128xf32>
    %1244 = arith.addf %1240, %1243 : vector<1x128xf32>
    %c270 = arith.constant 270 : index
    %1245 = memref.load %arg1[%c270] : memref<455xf32, #tpu.memory_space<smem>>
    %1246 = vector.broadcast %1245 : f32 to vector<1x128xf32>
    %1247 = arith.addf %1244, %1246 : vector<1x128xf32>
    %cst_188 = arith.constant 0.000000e+00 : f32
    %1248 = vector.broadcast %cst_188 : f32 to vector<1x128xf32>
    %1249 = arith.maximumf %1247, %1248 : vector<1x128xf32>
    %c79 = arith.constant 79 : index
    %1250 = memref.load %arg1[%c79] : memref<455xf32, #tpu.memory_space<smem>>
    %1251 = vector.broadcast %1250 : f32 to vector<1x128xf32>
    %1252 = arith.mulf %343, %1251 : vector<1x128xf32>
    %c95 = arith.constant 95 : index
    %1253 = memref.load %arg1[%c95] : memref<455xf32, #tpu.memory_space<smem>>
    %1254 = vector.broadcast %1253 : f32 to vector<1x128xf32>
    %1255 = arith.mulf %348, %1254 : vector<1x128xf32>
    %1256 = arith.addf %1252, %1255 : vector<1x128xf32>
    %c111 = arith.constant 111 : index
    %1257 = memref.load %arg1[%c111] : memref<455xf32, #tpu.memory_space<smem>>
    %1258 = vector.broadcast %1257 : f32 to vector<1x128xf32>
    %1259 = arith.mulf %353, %1258 : vector<1x128xf32>
    %1260 = arith.addf %1256, %1259 : vector<1x128xf32>
    %c127 = arith.constant 127 : index
    %1261 = memref.load %arg1[%c127] : memref<455xf32, #tpu.memory_space<smem>>
    %1262 = vector.broadcast %1261 : f32 to vector<1x128xf32>
    %1263 = arith.mulf %607, %1262 : vector<1x128xf32>
    %1264 = arith.addf %1260, %1263 : vector<1x128xf32>
    %c143 = arith.constant 143 : index
    %1265 = memref.load %arg1[%c143] : memref<455xf32, #tpu.memory_space<smem>>
    %1266 = vector.broadcast %1265 : f32 to vector<1x128xf32>
    %1267 = arith.mulf %612, %1266 : vector<1x128xf32>
    %1268 = arith.addf %1264, %1267 : vector<1x128xf32>
    %c159 = arith.constant 159 : index
    %1269 = memref.load %arg1[%c159] : memref<455xf32, #tpu.memory_space<smem>>
    %1270 = vector.broadcast %1269 : f32 to vector<1x128xf32>
    %1271 = arith.mulf %617, %1270 : vector<1x128xf32>
    %1272 = arith.addf %1268, %1271 : vector<1x128xf32>
    %c175 = arith.constant 175 : index
    %1273 = memref.load %arg1[%c175] : memref<455xf32, #tpu.memory_space<smem>>
    %1274 = vector.broadcast %1273 : f32 to vector<1x128xf32>
    %1275 = arith.mulf %871, %1274 : vector<1x128xf32>
    %1276 = arith.addf %1272, %1275 : vector<1x128xf32>
    %c191 = arith.constant 191 : index
    %1277 = memref.load %arg1[%c191] : memref<455xf32, #tpu.memory_space<smem>>
    %1278 = vector.broadcast %1277 : f32 to vector<1x128xf32>
    %1279 = arith.mulf %876, %1278 : vector<1x128xf32>
    %1280 = arith.addf %1276, %1279 : vector<1x128xf32>
    %c207 = arith.constant 207 : index
    %1281 = memref.load %arg1[%c207] : memref<455xf32, #tpu.memory_space<smem>>
    %1282 = vector.broadcast %1281 : f32 to vector<1x128xf32>
    %1283 = arith.mulf %881, %1282 : vector<1x128xf32>
    %1284 = arith.addf %1280, %1283 : vector<1x128xf32>
    %c223 = arith.constant 223 : index
    %1285 = memref.load %arg1[%c223] : memref<455xf32, #tpu.memory_space<smem>>
    %1286 = vector.broadcast %1285 : f32 to vector<1x128xf32>
    %1287 = arith.mulf %1135, %1286 : vector<1x128xf32>
    %1288 = arith.addf %1284, %1287 : vector<1x128xf32>
    %c239 = arith.constant 239 : index
    %1289 = memref.load %arg1[%c239] : memref<455xf32, #tpu.memory_space<smem>>
    %1290 = vector.broadcast %1289 : f32 to vector<1x128xf32>
    %1291 = arith.mulf %1140, %1290 : vector<1x128xf32>
    %1292 = arith.addf %1288, %1291 : vector<1x128xf32>
    %c255 = arith.constant 255 : index
    %1293 = memref.load %arg1[%c255] : memref<455xf32, #tpu.memory_space<smem>>
    %1294 = vector.broadcast %1293 : f32 to vector<1x128xf32>
    %1295 = arith.mulf %1145, %1294 : vector<1x128xf32>
    %1296 = arith.addf %1292, %1295 : vector<1x128xf32>
    %c271 = arith.constant 271 : index
    %1297 = memref.load %arg1[%c271] : memref<455xf32, #tpu.memory_space<smem>>
    %1298 = vector.broadcast %1297 : f32 to vector<1x128xf32>
    %1299 = arith.addf %1296, %1298 : vector<1x128xf32>
    %cst_189 = arith.constant 0.000000e+00 : f32
    %1300 = vector.broadcast %cst_189 : f32 to vector<1x128xf32>
    %1301 = arith.maximumf %1299, %1300 : vector<1x128xf32>
    %c80 = arith.constant 80 : index
    %1302 = memref.load %arg1[%c80] : memref<455xf32, #tpu.memory_space<smem>>
    %1303 = vector.broadcast %1302 : f32 to vector<1x128xf32>
    %1304 = arith.mulf %343, %1303 : vector<1x128xf32>
    %c96 = arith.constant 96 : index
    %1305 = memref.load %arg1[%c96] : memref<455xf32, #tpu.memory_space<smem>>
    %1306 = vector.broadcast %1305 : f32 to vector<1x128xf32>
    %1307 = arith.mulf %348, %1306 : vector<1x128xf32>
    %1308 = arith.addf %1304, %1307 : vector<1x128xf32>
    %c112 = arith.constant 112 : index
    %1309 = memref.load %arg1[%c112] : memref<455xf32, #tpu.memory_space<smem>>
    %1310 = vector.broadcast %1309 : f32 to vector<1x128xf32>
    %1311 = arith.mulf %353, %1310 : vector<1x128xf32>
    %1312 = arith.addf %1308, %1311 : vector<1x128xf32>
    %c128 = arith.constant 128 : index
    %1313 = memref.load %arg1[%c128] : memref<455xf32, #tpu.memory_space<smem>>
    %1314 = vector.broadcast %1313 : f32 to vector<1x128xf32>
    %1315 = arith.mulf %607, %1314 : vector<1x128xf32>
    %1316 = arith.addf %1312, %1315 : vector<1x128xf32>
    %c144 = arith.constant 144 : index
    %1317 = memref.load %arg1[%c144] : memref<455xf32, #tpu.memory_space<smem>>
    %1318 = vector.broadcast %1317 : f32 to vector<1x128xf32>
    %1319 = arith.mulf %612, %1318 : vector<1x128xf32>
    %1320 = arith.addf %1316, %1319 : vector<1x128xf32>
    %c160 = arith.constant 160 : index
    %1321 = memref.load %arg1[%c160] : memref<455xf32, #tpu.memory_space<smem>>
    %1322 = vector.broadcast %1321 : f32 to vector<1x128xf32>
    %1323 = arith.mulf %617, %1322 : vector<1x128xf32>
    %1324 = arith.addf %1320, %1323 : vector<1x128xf32>
    %c176 = arith.constant 176 : index
    %1325 = memref.load %arg1[%c176] : memref<455xf32, #tpu.memory_space<smem>>
    %1326 = vector.broadcast %1325 : f32 to vector<1x128xf32>
    %1327 = arith.mulf %871, %1326 : vector<1x128xf32>
    %1328 = arith.addf %1324, %1327 : vector<1x128xf32>
    %c192 = arith.constant 192 : index
    %1329 = memref.load %arg1[%c192] : memref<455xf32, #tpu.memory_space<smem>>
    %1330 = vector.broadcast %1329 : f32 to vector<1x128xf32>
    %1331 = arith.mulf %876, %1330 : vector<1x128xf32>
    %1332 = arith.addf %1328, %1331 : vector<1x128xf32>
    %c208 = arith.constant 208 : index
    %1333 = memref.load %arg1[%c208] : memref<455xf32, #tpu.memory_space<smem>>
    %1334 = vector.broadcast %1333 : f32 to vector<1x128xf32>
    %1335 = arith.mulf %881, %1334 : vector<1x128xf32>
    %1336 = arith.addf %1332, %1335 : vector<1x128xf32>
    %c224 = arith.constant 224 : index
    %1337 = memref.load %arg1[%c224] : memref<455xf32, #tpu.memory_space<smem>>
    %1338 = vector.broadcast %1337 : f32 to vector<1x128xf32>
    %1339 = arith.mulf %1135, %1338 : vector<1x128xf32>
    %1340 = arith.addf %1336, %1339 : vector<1x128xf32>
    %c240 = arith.constant 240 : index
    %1341 = memref.load %arg1[%c240] : memref<455xf32, #tpu.memory_space<smem>>
    %1342 = vector.broadcast %1341 : f32 to vector<1x128xf32>
    %1343 = arith.mulf %1140, %1342 : vector<1x128xf32>
    %1344 = arith.addf %1340, %1343 : vector<1x128xf32>
    %c256 = arith.constant 256 : index
    %1345 = memref.load %arg1[%c256] : memref<455xf32, #tpu.memory_space<smem>>
    %1346 = vector.broadcast %1345 : f32 to vector<1x128xf32>
    %1347 = arith.mulf %1145, %1346 : vector<1x128xf32>
    %1348 = arith.addf %1344, %1347 : vector<1x128xf32>
    %c272 = arith.constant 272 : index
    %1349 = memref.load %arg1[%c272] : memref<455xf32, #tpu.memory_space<smem>>
    %1350 = vector.broadcast %1349 : f32 to vector<1x128xf32>
    %1351 = arith.addf %1348, %1350 : vector<1x128xf32>
    %cst_190 = arith.constant 0.000000e+00 : f32
    %1352 = vector.broadcast %cst_190 : f32 to vector<1x128xf32>
    %1353 = arith.maximumf %1351, %1352 : vector<1x128xf32>
    %c81 = arith.constant 81 : index
    %1354 = memref.load %arg1[%c81] : memref<455xf32, #tpu.memory_space<smem>>
    %1355 = vector.broadcast %1354 : f32 to vector<1x128xf32>
    %1356 = arith.mulf %343, %1355 : vector<1x128xf32>
    %c97 = arith.constant 97 : index
    %1357 = memref.load %arg1[%c97] : memref<455xf32, #tpu.memory_space<smem>>
    %1358 = vector.broadcast %1357 : f32 to vector<1x128xf32>
    %1359 = arith.mulf %348, %1358 : vector<1x128xf32>
    %1360 = arith.addf %1356, %1359 : vector<1x128xf32>
    %c113 = arith.constant 113 : index
    %1361 = memref.load %arg1[%c113] : memref<455xf32, #tpu.memory_space<smem>>
    %1362 = vector.broadcast %1361 : f32 to vector<1x128xf32>
    %1363 = arith.mulf %353, %1362 : vector<1x128xf32>
    %1364 = arith.addf %1360, %1363 : vector<1x128xf32>
    %c129 = arith.constant 129 : index
    %1365 = memref.load %arg1[%c129] : memref<455xf32, #tpu.memory_space<smem>>
    %1366 = vector.broadcast %1365 : f32 to vector<1x128xf32>
    %1367 = arith.mulf %607, %1366 : vector<1x128xf32>
    %1368 = arith.addf %1364, %1367 : vector<1x128xf32>
    %c145 = arith.constant 145 : index
    %1369 = memref.load %arg1[%c145] : memref<455xf32, #tpu.memory_space<smem>>
    %1370 = vector.broadcast %1369 : f32 to vector<1x128xf32>
    %1371 = arith.mulf %612, %1370 : vector<1x128xf32>
    %1372 = arith.addf %1368, %1371 : vector<1x128xf32>
    %c161 = arith.constant 161 : index
    %1373 = memref.load %arg1[%c161] : memref<455xf32, #tpu.memory_space<smem>>
    %1374 = vector.broadcast %1373 : f32 to vector<1x128xf32>
    %1375 = arith.mulf %617, %1374 : vector<1x128xf32>
    %1376 = arith.addf %1372, %1375 : vector<1x128xf32>
    %c177 = arith.constant 177 : index
    %1377 = memref.load %arg1[%c177] : memref<455xf32, #tpu.memory_space<smem>>
    %1378 = vector.broadcast %1377 : f32 to vector<1x128xf32>
    %1379 = arith.mulf %871, %1378 : vector<1x128xf32>
    %1380 = arith.addf %1376, %1379 : vector<1x128xf32>
    %c193 = arith.constant 193 : index
    %1381 = memref.load %arg1[%c193] : memref<455xf32, #tpu.memory_space<smem>>
    %1382 = vector.broadcast %1381 : f32 to vector<1x128xf32>
    %1383 = arith.mulf %876, %1382 : vector<1x128xf32>
    %1384 = arith.addf %1380, %1383 : vector<1x128xf32>
    %c209 = arith.constant 209 : index
    %1385 = memref.load %arg1[%c209] : memref<455xf32, #tpu.memory_space<smem>>
    %1386 = vector.broadcast %1385 : f32 to vector<1x128xf32>
    %1387 = arith.mulf %881, %1386 : vector<1x128xf32>
    %1388 = arith.addf %1384, %1387 : vector<1x128xf32>
    %c225 = arith.constant 225 : index
    %1389 = memref.load %arg1[%c225] : memref<455xf32, #tpu.memory_space<smem>>
    %1390 = vector.broadcast %1389 : f32 to vector<1x128xf32>
    %1391 = arith.mulf %1135, %1390 : vector<1x128xf32>
    %1392 = arith.addf %1388, %1391 : vector<1x128xf32>
    %c241 = arith.constant 241 : index
    %1393 = memref.load %arg1[%c241] : memref<455xf32, #tpu.memory_space<smem>>
    %1394 = vector.broadcast %1393 : f32 to vector<1x128xf32>
    %1395 = arith.mulf %1140, %1394 : vector<1x128xf32>
    %1396 = arith.addf %1392, %1395 : vector<1x128xf32>
    %c257 = arith.constant 257 : index
    %1397 = memref.load %arg1[%c257] : memref<455xf32, #tpu.memory_space<smem>>
    %1398 = vector.broadcast %1397 : f32 to vector<1x128xf32>
    %1399 = arith.mulf %1145, %1398 : vector<1x128xf32>
    %1400 = arith.addf %1396, %1399 : vector<1x128xf32>
    %c273 = arith.constant 273 : index
    %1401 = memref.load %arg1[%c273] : memref<455xf32, #tpu.memory_space<smem>>
    %1402 = vector.broadcast %1401 : f32 to vector<1x128xf32>
    %1403 = arith.addf %1400, %1402 : vector<1x128xf32>
    %cst_191 = arith.constant 0.000000e+00 : f32
    %1404 = vector.broadcast %cst_191 : f32 to vector<1x128xf32>
    %1405 = arith.maximumf %1403, %1404 : vector<1x128xf32>
    %c82 = arith.constant 82 : index
    %1406 = memref.load %arg1[%c82] : memref<455xf32, #tpu.memory_space<smem>>
    %1407 = vector.broadcast %1406 : f32 to vector<1x128xf32>
    %1408 = arith.mulf %343, %1407 : vector<1x128xf32>
    %c98 = arith.constant 98 : index
    %1409 = memref.load %arg1[%c98] : memref<455xf32, #tpu.memory_space<smem>>
    %1410 = vector.broadcast %1409 : f32 to vector<1x128xf32>
    %1411 = arith.mulf %348, %1410 : vector<1x128xf32>
    %1412 = arith.addf %1408, %1411 : vector<1x128xf32>
    %c114 = arith.constant 114 : index
    %1413 = memref.load %arg1[%c114] : memref<455xf32, #tpu.memory_space<smem>>
    %1414 = vector.broadcast %1413 : f32 to vector<1x128xf32>
    %1415 = arith.mulf %353, %1414 : vector<1x128xf32>
    %1416 = arith.addf %1412, %1415 : vector<1x128xf32>
    %c130 = arith.constant 130 : index
    %1417 = memref.load %arg1[%c130] : memref<455xf32, #tpu.memory_space<smem>>
    %1418 = vector.broadcast %1417 : f32 to vector<1x128xf32>
    %1419 = arith.mulf %607, %1418 : vector<1x128xf32>
    %1420 = arith.addf %1416, %1419 : vector<1x128xf32>
    %c146 = arith.constant 146 : index
    %1421 = memref.load %arg1[%c146] : memref<455xf32, #tpu.memory_space<smem>>
    %1422 = vector.broadcast %1421 : f32 to vector<1x128xf32>
    %1423 = arith.mulf %612, %1422 : vector<1x128xf32>
    %1424 = arith.addf %1420, %1423 : vector<1x128xf32>
    %c162 = arith.constant 162 : index
    %1425 = memref.load %arg1[%c162] : memref<455xf32, #tpu.memory_space<smem>>
    %1426 = vector.broadcast %1425 : f32 to vector<1x128xf32>
    %1427 = arith.mulf %617, %1426 : vector<1x128xf32>
    %1428 = arith.addf %1424, %1427 : vector<1x128xf32>
    %c178 = arith.constant 178 : index
    %1429 = memref.load %arg1[%c178] : memref<455xf32, #tpu.memory_space<smem>>
    %1430 = vector.broadcast %1429 : f32 to vector<1x128xf32>
    %1431 = arith.mulf %871, %1430 : vector<1x128xf32>
    %1432 = arith.addf %1428, %1431 : vector<1x128xf32>
    %c194 = arith.constant 194 : index
    %1433 = memref.load %arg1[%c194] : memref<455xf32, #tpu.memory_space<smem>>
    %1434 = vector.broadcast %1433 : f32 to vector<1x128xf32>
    %1435 = arith.mulf %876, %1434 : vector<1x128xf32>
    %1436 = arith.addf %1432, %1435 : vector<1x128xf32>
    %c210 = arith.constant 210 : index
    %1437 = memref.load %arg1[%c210] : memref<455xf32, #tpu.memory_space<smem>>
    %1438 = vector.broadcast %1437 : f32 to vector<1x128xf32>
    %1439 = arith.mulf %881, %1438 : vector<1x128xf32>
    %1440 = arith.addf %1436, %1439 : vector<1x128xf32>
    %c226 = arith.constant 226 : index
    %1441 = memref.load %arg1[%c226] : memref<455xf32, #tpu.memory_space<smem>>
    %1442 = vector.broadcast %1441 : f32 to vector<1x128xf32>
    %1443 = arith.mulf %1135, %1442 : vector<1x128xf32>
    %1444 = arith.addf %1440, %1443 : vector<1x128xf32>
    %c242 = arith.constant 242 : index
    %1445 = memref.load %arg1[%c242] : memref<455xf32, #tpu.memory_space<smem>>
    %1446 = vector.broadcast %1445 : f32 to vector<1x128xf32>
    %1447 = arith.mulf %1140, %1446 : vector<1x128xf32>
    %1448 = arith.addf %1444, %1447 : vector<1x128xf32>
    %c258 = arith.constant 258 : index
    %1449 = memref.load %arg1[%c258] : memref<455xf32, #tpu.memory_space<smem>>
    %1450 = vector.broadcast %1449 : f32 to vector<1x128xf32>
    %1451 = arith.mulf %1145, %1450 : vector<1x128xf32>
    %1452 = arith.addf %1448, %1451 : vector<1x128xf32>
    %c274 = arith.constant 274 : index
    %1453 = memref.load %arg1[%c274] : memref<455xf32, #tpu.memory_space<smem>>
    %1454 = vector.broadcast %1453 : f32 to vector<1x128xf32>
    %1455 = arith.addf %1452, %1454 : vector<1x128xf32>
    %cst_192 = arith.constant 0.000000e+00 : f32
    %1456 = vector.broadcast %cst_192 : f32 to vector<1x128xf32>
    %1457 = arith.maximumf %1455, %1456 : vector<1x128xf32>
    %c83 = arith.constant 83 : index
    %1458 = memref.load %arg1[%c83] : memref<455xf32, #tpu.memory_space<smem>>
    %1459 = vector.broadcast %1458 : f32 to vector<1x128xf32>
    %1460 = arith.mulf %343, %1459 : vector<1x128xf32>
    %c99 = arith.constant 99 : index
    %1461 = memref.load %arg1[%c99] : memref<455xf32, #tpu.memory_space<smem>>
    %1462 = vector.broadcast %1461 : f32 to vector<1x128xf32>
    %1463 = arith.mulf %348, %1462 : vector<1x128xf32>
    %1464 = arith.addf %1460, %1463 : vector<1x128xf32>
    %c115 = arith.constant 115 : index
    %1465 = memref.load %arg1[%c115] : memref<455xf32, #tpu.memory_space<smem>>
    %1466 = vector.broadcast %1465 : f32 to vector<1x128xf32>
    %1467 = arith.mulf %353, %1466 : vector<1x128xf32>
    %1468 = arith.addf %1464, %1467 : vector<1x128xf32>
    %c131 = arith.constant 131 : index
    %1469 = memref.load %arg1[%c131] : memref<455xf32, #tpu.memory_space<smem>>
    %1470 = vector.broadcast %1469 : f32 to vector<1x128xf32>
    %1471 = arith.mulf %607, %1470 : vector<1x128xf32>
    %1472 = arith.addf %1468, %1471 : vector<1x128xf32>
    %c147 = arith.constant 147 : index
    %1473 = memref.load %arg1[%c147] : memref<455xf32, #tpu.memory_space<smem>>
    %1474 = vector.broadcast %1473 : f32 to vector<1x128xf32>
    %1475 = arith.mulf %612, %1474 : vector<1x128xf32>
    %1476 = arith.addf %1472, %1475 : vector<1x128xf32>
    %c163 = arith.constant 163 : index
    %1477 = memref.load %arg1[%c163] : memref<455xf32, #tpu.memory_space<smem>>
    %1478 = vector.broadcast %1477 : f32 to vector<1x128xf32>
    %1479 = arith.mulf %617, %1478 : vector<1x128xf32>
    %1480 = arith.addf %1476, %1479 : vector<1x128xf32>
    %c179 = arith.constant 179 : index
    %1481 = memref.load %arg1[%c179] : memref<455xf32, #tpu.memory_space<smem>>
    %1482 = vector.broadcast %1481 : f32 to vector<1x128xf32>
    %1483 = arith.mulf %871, %1482 : vector<1x128xf32>
    %1484 = arith.addf %1480, %1483 : vector<1x128xf32>
    %c195 = arith.constant 195 : index
    %1485 = memref.load %arg1[%c195] : memref<455xf32, #tpu.memory_space<smem>>
    %1486 = vector.broadcast %1485 : f32 to vector<1x128xf32>
    %1487 = arith.mulf %876, %1486 : vector<1x128xf32>
    %1488 = arith.addf %1484, %1487 : vector<1x128xf32>
    %c211 = arith.constant 211 : index
    %1489 = memref.load %arg1[%c211] : memref<455xf32, #tpu.memory_space<smem>>
    %1490 = vector.broadcast %1489 : f32 to vector<1x128xf32>
    %1491 = arith.mulf %881, %1490 : vector<1x128xf32>
    %1492 = arith.addf %1488, %1491 : vector<1x128xf32>
    %c227 = arith.constant 227 : index
    %1493 = memref.load %arg1[%c227] : memref<455xf32, #tpu.memory_space<smem>>
    %1494 = vector.broadcast %1493 : f32 to vector<1x128xf32>
    %1495 = arith.mulf %1135, %1494 : vector<1x128xf32>
    %1496 = arith.addf %1492, %1495 : vector<1x128xf32>
    %c243 = arith.constant 243 : index
    %1497 = memref.load %arg1[%c243] : memref<455xf32, #tpu.memory_space<smem>>
    %1498 = vector.broadcast %1497 : f32 to vector<1x128xf32>
    %1499 = arith.mulf %1140, %1498 : vector<1x128xf32>
    %1500 = arith.addf %1496, %1499 : vector<1x128xf32>
    %c259 = arith.constant 259 : index
    %1501 = memref.load %arg1[%c259] : memref<455xf32, #tpu.memory_space<smem>>
    %1502 = vector.broadcast %1501 : f32 to vector<1x128xf32>
    %1503 = arith.mulf %1145, %1502 : vector<1x128xf32>
    %1504 = arith.addf %1500, %1503 : vector<1x128xf32>
    %c275 = arith.constant 275 : index
    %1505 = memref.load %arg1[%c275] : memref<455xf32, #tpu.memory_space<smem>>
    %1506 = vector.broadcast %1505 : f32 to vector<1x128xf32>
    %1507 = arith.addf %1504, %1506 : vector<1x128xf32>
    %cst_193 = arith.constant 0.000000e+00 : f32
    %1508 = vector.broadcast %cst_193 : f32 to vector<1x128xf32>
    %1509 = arith.maximumf %1507, %1508 : vector<1x128xf32>
    %c84 = arith.constant 84 : index
    %1510 = memref.load %arg1[%c84] : memref<455xf32, #tpu.memory_space<smem>>
    %1511 = vector.broadcast %1510 : f32 to vector<1x128xf32>
    %1512 = arith.mulf %343, %1511 : vector<1x128xf32>
    %c100 = arith.constant 100 : index
    %1513 = memref.load %arg1[%c100] : memref<455xf32, #tpu.memory_space<smem>>
    %1514 = vector.broadcast %1513 : f32 to vector<1x128xf32>
    %1515 = arith.mulf %348, %1514 : vector<1x128xf32>
    %1516 = arith.addf %1512, %1515 : vector<1x128xf32>
    %c116 = arith.constant 116 : index
    %1517 = memref.load %arg1[%c116] : memref<455xf32, #tpu.memory_space<smem>>
    %1518 = vector.broadcast %1517 : f32 to vector<1x128xf32>
    %1519 = arith.mulf %353, %1518 : vector<1x128xf32>
    %1520 = arith.addf %1516, %1519 : vector<1x128xf32>
    %c132 = arith.constant 132 : index
    %1521 = memref.load %arg1[%c132] : memref<455xf32, #tpu.memory_space<smem>>
    %1522 = vector.broadcast %1521 : f32 to vector<1x128xf32>
    %1523 = arith.mulf %607, %1522 : vector<1x128xf32>
    %1524 = arith.addf %1520, %1523 : vector<1x128xf32>
    %c148 = arith.constant 148 : index
    %1525 = memref.load %arg1[%c148] : memref<455xf32, #tpu.memory_space<smem>>
    %1526 = vector.broadcast %1525 : f32 to vector<1x128xf32>
    %1527 = arith.mulf %612, %1526 : vector<1x128xf32>
    %1528 = arith.addf %1524, %1527 : vector<1x128xf32>
    %c164 = arith.constant 164 : index
    %1529 = memref.load %arg1[%c164] : memref<455xf32, #tpu.memory_space<smem>>
    %1530 = vector.broadcast %1529 : f32 to vector<1x128xf32>
    %1531 = arith.mulf %617, %1530 : vector<1x128xf32>
    %1532 = arith.addf %1528, %1531 : vector<1x128xf32>
    %c180 = arith.constant 180 : index
    %1533 = memref.load %arg1[%c180] : memref<455xf32, #tpu.memory_space<smem>>
    %1534 = vector.broadcast %1533 : f32 to vector<1x128xf32>
    %1535 = arith.mulf %871, %1534 : vector<1x128xf32>
    %1536 = arith.addf %1532, %1535 : vector<1x128xf32>
    %c196 = arith.constant 196 : index
    %1537 = memref.load %arg1[%c196] : memref<455xf32, #tpu.memory_space<smem>>
    %1538 = vector.broadcast %1537 : f32 to vector<1x128xf32>
    %1539 = arith.mulf %876, %1538 : vector<1x128xf32>
    %1540 = arith.addf %1536, %1539 : vector<1x128xf32>
    %c212 = arith.constant 212 : index
    %1541 = memref.load %arg1[%c212] : memref<455xf32, #tpu.memory_space<smem>>
    %1542 = vector.broadcast %1541 : f32 to vector<1x128xf32>
    %1543 = arith.mulf %881, %1542 : vector<1x128xf32>
    %1544 = arith.addf %1540, %1543 : vector<1x128xf32>
    %c228 = arith.constant 228 : index
    %1545 = memref.load %arg1[%c228] : memref<455xf32, #tpu.memory_space<smem>>
    %1546 = vector.broadcast %1545 : f32 to vector<1x128xf32>
    %1547 = arith.mulf %1135, %1546 : vector<1x128xf32>
    %1548 = arith.addf %1544, %1547 : vector<1x128xf32>
    %c244 = arith.constant 244 : index
    %1549 = memref.load %arg1[%c244] : memref<455xf32, #tpu.memory_space<smem>>
    %1550 = vector.broadcast %1549 : f32 to vector<1x128xf32>
    %1551 = arith.mulf %1140, %1550 : vector<1x128xf32>
    %1552 = arith.addf %1548, %1551 : vector<1x128xf32>
    %c260 = arith.constant 260 : index
    %1553 = memref.load %arg1[%c260] : memref<455xf32, #tpu.memory_space<smem>>
    %1554 = vector.broadcast %1553 : f32 to vector<1x128xf32>
    %1555 = arith.mulf %1145, %1554 : vector<1x128xf32>
    %1556 = arith.addf %1552, %1555 : vector<1x128xf32>
    %c276 = arith.constant 276 : index
    %1557 = memref.load %arg1[%c276] : memref<455xf32, #tpu.memory_space<smem>>
    %1558 = vector.broadcast %1557 : f32 to vector<1x128xf32>
    %1559 = arith.addf %1556, %1558 : vector<1x128xf32>
    %cst_194 = arith.constant 0.000000e+00 : f32
    %1560 = vector.broadcast %cst_194 : f32 to vector<1x128xf32>
    %1561 = arith.maximumf %1559, %1560 : vector<1x128xf32>
    %c85 = arith.constant 85 : index
    %1562 = memref.load %arg1[%c85] : memref<455xf32, #tpu.memory_space<smem>>
    %1563 = vector.broadcast %1562 : f32 to vector<1x128xf32>
    %1564 = arith.mulf %343, %1563 : vector<1x128xf32>
    %c101 = arith.constant 101 : index
    %1565 = memref.load %arg1[%c101] : memref<455xf32, #tpu.memory_space<smem>>
    %1566 = vector.broadcast %1565 : f32 to vector<1x128xf32>
    %1567 = arith.mulf %348, %1566 : vector<1x128xf32>
    %1568 = arith.addf %1564, %1567 : vector<1x128xf32>
    %c117 = arith.constant 117 : index
    %1569 = memref.load %arg1[%c117] : memref<455xf32, #tpu.memory_space<smem>>
    %1570 = vector.broadcast %1569 : f32 to vector<1x128xf32>
    %1571 = arith.mulf %353, %1570 : vector<1x128xf32>
    %1572 = arith.addf %1568, %1571 : vector<1x128xf32>
    %c133 = arith.constant 133 : index
    %1573 = memref.load %arg1[%c133] : memref<455xf32, #tpu.memory_space<smem>>
    %1574 = vector.broadcast %1573 : f32 to vector<1x128xf32>
    %1575 = arith.mulf %607, %1574 : vector<1x128xf32>
    %1576 = arith.addf %1572, %1575 : vector<1x128xf32>
    %c149 = arith.constant 149 : index
    %1577 = memref.load %arg1[%c149] : memref<455xf32, #tpu.memory_space<smem>>
    %1578 = vector.broadcast %1577 : f32 to vector<1x128xf32>
    %1579 = arith.mulf %612, %1578 : vector<1x128xf32>
    %1580 = arith.addf %1576, %1579 : vector<1x128xf32>
    %c165 = arith.constant 165 : index
    %1581 = memref.load %arg1[%c165] : memref<455xf32, #tpu.memory_space<smem>>
    %1582 = vector.broadcast %1581 : f32 to vector<1x128xf32>
    %1583 = arith.mulf %617, %1582 : vector<1x128xf32>
    %1584 = arith.addf %1580, %1583 : vector<1x128xf32>
    %c181 = arith.constant 181 : index
    %1585 = memref.load %arg1[%c181] : memref<455xf32, #tpu.memory_space<smem>>
    %1586 = vector.broadcast %1585 : f32 to vector<1x128xf32>
    %1587 = arith.mulf %871, %1586 : vector<1x128xf32>
    %1588 = arith.addf %1584, %1587 : vector<1x128xf32>
    %c197 = arith.constant 197 : index
    %1589 = memref.load %arg1[%c197] : memref<455xf32, #tpu.memory_space<smem>>
    %1590 = vector.broadcast %1589 : f32 to vector<1x128xf32>
    %1591 = arith.mulf %876, %1590 : vector<1x128xf32>
    %1592 = arith.addf %1588, %1591 : vector<1x128xf32>
    %c213 = arith.constant 213 : index
    %1593 = memref.load %arg1[%c213] : memref<455xf32, #tpu.memory_space<smem>>
    %1594 = vector.broadcast %1593 : f32 to vector<1x128xf32>
    %1595 = arith.mulf %881, %1594 : vector<1x128xf32>
    %1596 = arith.addf %1592, %1595 : vector<1x128xf32>
    %c229 = arith.constant 229 : index
    %1597 = memref.load %arg1[%c229] : memref<455xf32, #tpu.memory_space<smem>>
    %1598 = vector.broadcast %1597 : f32 to vector<1x128xf32>
    %1599 = arith.mulf %1135, %1598 : vector<1x128xf32>
    %1600 = arith.addf %1596, %1599 : vector<1x128xf32>
    %c245 = arith.constant 245 : index
    %1601 = memref.load %arg1[%c245] : memref<455xf32, #tpu.memory_space<smem>>
    %1602 = vector.broadcast %1601 : f32 to vector<1x128xf32>
    %1603 = arith.mulf %1140, %1602 : vector<1x128xf32>
    %1604 = arith.addf %1600, %1603 : vector<1x128xf32>
    %c261 = arith.constant 261 : index
    %1605 = memref.load %arg1[%c261] : memref<455xf32, #tpu.memory_space<smem>>
    %1606 = vector.broadcast %1605 : f32 to vector<1x128xf32>
    %1607 = arith.mulf %1145, %1606 : vector<1x128xf32>
    %1608 = arith.addf %1604, %1607 : vector<1x128xf32>
    %c277 = arith.constant 277 : index
    %1609 = memref.load %arg1[%c277] : memref<455xf32, #tpu.memory_space<smem>>
    %1610 = vector.broadcast %1609 : f32 to vector<1x128xf32>
    %1611 = arith.addf %1608, %1610 : vector<1x128xf32>
    %cst_195 = arith.constant 0.000000e+00 : f32
    %1612 = vector.broadcast %cst_195 : f32 to vector<1x128xf32>
    %1613 = arith.maximumf %1611, %1612 : vector<1x128xf32>
    %c86 = arith.constant 86 : index
    %1614 = memref.load %arg1[%c86] : memref<455xf32, #tpu.memory_space<smem>>
    %1615 = vector.broadcast %1614 : f32 to vector<1x128xf32>
    %1616 = arith.mulf %343, %1615 : vector<1x128xf32>
    %c102 = arith.constant 102 : index
    %1617 = memref.load %arg1[%c102] : memref<455xf32, #tpu.memory_space<smem>>
    %1618 = vector.broadcast %1617 : f32 to vector<1x128xf32>
    %1619 = arith.mulf %348, %1618 : vector<1x128xf32>
    %1620 = arith.addf %1616, %1619 : vector<1x128xf32>
    %c118 = arith.constant 118 : index
    %1621 = memref.load %arg1[%c118] : memref<455xf32, #tpu.memory_space<smem>>
    %1622 = vector.broadcast %1621 : f32 to vector<1x128xf32>
    %1623 = arith.mulf %353, %1622 : vector<1x128xf32>
    %1624 = arith.addf %1620, %1623 : vector<1x128xf32>
    %c134 = arith.constant 134 : index
    %1625 = memref.load %arg1[%c134] : memref<455xf32, #tpu.memory_space<smem>>
    %1626 = vector.broadcast %1625 : f32 to vector<1x128xf32>
    %1627 = arith.mulf %607, %1626 : vector<1x128xf32>
    %1628 = arith.addf %1624, %1627 : vector<1x128xf32>
    %c150 = arith.constant 150 : index
    %1629 = memref.load %arg1[%c150] : memref<455xf32, #tpu.memory_space<smem>>
    %1630 = vector.broadcast %1629 : f32 to vector<1x128xf32>
    %1631 = arith.mulf %612, %1630 : vector<1x128xf32>
    %1632 = arith.addf %1628, %1631 : vector<1x128xf32>
    %c166 = arith.constant 166 : index
    %1633 = memref.load %arg1[%c166] : memref<455xf32, #tpu.memory_space<smem>>
    %1634 = vector.broadcast %1633 : f32 to vector<1x128xf32>
    %1635 = arith.mulf %617, %1634 : vector<1x128xf32>
    %1636 = arith.addf %1632, %1635 : vector<1x128xf32>
    %c182 = arith.constant 182 : index
    %1637 = memref.load %arg1[%c182] : memref<455xf32, #tpu.memory_space<smem>>
    %1638 = vector.broadcast %1637 : f32 to vector<1x128xf32>
    %1639 = arith.mulf %871, %1638 : vector<1x128xf32>
    %1640 = arith.addf %1636, %1639 : vector<1x128xf32>
    %c198 = arith.constant 198 : index
    %1641 = memref.load %arg1[%c198] : memref<455xf32, #tpu.memory_space<smem>>
    %1642 = vector.broadcast %1641 : f32 to vector<1x128xf32>
    %1643 = arith.mulf %876, %1642 : vector<1x128xf32>
    %1644 = arith.addf %1640, %1643 : vector<1x128xf32>
    %c214 = arith.constant 214 : index
    %1645 = memref.load %arg1[%c214] : memref<455xf32, #tpu.memory_space<smem>>
    %1646 = vector.broadcast %1645 : f32 to vector<1x128xf32>
    %1647 = arith.mulf %881, %1646 : vector<1x128xf32>
    %1648 = arith.addf %1644, %1647 : vector<1x128xf32>
    %c230 = arith.constant 230 : index
    %1649 = memref.load %arg1[%c230] : memref<455xf32, #tpu.memory_space<smem>>
    %1650 = vector.broadcast %1649 : f32 to vector<1x128xf32>
    %1651 = arith.mulf %1135, %1650 : vector<1x128xf32>
    %1652 = arith.addf %1648, %1651 : vector<1x128xf32>
    %c246 = arith.constant 246 : index
    %1653 = memref.load %arg1[%c246] : memref<455xf32, #tpu.memory_space<smem>>
    %1654 = vector.broadcast %1653 : f32 to vector<1x128xf32>
    %1655 = arith.mulf %1140, %1654 : vector<1x128xf32>
    %1656 = arith.addf %1652, %1655 : vector<1x128xf32>
    %c262 = arith.constant 262 : index
    %1657 = memref.load %arg1[%c262] : memref<455xf32, #tpu.memory_space<smem>>
    %1658 = vector.broadcast %1657 : f32 to vector<1x128xf32>
    %1659 = arith.mulf %1145, %1658 : vector<1x128xf32>
    %1660 = arith.addf %1656, %1659 : vector<1x128xf32>
    %c278 = arith.constant 278 : index
    %1661 = memref.load %arg1[%c278] : memref<455xf32, #tpu.memory_space<smem>>
    %1662 = vector.broadcast %1661 : f32 to vector<1x128xf32>
    %1663 = arith.addf %1660, %1662 : vector<1x128xf32>
    %cst_196 = arith.constant 0.000000e+00 : f32
    %1664 = vector.broadcast %cst_196 : f32 to vector<1x128xf32>
    %1665 = arith.maximumf %1663, %1664 : vector<1x128xf32>
    %c87 = arith.constant 87 : index
    %1666 = memref.load %arg1[%c87] : memref<455xf32, #tpu.memory_space<smem>>
    %1667 = vector.broadcast %1666 : f32 to vector<1x128xf32>
    %1668 = arith.mulf %343, %1667 : vector<1x128xf32>
    %c103 = arith.constant 103 : index
    %1669 = memref.load %arg1[%c103] : memref<455xf32, #tpu.memory_space<smem>>
    %1670 = vector.broadcast %1669 : f32 to vector<1x128xf32>
    %1671 = arith.mulf %348, %1670 : vector<1x128xf32>
    %1672 = arith.addf %1668, %1671 : vector<1x128xf32>
    %c119 = arith.constant 119 : index
    %1673 = memref.load %arg1[%c119] : memref<455xf32, #tpu.memory_space<smem>>
    %1674 = vector.broadcast %1673 : f32 to vector<1x128xf32>
    %1675 = arith.mulf %353, %1674 : vector<1x128xf32>
    %1676 = arith.addf %1672, %1675 : vector<1x128xf32>
    %c135 = arith.constant 135 : index
    %1677 = memref.load %arg1[%c135] : memref<455xf32, #tpu.memory_space<smem>>
    %1678 = vector.broadcast %1677 : f32 to vector<1x128xf32>
    %1679 = arith.mulf %607, %1678 : vector<1x128xf32>
    %1680 = arith.addf %1676, %1679 : vector<1x128xf32>
    %c151 = arith.constant 151 : index
    %1681 = memref.load %arg1[%c151] : memref<455xf32, #tpu.memory_space<smem>>
    %1682 = vector.broadcast %1681 : f32 to vector<1x128xf32>
    %1683 = arith.mulf %612, %1682 : vector<1x128xf32>
    %1684 = arith.addf %1680, %1683 : vector<1x128xf32>
    %c167 = arith.constant 167 : index
    %1685 = memref.load %arg1[%c167] : memref<455xf32, #tpu.memory_space<smem>>
    %1686 = vector.broadcast %1685 : f32 to vector<1x128xf32>
    %1687 = arith.mulf %617, %1686 : vector<1x128xf32>
    %1688 = arith.addf %1684, %1687 : vector<1x128xf32>
    %c183 = arith.constant 183 : index
    %1689 = memref.load %arg1[%c183] : memref<455xf32, #tpu.memory_space<smem>>
    %1690 = vector.broadcast %1689 : f32 to vector<1x128xf32>
    %1691 = arith.mulf %871, %1690 : vector<1x128xf32>
    %1692 = arith.addf %1688, %1691 : vector<1x128xf32>
    %c199 = arith.constant 199 : index
    %1693 = memref.load %arg1[%c199] : memref<455xf32, #tpu.memory_space<smem>>
    %1694 = vector.broadcast %1693 : f32 to vector<1x128xf32>
    %1695 = arith.mulf %876, %1694 : vector<1x128xf32>
    %1696 = arith.addf %1692, %1695 : vector<1x128xf32>
    %c215 = arith.constant 215 : index
    %1697 = memref.load %arg1[%c215] : memref<455xf32, #tpu.memory_space<smem>>
    %1698 = vector.broadcast %1697 : f32 to vector<1x128xf32>
    %1699 = arith.mulf %881, %1698 : vector<1x128xf32>
    %1700 = arith.addf %1696, %1699 : vector<1x128xf32>
    %c231 = arith.constant 231 : index
    %1701 = memref.load %arg1[%c231] : memref<455xf32, #tpu.memory_space<smem>>
    %1702 = vector.broadcast %1701 : f32 to vector<1x128xf32>
    %1703 = arith.mulf %1135, %1702 : vector<1x128xf32>
    %1704 = arith.addf %1700, %1703 : vector<1x128xf32>
    %c247 = arith.constant 247 : index
    %1705 = memref.load %arg1[%c247] : memref<455xf32, #tpu.memory_space<smem>>
    %1706 = vector.broadcast %1705 : f32 to vector<1x128xf32>
    %1707 = arith.mulf %1140, %1706 : vector<1x128xf32>
    %1708 = arith.addf %1704, %1707 : vector<1x128xf32>
    %c263 = arith.constant 263 : index
    %1709 = memref.load %arg1[%c263] : memref<455xf32, #tpu.memory_space<smem>>
    %1710 = vector.broadcast %1709 : f32 to vector<1x128xf32>
    %1711 = arith.mulf %1145, %1710 : vector<1x128xf32>
    %1712 = arith.addf %1708, %1711 : vector<1x128xf32>
    %c279 = arith.constant 279 : index
    %1713 = memref.load %arg1[%c279] : memref<455xf32, #tpu.memory_space<smem>>
    %1714 = vector.broadcast %1713 : f32 to vector<1x128xf32>
    %1715 = arith.addf %1712, %1714 : vector<1x128xf32>
    %cst_197 = arith.constant 0.000000e+00 : f32
    %1716 = vector.broadcast %cst_197 : f32 to vector<1x128xf32>
    %1717 = arith.maximumf %1715, %1716 : vector<1x128xf32>
    %c88 = arith.constant 88 : index
    %1718 = memref.load %arg1[%c88] : memref<455xf32, #tpu.memory_space<smem>>
    %1719 = vector.broadcast %1718 : f32 to vector<1x128xf32>
    %1720 = arith.mulf %343, %1719 : vector<1x128xf32>
    %c104 = arith.constant 104 : index
    %1721 = memref.load %arg1[%c104] : memref<455xf32, #tpu.memory_space<smem>>
    %1722 = vector.broadcast %1721 : f32 to vector<1x128xf32>
    %1723 = arith.mulf %348, %1722 : vector<1x128xf32>
    %1724 = arith.addf %1720, %1723 : vector<1x128xf32>
    %c120 = arith.constant 120 : index
    %1725 = memref.load %arg1[%c120] : memref<455xf32, #tpu.memory_space<smem>>
    %1726 = vector.broadcast %1725 : f32 to vector<1x128xf32>
    %1727 = arith.mulf %353, %1726 : vector<1x128xf32>
    %1728 = arith.addf %1724, %1727 : vector<1x128xf32>
    %c136 = arith.constant 136 : index
    %1729 = memref.load %arg1[%c136] : memref<455xf32, #tpu.memory_space<smem>>
    %1730 = vector.broadcast %1729 : f32 to vector<1x128xf32>
    %1731 = arith.mulf %607, %1730 : vector<1x128xf32>
    %1732 = arith.addf %1728, %1731 : vector<1x128xf32>
    %c152 = arith.constant 152 : index
    %1733 = memref.load %arg1[%c152] : memref<455xf32, #tpu.memory_space<smem>>
    %1734 = vector.broadcast %1733 : f32 to vector<1x128xf32>
    %1735 = arith.mulf %612, %1734 : vector<1x128xf32>
    %1736 = arith.addf %1732, %1735 : vector<1x128xf32>
    %c168 = arith.constant 168 : index
    %1737 = memref.load %arg1[%c168] : memref<455xf32, #tpu.memory_space<smem>>
    %1738 = vector.broadcast %1737 : f32 to vector<1x128xf32>
    %1739 = arith.mulf %617, %1738 : vector<1x128xf32>
    %1740 = arith.addf %1736, %1739 : vector<1x128xf32>
    %c184 = arith.constant 184 : index
    %1741 = memref.load %arg1[%c184] : memref<455xf32, #tpu.memory_space<smem>>
    %1742 = vector.broadcast %1741 : f32 to vector<1x128xf32>
    %1743 = arith.mulf %871, %1742 : vector<1x128xf32>
    %1744 = arith.addf %1740, %1743 : vector<1x128xf32>
    %c200 = arith.constant 200 : index
    %1745 = memref.load %arg1[%c200] : memref<455xf32, #tpu.memory_space<smem>>
    %1746 = vector.broadcast %1745 : f32 to vector<1x128xf32>
    %1747 = arith.mulf %876, %1746 : vector<1x128xf32>
    %1748 = arith.addf %1744, %1747 : vector<1x128xf32>
    %c216 = arith.constant 216 : index
    %1749 = memref.load %arg1[%c216] : memref<455xf32, #tpu.memory_space<smem>>
    %1750 = vector.broadcast %1749 : f32 to vector<1x128xf32>
    %1751 = arith.mulf %881, %1750 : vector<1x128xf32>
    %1752 = arith.addf %1748, %1751 : vector<1x128xf32>
    %c232 = arith.constant 232 : index
    %1753 = memref.load %arg1[%c232] : memref<455xf32, #tpu.memory_space<smem>>
    %1754 = vector.broadcast %1753 : f32 to vector<1x128xf32>
    %1755 = arith.mulf %1135, %1754 : vector<1x128xf32>
    %1756 = arith.addf %1752, %1755 : vector<1x128xf32>
    %c248 = arith.constant 248 : index
    %1757 = memref.load %arg1[%c248] : memref<455xf32, #tpu.memory_space<smem>>
    %1758 = vector.broadcast %1757 : f32 to vector<1x128xf32>
    %1759 = arith.mulf %1140, %1758 : vector<1x128xf32>
    %1760 = arith.addf %1756, %1759 : vector<1x128xf32>
    %c264 = arith.constant 264 : index
    %1761 = memref.load %arg1[%c264] : memref<455xf32, #tpu.memory_space<smem>>
    %1762 = vector.broadcast %1761 : f32 to vector<1x128xf32>
    %1763 = arith.mulf %1145, %1762 : vector<1x128xf32>
    %1764 = arith.addf %1760, %1763 : vector<1x128xf32>
    %c280 = arith.constant 280 : index
    %1765 = memref.load %arg1[%c280] : memref<455xf32, #tpu.memory_space<smem>>
    %1766 = vector.broadcast %1765 : f32 to vector<1x128xf32>
    %1767 = arith.addf %1764, %1766 : vector<1x128xf32>
    %cst_198 = arith.constant 0.000000e+00 : f32
    %1768 = vector.broadcast %cst_198 : f32 to vector<1x128xf32>
    %1769 = arith.maximumf %1767, %1768 : vector<1x128xf32>
    %c89 = arith.constant 89 : index
    %1770 = memref.load %arg1[%c89] : memref<455xf32, #tpu.memory_space<smem>>
    %1771 = vector.broadcast %1770 : f32 to vector<1x128xf32>
    %1772 = arith.mulf %343, %1771 : vector<1x128xf32>
    %c105 = arith.constant 105 : index
    %1773 = memref.load %arg1[%c105] : memref<455xf32, #tpu.memory_space<smem>>
    %1774 = vector.broadcast %1773 : f32 to vector<1x128xf32>
    %1775 = arith.mulf %348, %1774 : vector<1x128xf32>
    %1776 = arith.addf %1772, %1775 : vector<1x128xf32>
    %c121 = arith.constant 121 : index
    %1777 = memref.load %arg1[%c121] : memref<455xf32, #tpu.memory_space<smem>>
    %1778 = vector.broadcast %1777 : f32 to vector<1x128xf32>
    %1779 = arith.mulf %353, %1778 : vector<1x128xf32>
    %1780 = arith.addf %1776, %1779 : vector<1x128xf32>
    %c137 = arith.constant 137 : index
    %1781 = memref.load %arg1[%c137] : memref<455xf32, #tpu.memory_space<smem>>
    %1782 = vector.broadcast %1781 : f32 to vector<1x128xf32>
    %1783 = arith.mulf %607, %1782 : vector<1x128xf32>
    %1784 = arith.addf %1780, %1783 : vector<1x128xf32>
    %c153 = arith.constant 153 : index
    %1785 = memref.load %arg1[%c153] : memref<455xf32, #tpu.memory_space<smem>>
    %1786 = vector.broadcast %1785 : f32 to vector<1x128xf32>
    %1787 = arith.mulf %612, %1786 : vector<1x128xf32>
    %1788 = arith.addf %1784, %1787 : vector<1x128xf32>
    %c169 = arith.constant 169 : index
    %1789 = memref.load %arg1[%c169] : memref<455xf32, #tpu.memory_space<smem>>
    %1790 = vector.broadcast %1789 : f32 to vector<1x128xf32>
    %1791 = arith.mulf %617, %1790 : vector<1x128xf32>
    %1792 = arith.addf %1788, %1791 : vector<1x128xf32>
    %c185 = arith.constant 185 : index
    %1793 = memref.load %arg1[%c185] : memref<455xf32, #tpu.memory_space<smem>>
    %1794 = vector.broadcast %1793 : f32 to vector<1x128xf32>
    %1795 = arith.mulf %871, %1794 : vector<1x128xf32>
    %1796 = arith.addf %1792, %1795 : vector<1x128xf32>
    %c201 = arith.constant 201 : index
    %1797 = memref.load %arg1[%c201] : memref<455xf32, #tpu.memory_space<smem>>
    %1798 = vector.broadcast %1797 : f32 to vector<1x128xf32>
    %1799 = arith.mulf %876, %1798 : vector<1x128xf32>
    %1800 = arith.addf %1796, %1799 : vector<1x128xf32>
    %c217 = arith.constant 217 : index
    %1801 = memref.load %arg1[%c217] : memref<455xf32, #tpu.memory_space<smem>>
    %1802 = vector.broadcast %1801 : f32 to vector<1x128xf32>
    %1803 = arith.mulf %881, %1802 : vector<1x128xf32>
    %1804 = arith.addf %1800, %1803 : vector<1x128xf32>
    %c233 = arith.constant 233 : index
    %1805 = memref.load %arg1[%c233] : memref<455xf32, #tpu.memory_space<smem>>
    %1806 = vector.broadcast %1805 : f32 to vector<1x128xf32>
    %1807 = arith.mulf %1135, %1806 : vector<1x128xf32>
    %1808 = arith.addf %1804, %1807 : vector<1x128xf32>
    %c249 = arith.constant 249 : index
    %1809 = memref.load %arg1[%c249] : memref<455xf32, #tpu.memory_space<smem>>
    %1810 = vector.broadcast %1809 : f32 to vector<1x128xf32>
    %1811 = arith.mulf %1140, %1810 : vector<1x128xf32>
    %1812 = arith.addf %1808, %1811 : vector<1x128xf32>
    %c265 = arith.constant 265 : index
    %1813 = memref.load %arg1[%c265] : memref<455xf32, #tpu.memory_space<smem>>
    %1814 = vector.broadcast %1813 : f32 to vector<1x128xf32>
    %1815 = arith.mulf %1145, %1814 : vector<1x128xf32>
    %1816 = arith.addf %1812, %1815 : vector<1x128xf32>
    %c281 = arith.constant 281 : index
    %1817 = memref.load %arg1[%c281] : memref<455xf32, #tpu.memory_space<smem>>
    %1818 = vector.broadcast %1817 : f32 to vector<1x128xf32>
    %1819 = arith.addf %1816, %1818 : vector<1x128xf32>
    %cst_199 = arith.constant 0.000000e+00 : f32
    %1820 = vector.broadcast %cst_199 : f32 to vector<1x128xf32>
    %1821 = arith.maximumf %1819, %1820 : vector<1x128xf32>
    %c90 = arith.constant 90 : index
    %1822 = memref.load %arg1[%c90] : memref<455xf32, #tpu.memory_space<smem>>
    %1823 = vector.broadcast %1822 : f32 to vector<1x128xf32>
    %1824 = arith.mulf %343, %1823 : vector<1x128xf32>
    %c106 = arith.constant 106 : index
    %1825 = memref.load %arg1[%c106] : memref<455xf32, #tpu.memory_space<smem>>
    %1826 = vector.broadcast %1825 : f32 to vector<1x128xf32>
    %1827 = arith.mulf %348, %1826 : vector<1x128xf32>
    %1828 = arith.addf %1824, %1827 : vector<1x128xf32>
    %c122 = arith.constant 122 : index
    %1829 = memref.load %arg1[%c122] : memref<455xf32, #tpu.memory_space<smem>>
    %1830 = vector.broadcast %1829 : f32 to vector<1x128xf32>
    %1831 = arith.mulf %353, %1830 : vector<1x128xf32>
    %1832 = arith.addf %1828, %1831 : vector<1x128xf32>
    %c138 = arith.constant 138 : index
    %1833 = memref.load %arg1[%c138] : memref<455xf32, #tpu.memory_space<smem>>
    %1834 = vector.broadcast %1833 : f32 to vector<1x128xf32>
    %1835 = arith.mulf %607, %1834 : vector<1x128xf32>
    %1836 = arith.addf %1832, %1835 : vector<1x128xf32>
    %c154 = arith.constant 154 : index
    %1837 = memref.load %arg1[%c154] : memref<455xf32, #tpu.memory_space<smem>>
    %1838 = vector.broadcast %1837 : f32 to vector<1x128xf32>
    %1839 = arith.mulf %612, %1838 : vector<1x128xf32>
    %1840 = arith.addf %1836, %1839 : vector<1x128xf32>
    %c170 = arith.constant 170 : index
    %1841 = memref.load %arg1[%c170] : memref<455xf32, #tpu.memory_space<smem>>
    %1842 = vector.broadcast %1841 : f32 to vector<1x128xf32>
    %1843 = arith.mulf %617, %1842 : vector<1x128xf32>
    %1844 = arith.addf %1840, %1843 : vector<1x128xf32>
    %c186 = arith.constant 186 : index
    %1845 = memref.load %arg1[%c186] : memref<455xf32, #tpu.memory_space<smem>>
    %1846 = vector.broadcast %1845 : f32 to vector<1x128xf32>
    %1847 = arith.mulf %871, %1846 : vector<1x128xf32>
    %1848 = arith.addf %1844, %1847 : vector<1x128xf32>
    %c202 = arith.constant 202 : index
    %1849 = memref.load %arg1[%c202] : memref<455xf32, #tpu.memory_space<smem>>
    %1850 = vector.broadcast %1849 : f32 to vector<1x128xf32>
    %1851 = arith.mulf %876, %1850 : vector<1x128xf32>
    %1852 = arith.addf %1848, %1851 : vector<1x128xf32>
    %c218 = arith.constant 218 : index
    %1853 = memref.load %arg1[%c218] : memref<455xf32, #tpu.memory_space<smem>>
    %1854 = vector.broadcast %1853 : f32 to vector<1x128xf32>
    %1855 = arith.mulf %881, %1854 : vector<1x128xf32>
    %1856 = arith.addf %1852, %1855 : vector<1x128xf32>
    %c234 = arith.constant 234 : index
    %1857 = memref.load %arg1[%c234] : memref<455xf32, #tpu.memory_space<smem>>
    %1858 = vector.broadcast %1857 : f32 to vector<1x128xf32>
    %1859 = arith.mulf %1135, %1858 : vector<1x128xf32>
    %1860 = arith.addf %1856, %1859 : vector<1x128xf32>
    %c250 = arith.constant 250 : index
    %1861 = memref.load %arg1[%c250] : memref<455xf32, #tpu.memory_space<smem>>
    %1862 = vector.broadcast %1861 : f32 to vector<1x128xf32>
    %1863 = arith.mulf %1140, %1862 : vector<1x128xf32>
    %1864 = arith.addf %1860, %1863 : vector<1x128xf32>
    %c266 = arith.constant 266 : index
    %1865 = memref.load %arg1[%c266] : memref<455xf32, #tpu.memory_space<smem>>
    %1866 = vector.broadcast %1865 : f32 to vector<1x128xf32>
    %1867 = arith.mulf %1145, %1866 : vector<1x128xf32>
    %1868 = arith.addf %1864, %1867 : vector<1x128xf32>
    %c282 = arith.constant 282 : index
    %1869 = memref.load %arg1[%c282] : memref<455xf32, #tpu.memory_space<smem>>
    %1870 = vector.broadcast %1869 : f32 to vector<1x128xf32>
    %1871 = arith.addf %1868, %1870 : vector<1x128xf32>
    %cst_200 = arith.constant 0.000000e+00 : f32
    %1872 = vector.broadcast %cst_200 : f32 to vector<1x128xf32>
    %1873 = arith.maximumf %1871, %1872 : vector<1x128xf32>
    %c91 = arith.constant 91 : index
    %1874 = memref.load %arg1[%c91] : memref<455xf32, #tpu.memory_space<smem>>
    %1875 = vector.broadcast %1874 : f32 to vector<1x128xf32>
    %1876 = arith.mulf %343, %1875 : vector<1x128xf32>
    %c107 = arith.constant 107 : index
    %1877 = memref.load %arg1[%c107] : memref<455xf32, #tpu.memory_space<smem>>
    %1878 = vector.broadcast %1877 : f32 to vector<1x128xf32>
    %1879 = arith.mulf %348, %1878 : vector<1x128xf32>
    %1880 = arith.addf %1876, %1879 : vector<1x128xf32>
    %c123 = arith.constant 123 : index
    %1881 = memref.load %arg1[%c123] : memref<455xf32, #tpu.memory_space<smem>>
    %1882 = vector.broadcast %1881 : f32 to vector<1x128xf32>
    %1883 = arith.mulf %353, %1882 : vector<1x128xf32>
    %1884 = arith.addf %1880, %1883 : vector<1x128xf32>
    %c139 = arith.constant 139 : index
    %1885 = memref.load %arg1[%c139] : memref<455xf32, #tpu.memory_space<smem>>
    %1886 = vector.broadcast %1885 : f32 to vector<1x128xf32>
    %1887 = arith.mulf %607, %1886 : vector<1x128xf32>
    %1888 = arith.addf %1884, %1887 : vector<1x128xf32>
    %c155 = arith.constant 155 : index
    %1889 = memref.load %arg1[%c155] : memref<455xf32, #tpu.memory_space<smem>>
    %1890 = vector.broadcast %1889 : f32 to vector<1x128xf32>
    %1891 = arith.mulf %612, %1890 : vector<1x128xf32>
    %1892 = arith.addf %1888, %1891 : vector<1x128xf32>
    %c171 = arith.constant 171 : index
    %1893 = memref.load %arg1[%c171] : memref<455xf32, #tpu.memory_space<smem>>
    %1894 = vector.broadcast %1893 : f32 to vector<1x128xf32>
    %1895 = arith.mulf %617, %1894 : vector<1x128xf32>
    %1896 = arith.addf %1892, %1895 : vector<1x128xf32>
    %c187 = arith.constant 187 : index
    %1897 = memref.load %arg1[%c187] : memref<455xf32, #tpu.memory_space<smem>>
    %1898 = vector.broadcast %1897 : f32 to vector<1x128xf32>
    %1899 = arith.mulf %871, %1898 : vector<1x128xf32>
    %1900 = arith.addf %1896, %1899 : vector<1x128xf32>
    %c203 = arith.constant 203 : index
    %1901 = memref.load %arg1[%c203] : memref<455xf32, #tpu.memory_space<smem>>
    %1902 = vector.broadcast %1901 : f32 to vector<1x128xf32>
    %1903 = arith.mulf %876, %1902 : vector<1x128xf32>
    %1904 = arith.addf %1900, %1903 : vector<1x128xf32>
    %c219 = arith.constant 219 : index
    %1905 = memref.load %arg1[%c219] : memref<455xf32, #tpu.memory_space<smem>>
    %1906 = vector.broadcast %1905 : f32 to vector<1x128xf32>
    %1907 = arith.mulf %881, %1906 : vector<1x128xf32>
    %1908 = arith.addf %1904, %1907 : vector<1x128xf32>
    %c235 = arith.constant 235 : index
    %1909 = memref.load %arg1[%c235] : memref<455xf32, #tpu.memory_space<smem>>
    %1910 = vector.broadcast %1909 : f32 to vector<1x128xf32>
    %1911 = arith.mulf %1135, %1910 : vector<1x128xf32>
    %1912 = arith.addf %1908, %1911 : vector<1x128xf32>
    %c251 = arith.constant 251 : index
    %1913 = memref.load %arg1[%c251] : memref<455xf32, #tpu.memory_space<smem>>
    %1914 = vector.broadcast %1913 : f32 to vector<1x128xf32>
    %1915 = arith.mulf %1140, %1914 : vector<1x128xf32>
    %1916 = arith.addf %1912, %1915 : vector<1x128xf32>
    %c267 = arith.constant 267 : index
    %1917 = memref.load %arg1[%c267] : memref<455xf32, #tpu.memory_space<smem>>
    %1918 = vector.broadcast %1917 : f32 to vector<1x128xf32>
    %1919 = arith.mulf %1145, %1918 : vector<1x128xf32>
    %1920 = arith.addf %1916, %1919 : vector<1x128xf32>
    %c283 = arith.constant 283 : index
    %1921 = memref.load %arg1[%c283] : memref<455xf32, #tpu.memory_space<smem>>
    %1922 = vector.broadcast %1921 : f32 to vector<1x128xf32>
    %1923 = arith.addf %1920, %1922 : vector<1x128xf32>
    %cst_201 = arith.constant 0.000000e+00 : f32
    %1924 = vector.broadcast %cst_201 : f32 to vector<1x128xf32>
    %1925 = arith.maximumf %1923, %1924 : vector<1x128xf32>
    %c92 = arith.constant 92 : index
    %1926 = memref.load %arg1[%c92] : memref<455xf32, #tpu.memory_space<smem>>
    %1927 = vector.broadcast %1926 : f32 to vector<1x128xf32>
    %1928 = arith.mulf %343, %1927 : vector<1x128xf32>
    %c108 = arith.constant 108 : index
    %1929 = memref.load %arg1[%c108] : memref<455xf32, #tpu.memory_space<smem>>
    %1930 = vector.broadcast %1929 : f32 to vector<1x128xf32>
    %1931 = arith.mulf %348, %1930 : vector<1x128xf32>
    %1932 = arith.addf %1928, %1931 : vector<1x128xf32>
    %c124 = arith.constant 124 : index
    %1933 = memref.load %arg1[%c124] : memref<455xf32, #tpu.memory_space<smem>>
    %1934 = vector.broadcast %1933 : f32 to vector<1x128xf32>
    %1935 = arith.mulf %353, %1934 : vector<1x128xf32>
    %1936 = arith.addf %1932, %1935 : vector<1x128xf32>
    %c140 = arith.constant 140 : index
    %1937 = memref.load %arg1[%c140] : memref<455xf32, #tpu.memory_space<smem>>
    %1938 = vector.broadcast %1937 : f32 to vector<1x128xf32>
    %1939 = arith.mulf %607, %1938 : vector<1x128xf32>
    %1940 = arith.addf %1936, %1939 : vector<1x128xf32>
    %c156 = arith.constant 156 : index
    %1941 = memref.load %arg1[%c156] : memref<455xf32, #tpu.memory_space<smem>>
    %1942 = vector.broadcast %1941 : f32 to vector<1x128xf32>
    %1943 = arith.mulf %612, %1942 : vector<1x128xf32>
    %1944 = arith.addf %1940, %1943 : vector<1x128xf32>
    %c172 = arith.constant 172 : index
    %1945 = memref.load %arg1[%c172] : memref<455xf32, #tpu.memory_space<smem>>
    %1946 = vector.broadcast %1945 : f32 to vector<1x128xf32>
    %1947 = arith.mulf %617, %1946 : vector<1x128xf32>
    %1948 = arith.addf %1944, %1947 : vector<1x128xf32>
    %c188 = arith.constant 188 : index
    %1949 = memref.load %arg1[%c188] : memref<455xf32, #tpu.memory_space<smem>>
    %1950 = vector.broadcast %1949 : f32 to vector<1x128xf32>
    %1951 = arith.mulf %871, %1950 : vector<1x128xf32>
    %1952 = arith.addf %1948, %1951 : vector<1x128xf32>
    %c204 = arith.constant 204 : index
    %1953 = memref.load %arg1[%c204] : memref<455xf32, #tpu.memory_space<smem>>
    %1954 = vector.broadcast %1953 : f32 to vector<1x128xf32>
    %1955 = arith.mulf %876, %1954 : vector<1x128xf32>
    %1956 = arith.addf %1952, %1955 : vector<1x128xf32>
    %c220 = arith.constant 220 : index
    %1957 = memref.load %arg1[%c220] : memref<455xf32, #tpu.memory_space<smem>>
    %1958 = vector.broadcast %1957 : f32 to vector<1x128xf32>
    %1959 = arith.mulf %881, %1958 : vector<1x128xf32>
    %1960 = arith.addf %1956, %1959 : vector<1x128xf32>
    %c236 = arith.constant 236 : index
    %1961 = memref.load %arg1[%c236] : memref<455xf32, #tpu.memory_space<smem>>
    %1962 = vector.broadcast %1961 : f32 to vector<1x128xf32>
    %1963 = arith.mulf %1135, %1962 : vector<1x128xf32>
    %1964 = arith.addf %1960, %1963 : vector<1x128xf32>
    %c252 = arith.constant 252 : index
    %1965 = memref.load %arg1[%c252] : memref<455xf32, #tpu.memory_space<smem>>
    %1966 = vector.broadcast %1965 : f32 to vector<1x128xf32>
    %1967 = arith.mulf %1140, %1966 : vector<1x128xf32>
    %1968 = arith.addf %1964, %1967 : vector<1x128xf32>
    %c268 = arith.constant 268 : index
    %1969 = memref.load %arg1[%c268] : memref<455xf32, #tpu.memory_space<smem>>
    %1970 = vector.broadcast %1969 : f32 to vector<1x128xf32>
    %1971 = arith.mulf %1145, %1970 : vector<1x128xf32>
    %1972 = arith.addf %1968, %1971 : vector<1x128xf32>
    %c284 = arith.constant 284 : index
    %1973 = memref.load %arg1[%c284] : memref<455xf32, #tpu.memory_space<smem>>
    %1974 = vector.broadcast %1973 : f32 to vector<1x128xf32>
    %1975 = arith.addf %1972, %1974 : vector<1x128xf32>
    %cst_202 = arith.constant 0.000000e+00 : f32
    %1976 = vector.broadcast %cst_202 : f32 to vector<1x128xf32>
    %1977 = arith.maximumf %1975, %1976 : vector<1x128xf32>
    %c285 = arith.constant 285 : index
    %1978 = memref.load %arg1[%c285] : memref<455xf32, #tpu.memory_space<smem>>
    %1979 = vector.broadcast %1978 : f32 to vector<1x128xf32>
    %1980 = arith.mulf %1197, %1979 : vector<1x128xf32>
    %c295 = arith.constant 295 : index
    %1981 = memref.load %arg1[%c295] : memref<455xf32, #tpu.memory_space<smem>>
    %1982 = vector.broadcast %1981 : f32 to vector<1x128xf32>
    %1983 = arith.mulf %1249, %1982 : vector<1x128xf32>
    %1984 = arith.addf %1980, %1983 : vector<1x128xf32>
    %c305 = arith.constant 305 : index
    %1985 = memref.load %arg1[%c305] : memref<455xf32, #tpu.memory_space<smem>>
    %1986 = vector.broadcast %1985 : f32 to vector<1x128xf32>
    %1987 = arith.mulf %1301, %1986 : vector<1x128xf32>
    %1988 = arith.addf %1984, %1987 : vector<1x128xf32>
    %c315 = arith.constant 315 : index
    %1989 = memref.load %arg1[%c315] : memref<455xf32, #tpu.memory_space<smem>>
    %1990 = vector.broadcast %1989 : f32 to vector<1x128xf32>
    %1991 = arith.mulf %1353, %1990 : vector<1x128xf32>
    %1992 = arith.addf %1988, %1991 : vector<1x128xf32>
    %c325 = arith.constant 325 : index
    %1993 = memref.load %arg1[%c325] : memref<455xf32, #tpu.memory_space<smem>>
    %1994 = vector.broadcast %1993 : f32 to vector<1x128xf32>
    %1995 = arith.mulf %1405, %1994 : vector<1x128xf32>
    %1996 = arith.addf %1992, %1995 : vector<1x128xf32>
    %c335 = arith.constant 335 : index
    %1997 = memref.load %arg1[%c335] : memref<455xf32, #tpu.memory_space<smem>>
    %1998 = vector.broadcast %1997 : f32 to vector<1x128xf32>
    %1999 = arith.mulf %1457, %1998 : vector<1x128xf32>
    %2000 = arith.addf %1996, %1999 : vector<1x128xf32>
    %c345 = arith.constant 345 : index
    %2001 = memref.load %arg1[%c345] : memref<455xf32, #tpu.memory_space<smem>>
    %2002 = vector.broadcast %2001 : f32 to vector<1x128xf32>
    %2003 = arith.mulf %1509, %2002 : vector<1x128xf32>
    %2004 = arith.addf %2000, %2003 : vector<1x128xf32>
    %c355 = arith.constant 355 : index
    %2005 = memref.load %arg1[%c355] : memref<455xf32, #tpu.memory_space<smem>>
    %2006 = vector.broadcast %2005 : f32 to vector<1x128xf32>
    %2007 = arith.mulf %1561, %2006 : vector<1x128xf32>
    %2008 = arith.addf %2004, %2007 : vector<1x128xf32>
    %c365 = arith.constant 365 : index
    %2009 = memref.load %arg1[%c365] : memref<455xf32, #tpu.memory_space<smem>>
    %2010 = vector.broadcast %2009 : f32 to vector<1x128xf32>
    %2011 = arith.mulf %1613, %2010 : vector<1x128xf32>
    %2012 = arith.addf %2008, %2011 : vector<1x128xf32>
    %c375 = arith.constant 375 : index
    %2013 = memref.load %arg1[%c375] : memref<455xf32, #tpu.memory_space<smem>>
    %2014 = vector.broadcast %2013 : f32 to vector<1x128xf32>
    %2015 = arith.mulf %1665, %2014 : vector<1x128xf32>
    %2016 = arith.addf %2012, %2015 : vector<1x128xf32>
    %c385 = arith.constant 385 : index
    %2017 = memref.load %arg1[%c385] : memref<455xf32, #tpu.memory_space<smem>>
    %2018 = vector.broadcast %2017 : f32 to vector<1x128xf32>
    %2019 = arith.mulf %1717, %2018 : vector<1x128xf32>
    %2020 = arith.addf %2016, %2019 : vector<1x128xf32>
    %c395 = arith.constant 395 : index
    %2021 = memref.load %arg1[%c395] : memref<455xf32, #tpu.memory_space<smem>>
    %2022 = vector.broadcast %2021 : f32 to vector<1x128xf32>
    %2023 = arith.mulf %1769, %2022 : vector<1x128xf32>
    %2024 = arith.addf %2020, %2023 : vector<1x128xf32>
    %c405 = arith.constant 405 : index
    %2025 = memref.load %arg1[%c405] : memref<455xf32, #tpu.memory_space<smem>>
    %2026 = vector.broadcast %2025 : f32 to vector<1x128xf32>
    %2027 = arith.mulf %1821, %2026 : vector<1x128xf32>
    %2028 = arith.addf %2024, %2027 : vector<1x128xf32>
    %c415 = arith.constant 415 : index
    %2029 = memref.load %arg1[%c415] : memref<455xf32, #tpu.memory_space<smem>>
    %2030 = vector.broadcast %2029 : f32 to vector<1x128xf32>
    %2031 = arith.mulf %1873, %2030 : vector<1x128xf32>
    %2032 = arith.addf %2028, %2031 : vector<1x128xf32>
    %c425 = arith.constant 425 : index
    %2033 = memref.load %arg1[%c425] : memref<455xf32, #tpu.memory_space<smem>>
    %2034 = vector.broadcast %2033 : f32 to vector<1x128xf32>
    %2035 = arith.mulf %1925, %2034 : vector<1x128xf32>
    %2036 = arith.addf %2032, %2035 : vector<1x128xf32>
    %c435 = arith.constant 435 : index
    %2037 = memref.load %arg1[%c435] : memref<455xf32, #tpu.memory_space<smem>>
    %2038 = vector.broadcast %2037 : f32 to vector<1x128xf32>
    %2039 = arith.mulf %1977, %2038 : vector<1x128xf32>
    %2040 = arith.addf %2036, %2039 : vector<1x128xf32>
    %c445 = arith.constant 445 : index
    %2041 = memref.load %arg1[%c445] : memref<455xf32, #tpu.memory_space<smem>>
    %2042 = vector.broadcast %2041 : f32 to vector<1x128xf32>
    %2043 = arith.addf %2040, %2042 : vector<1x128xf32>
    %c286 = arith.constant 286 : index
    %2044 = memref.load %arg1[%c286] : memref<455xf32, #tpu.memory_space<smem>>
    %2045 = vector.broadcast %2044 : f32 to vector<1x128xf32>
    %2046 = arith.mulf %1197, %2045 : vector<1x128xf32>
    %c296 = arith.constant 296 : index
    %2047 = memref.load %arg1[%c296] : memref<455xf32, #tpu.memory_space<smem>>
    %2048 = vector.broadcast %2047 : f32 to vector<1x128xf32>
    %2049 = arith.mulf %1249, %2048 : vector<1x128xf32>
    %2050 = arith.addf %2046, %2049 : vector<1x128xf32>
    %c306 = arith.constant 306 : index
    %2051 = memref.load %arg1[%c306] : memref<455xf32, #tpu.memory_space<smem>>
    %2052 = vector.broadcast %2051 : f32 to vector<1x128xf32>
    %2053 = arith.mulf %1301, %2052 : vector<1x128xf32>
    %2054 = arith.addf %2050, %2053 : vector<1x128xf32>
    %c316 = arith.constant 316 : index
    %2055 = memref.load %arg1[%c316] : memref<455xf32, #tpu.memory_space<smem>>
    %2056 = vector.broadcast %2055 : f32 to vector<1x128xf32>
    %2057 = arith.mulf %1353, %2056 : vector<1x128xf32>
    %2058 = arith.addf %2054, %2057 : vector<1x128xf32>
    %c326 = arith.constant 326 : index
    %2059 = memref.load %arg1[%c326] : memref<455xf32, #tpu.memory_space<smem>>
    %2060 = vector.broadcast %2059 : f32 to vector<1x128xf32>
    %2061 = arith.mulf %1405, %2060 : vector<1x128xf32>
    %2062 = arith.addf %2058, %2061 : vector<1x128xf32>
    %c336 = arith.constant 336 : index
    %2063 = memref.load %arg1[%c336] : memref<455xf32, #tpu.memory_space<smem>>
    %2064 = vector.broadcast %2063 : f32 to vector<1x128xf32>
    %2065 = arith.mulf %1457, %2064 : vector<1x128xf32>
    %2066 = arith.addf %2062, %2065 : vector<1x128xf32>
    %c346 = arith.constant 346 : index
    %2067 = memref.load %arg1[%c346] : memref<455xf32, #tpu.memory_space<smem>>
    %2068 = vector.broadcast %2067 : f32 to vector<1x128xf32>
    %2069 = arith.mulf %1509, %2068 : vector<1x128xf32>
    %2070 = arith.addf %2066, %2069 : vector<1x128xf32>
    %c356 = arith.constant 356 : index
    %2071 = memref.load %arg1[%c356] : memref<455xf32, #tpu.memory_space<smem>>
    %2072 = vector.broadcast %2071 : f32 to vector<1x128xf32>
    %2073 = arith.mulf %1561, %2072 : vector<1x128xf32>
    %2074 = arith.addf %2070, %2073 : vector<1x128xf32>
    %c366 = arith.constant 366 : index
    %2075 = memref.load %arg1[%c366] : memref<455xf32, #tpu.memory_space<smem>>
    %2076 = vector.broadcast %2075 : f32 to vector<1x128xf32>
    %2077 = arith.mulf %1613, %2076 : vector<1x128xf32>
    %2078 = arith.addf %2074, %2077 : vector<1x128xf32>
    %c376 = arith.constant 376 : index
    %2079 = memref.load %arg1[%c376] : memref<455xf32, #tpu.memory_space<smem>>
    %2080 = vector.broadcast %2079 : f32 to vector<1x128xf32>
    %2081 = arith.mulf %1665, %2080 : vector<1x128xf32>
    %2082 = arith.addf %2078, %2081 : vector<1x128xf32>
    %c386 = arith.constant 386 : index
    %2083 = memref.load %arg1[%c386] : memref<455xf32, #tpu.memory_space<smem>>
    %2084 = vector.broadcast %2083 : f32 to vector<1x128xf32>
    %2085 = arith.mulf %1717, %2084 : vector<1x128xf32>
    %2086 = arith.addf %2082, %2085 : vector<1x128xf32>
    %c396 = arith.constant 396 : index
    %2087 = memref.load %arg1[%c396] : memref<455xf32, #tpu.memory_space<smem>>
    %2088 = vector.broadcast %2087 : f32 to vector<1x128xf32>
    %2089 = arith.mulf %1769, %2088 : vector<1x128xf32>
    %2090 = arith.addf %2086, %2089 : vector<1x128xf32>
    %c406 = arith.constant 406 : index
    %2091 = memref.load %arg1[%c406] : memref<455xf32, #tpu.memory_space<smem>>
    %2092 = vector.broadcast %2091 : f32 to vector<1x128xf32>
    %2093 = arith.mulf %1821, %2092 : vector<1x128xf32>
    %2094 = arith.addf %2090, %2093 : vector<1x128xf32>
    %c416 = arith.constant 416 : index
    %2095 = memref.load %arg1[%c416] : memref<455xf32, #tpu.memory_space<smem>>
    %2096 = vector.broadcast %2095 : f32 to vector<1x128xf32>
    %2097 = arith.mulf %1873, %2096 : vector<1x128xf32>
    %2098 = arith.addf %2094, %2097 : vector<1x128xf32>
    %c426 = arith.constant 426 : index
    %2099 = memref.load %arg1[%c426] : memref<455xf32, #tpu.memory_space<smem>>
    %2100 = vector.broadcast %2099 : f32 to vector<1x128xf32>
    %2101 = arith.mulf %1925, %2100 : vector<1x128xf32>
    %2102 = arith.addf %2098, %2101 : vector<1x128xf32>
    %c436 = arith.constant 436 : index
    %2103 = memref.load %arg1[%c436] : memref<455xf32, #tpu.memory_space<smem>>
    %2104 = vector.broadcast %2103 : f32 to vector<1x128xf32>
    %2105 = arith.mulf %1977, %2104 : vector<1x128xf32>
    %2106 = arith.addf %2102, %2105 : vector<1x128xf32>
    %c446 = arith.constant 446 : index
    %2107 = memref.load %arg1[%c446] : memref<455xf32, #tpu.memory_space<smem>>
    %2108 = vector.broadcast %2107 : f32 to vector<1x128xf32>
    %2109 = arith.addf %2106, %2108 : vector<1x128xf32>
    %c287 = arith.constant 287 : index
    %2110 = memref.load %arg1[%c287] : memref<455xf32, #tpu.memory_space<smem>>
    %2111 = vector.broadcast %2110 : f32 to vector<1x128xf32>
    %2112 = arith.mulf %1197, %2111 : vector<1x128xf32>
    %c297 = arith.constant 297 : index
    %2113 = memref.load %arg1[%c297] : memref<455xf32, #tpu.memory_space<smem>>
    %2114 = vector.broadcast %2113 : f32 to vector<1x128xf32>
    %2115 = arith.mulf %1249, %2114 : vector<1x128xf32>
    %2116 = arith.addf %2112, %2115 : vector<1x128xf32>
    %c307 = arith.constant 307 : index
    %2117 = memref.load %arg1[%c307] : memref<455xf32, #tpu.memory_space<smem>>
    %2118 = vector.broadcast %2117 : f32 to vector<1x128xf32>
    %2119 = arith.mulf %1301, %2118 : vector<1x128xf32>
    %2120 = arith.addf %2116, %2119 : vector<1x128xf32>
    %c317 = arith.constant 317 : index
    %2121 = memref.load %arg1[%c317] : memref<455xf32, #tpu.memory_space<smem>>
    %2122 = vector.broadcast %2121 : f32 to vector<1x128xf32>
    %2123 = arith.mulf %1353, %2122 : vector<1x128xf32>
    %2124 = arith.addf %2120, %2123 : vector<1x128xf32>
    %c327 = arith.constant 327 : index
    %2125 = memref.load %arg1[%c327] : memref<455xf32, #tpu.memory_space<smem>>
    %2126 = vector.broadcast %2125 : f32 to vector<1x128xf32>
    %2127 = arith.mulf %1405, %2126 : vector<1x128xf32>
    %2128 = arith.addf %2124, %2127 : vector<1x128xf32>
    %c337 = arith.constant 337 : index
    %2129 = memref.load %arg1[%c337] : memref<455xf32, #tpu.memory_space<smem>>
    %2130 = vector.broadcast %2129 : f32 to vector<1x128xf32>
    %2131 = arith.mulf %1457, %2130 : vector<1x128xf32>
    %2132 = arith.addf %2128, %2131 : vector<1x128xf32>
    %c347 = arith.constant 347 : index
    %2133 = memref.load %arg1[%c347] : memref<455xf32, #tpu.memory_space<smem>>
    %2134 = vector.broadcast %2133 : f32 to vector<1x128xf32>
    %2135 = arith.mulf %1509, %2134 : vector<1x128xf32>
    %2136 = arith.addf %2132, %2135 : vector<1x128xf32>
    %c357 = arith.constant 357 : index
    %2137 = memref.load %arg1[%c357] : memref<455xf32, #tpu.memory_space<smem>>
    %2138 = vector.broadcast %2137 : f32 to vector<1x128xf32>
    %2139 = arith.mulf %1561, %2138 : vector<1x128xf32>
    %2140 = arith.addf %2136, %2139 : vector<1x128xf32>
    %c367 = arith.constant 367 : index
    %2141 = memref.load %arg1[%c367] : memref<455xf32, #tpu.memory_space<smem>>
    %2142 = vector.broadcast %2141 : f32 to vector<1x128xf32>
    %2143 = arith.mulf %1613, %2142 : vector<1x128xf32>
    %2144 = arith.addf %2140, %2143 : vector<1x128xf32>
    %c377 = arith.constant 377 : index
    %2145 = memref.load %arg1[%c377] : memref<455xf32, #tpu.memory_space<smem>>
    %2146 = vector.broadcast %2145 : f32 to vector<1x128xf32>
    %2147 = arith.mulf %1665, %2146 : vector<1x128xf32>
    %2148 = arith.addf %2144, %2147 : vector<1x128xf32>
    %c387 = arith.constant 387 : index
    %2149 = memref.load %arg1[%c387] : memref<455xf32, #tpu.memory_space<smem>>
    %2150 = vector.broadcast %2149 : f32 to vector<1x128xf32>
    %2151 = arith.mulf %1717, %2150 : vector<1x128xf32>
    %2152 = arith.addf %2148, %2151 : vector<1x128xf32>
    %c397 = arith.constant 397 : index
    %2153 = memref.load %arg1[%c397] : memref<455xf32, #tpu.memory_space<smem>>
    %2154 = vector.broadcast %2153 : f32 to vector<1x128xf32>
    %2155 = arith.mulf %1769, %2154 : vector<1x128xf32>
    %2156 = arith.addf %2152, %2155 : vector<1x128xf32>
    %c407 = arith.constant 407 : index
    %2157 = memref.load %arg1[%c407] : memref<455xf32, #tpu.memory_space<smem>>
    %2158 = vector.broadcast %2157 : f32 to vector<1x128xf32>
    %2159 = arith.mulf %1821, %2158 : vector<1x128xf32>
    %2160 = arith.addf %2156, %2159 : vector<1x128xf32>
    %c417 = arith.constant 417 : index
    %2161 = memref.load %arg1[%c417] : memref<455xf32, #tpu.memory_space<smem>>
    %2162 = vector.broadcast %2161 : f32 to vector<1x128xf32>
    %2163 = arith.mulf %1873, %2162 : vector<1x128xf32>
    %2164 = arith.addf %2160, %2163 : vector<1x128xf32>
    %c427 = arith.constant 427 : index
    %2165 = memref.load %arg1[%c427] : memref<455xf32, #tpu.memory_space<smem>>
    %2166 = vector.broadcast %2165 : f32 to vector<1x128xf32>
    %2167 = arith.mulf %1925, %2166 : vector<1x128xf32>
    %2168 = arith.addf %2164, %2167 : vector<1x128xf32>
    %c437 = arith.constant 437 : index
    %2169 = memref.load %arg1[%c437] : memref<455xf32, #tpu.memory_space<smem>>
    %2170 = vector.broadcast %2169 : f32 to vector<1x128xf32>
    %2171 = arith.mulf %1977, %2170 : vector<1x128xf32>
    %2172 = arith.addf %2168, %2171 : vector<1x128xf32>
    %c447 = arith.constant 447 : index
    %2173 = memref.load %arg1[%c447] : memref<455xf32, #tpu.memory_space<smem>>
    %2174 = vector.broadcast %2173 : f32 to vector<1x128xf32>
    %2175 = arith.addf %2172, %2174 : vector<1x128xf32>
    %c288 = arith.constant 288 : index
    %2176 = memref.load %arg1[%c288] : memref<455xf32, #tpu.memory_space<smem>>
    %2177 = vector.broadcast %2176 : f32 to vector<1x128xf32>
    %2178 = arith.mulf %1197, %2177 : vector<1x128xf32>
    %c298 = arith.constant 298 : index
    %2179 = memref.load %arg1[%c298] : memref<455xf32, #tpu.memory_space<smem>>
    %2180 = vector.broadcast %2179 : f32 to vector<1x128xf32>
    %2181 = arith.mulf %1249, %2180 : vector<1x128xf32>
    %2182 = arith.addf %2178, %2181 : vector<1x128xf32>
    %c308 = arith.constant 308 : index
    %2183 = memref.load %arg1[%c308] : memref<455xf32, #tpu.memory_space<smem>>
    %2184 = vector.broadcast %2183 : f32 to vector<1x128xf32>
    %2185 = arith.mulf %1301, %2184 : vector<1x128xf32>
    %2186 = arith.addf %2182, %2185 : vector<1x128xf32>
    %c318 = arith.constant 318 : index
    %2187 = memref.load %arg1[%c318] : memref<455xf32, #tpu.memory_space<smem>>
    %2188 = vector.broadcast %2187 : f32 to vector<1x128xf32>
    %2189 = arith.mulf %1353, %2188 : vector<1x128xf32>
    %2190 = arith.addf %2186, %2189 : vector<1x128xf32>
    %c328 = arith.constant 328 : index
    %2191 = memref.load %arg1[%c328] : memref<455xf32, #tpu.memory_space<smem>>
    %2192 = vector.broadcast %2191 : f32 to vector<1x128xf32>
    %2193 = arith.mulf %1405, %2192 : vector<1x128xf32>
    %2194 = arith.addf %2190, %2193 : vector<1x128xf32>
    %c338 = arith.constant 338 : index
    %2195 = memref.load %arg1[%c338] : memref<455xf32, #tpu.memory_space<smem>>
    %2196 = vector.broadcast %2195 : f32 to vector<1x128xf32>
    %2197 = arith.mulf %1457, %2196 : vector<1x128xf32>
    %2198 = arith.addf %2194, %2197 : vector<1x128xf32>
    %c348 = arith.constant 348 : index
    %2199 = memref.load %arg1[%c348] : memref<455xf32, #tpu.memory_space<smem>>
    %2200 = vector.broadcast %2199 : f32 to vector<1x128xf32>
    %2201 = arith.mulf %1509, %2200 : vector<1x128xf32>
    %2202 = arith.addf %2198, %2201 : vector<1x128xf32>
    %c358 = arith.constant 358 : index
    %2203 = memref.load %arg1[%c358] : memref<455xf32, #tpu.memory_space<smem>>
    %2204 = vector.broadcast %2203 : f32 to vector<1x128xf32>
    %2205 = arith.mulf %1561, %2204 : vector<1x128xf32>
    %2206 = arith.addf %2202, %2205 : vector<1x128xf32>
    %c368 = arith.constant 368 : index
    %2207 = memref.load %arg1[%c368] : memref<455xf32, #tpu.memory_space<smem>>
    %2208 = vector.broadcast %2207 : f32 to vector<1x128xf32>
    %2209 = arith.mulf %1613, %2208 : vector<1x128xf32>
    %2210 = arith.addf %2206, %2209 : vector<1x128xf32>
    %c378 = arith.constant 378 : index
    %2211 = memref.load %arg1[%c378] : memref<455xf32, #tpu.memory_space<smem>>
    %2212 = vector.broadcast %2211 : f32 to vector<1x128xf32>
    %2213 = arith.mulf %1665, %2212 : vector<1x128xf32>
    %2214 = arith.addf %2210, %2213 : vector<1x128xf32>
    %c388 = arith.constant 388 : index
    %2215 = memref.load %arg1[%c388] : memref<455xf32, #tpu.memory_space<smem>>
    %2216 = vector.broadcast %2215 : f32 to vector<1x128xf32>
    %2217 = arith.mulf %1717, %2216 : vector<1x128xf32>
    %2218 = arith.addf %2214, %2217 : vector<1x128xf32>
    %c398 = arith.constant 398 : index
    %2219 = memref.load %arg1[%c398] : memref<455xf32, #tpu.memory_space<smem>>
    %2220 = vector.broadcast %2219 : f32 to vector<1x128xf32>
    %2221 = arith.mulf %1769, %2220 : vector<1x128xf32>
    %2222 = arith.addf %2218, %2221 : vector<1x128xf32>
    %c408 = arith.constant 408 : index
    %2223 = memref.load %arg1[%c408] : memref<455xf32, #tpu.memory_space<smem>>
    %2224 = vector.broadcast %2223 : f32 to vector<1x128xf32>
    %2225 = arith.mulf %1821, %2224 : vector<1x128xf32>
    %2226 = arith.addf %2222, %2225 : vector<1x128xf32>
    %c418 = arith.constant 418 : index
    %2227 = memref.load %arg1[%c418] : memref<455xf32, #tpu.memory_space<smem>>
    %2228 = vector.broadcast %2227 : f32 to vector<1x128xf32>
    %2229 = arith.mulf %1873, %2228 : vector<1x128xf32>
    %2230 = arith.addf %2226, %2229 : vector<1x128xf32>
    %c428 = arith.constant 428 : index
    %2231 = memref.load %arg1[%c428] : memref<455xf32, #tpu.memory_space<smem>>
    %2232 = vector.broadcast %2231 : f32 to vector<1x128xf32>
    %2233 = arith.mulf %1925, %2232 : vector<1x128xf32>
    %2234 = arith.addf %2230, %2233 : vector<1x128xf32>
    %c438 = arith.constant 438 : index
    %2235 = memref.load %arg1[%c438] : memref<455xf32, #tpu.memory_space<smem>>
    %2236 = vector.broadcast %2235 : f32 to vector<1x128xf32>
    %2237 = arith.mulf %1977, %2236 : vector<1x128xf32>
    %2238 = arith.addf %2234, %2237 : vector<1x128xf32>
    %c448 = arith.constant 448 : index
    %2239 = memref.load %arg1[%c448] : memref<455xf32, #tpu.memory_space<smem>>
    %2240 = vector.broadcast %2239 : f32 to vector<1x128xf32>
    %2241 = arith.addf %2238, %2240 : vector<1x128xf32>
    %c289 = arith.constant 289 : index
    %2242 = memref.load %arg1[%c289] : memref<455xf32, #tpu.memory_space<smem>>
    %2243 = vector.broadcast %2242 : f32 to vector<1x128xf32>
    %2244 = arith.mulf %1197, %2243 : vector<1x128xf32>
    %c299 = arith.constant 299 : index
    %2245 = memref.load %arg1[%c299] : memref<455xf32, #tpu.memory_space<smem>>
    %2246 = vector.broadcast %2245 : f32 to vector<1x128xf32>
    %2247 = arith.mulf %1249, %2246 : vector<1x128xf32>
    %2248 = arith.addf %2244, %2247 : vector<1x128xf32>
    %c309 = arith.constant 309 : index
    %2249 = memref.load %arg1[%c309] : memref<455xf32, #tpu.memory_space<smem>>
    %2250 = vector.broadcast %2249 : f32 to vector<1x128xf32>
    %2251 = arith.mulf %1301, %2250 : vector<1x128xf32>
    %2252 = arith.addf %2248, %2251 : vector<1x128xf32>
    %c319 = arith.constant 319 : index
    %2253 = memref.load %arg1[%c319] : memref<455xf32, #tpu.memory_space<smem>>
    %2254 = vector.broadcast %2253 : f32 to vector<1x128xf32>
    %2255 = arith.mulf %1353, %2254 : vector<1x128xf32>
    %2256 = arith.addf %2252, %2255 : vector<1x128xf32>
    %c329 = arith.constant 329 : index
    %2257 = memref.load %arg1[%c329] : memref<455xf32, #tpu.memory_space<smem>>
    %2258 = vector.broadcast %2257 : f32 to vector<1x128xf32>
    %2259 = arith.mulf %1405, %2258 : vector<1x128xf32>
    %2260 = arith.addf %2256, %2259 : vector<1x128xf32>
    %c339 = arith.constant 339 : index
    %2261 = memref.load %arg1[%c339] : memref<455xf32, #tpu.memory_space<smem>>
    %2262 = vector.broadcast %2261 : f32 to vector<1x128xf32>
    %2263 = arith.mulf %1457, %2262 : vector<1x128xf32>
    %2264 = arith.addf %2260, %2263 : vector<1x128xf32>
    %c349 = arith.constant 349 : index
    %2265 = memref.load %arg1[%c349] : memref<455xf32, #tpu.memory_space<smem>>
    %2266 = vector.broadcast %2265 : f32 to vector<1x128xf32>
    %2267 = arith.mulf %1509, %2266 : vector<1x128xf32>
    %2268 = arith.addf %2264, %2267 : vector<1x128xf32>
    %c359 = arith.constant 359 : index
    %2269 = memref.load %arg1[%c359] : memref<455xf32, #tpu.memory_space<smem>>
    %2270 = vector.broadcast %2269 : f32 to vector<1x128xf32>
    %2271 = arith.mulf %1561, %2270 : vector<1x128xf32>
    %2272 = arith.addf %2268, %2271 : vector<1x128xf32>
    %c369 = arith.constant 369 : index
    %2273 = memref.load %arg1[%c369] : memref<455xf32, #tpu.memory_space<smem>>
    %2274 = vector.broadcast %2273 : f32 to vector<1x128xf32>
    %2275 = arith.mulf %1613, %2274 : vector<1x128xf32>
    %2276 = arith.addf %2272, %2275 : vector<1x128xf32>
    %c379 = arith.constant 379 : index
    %2277 = memref.load %arg1[%c379] : memref<455xf32, #tpu.memory_space<smem>>
    %2278 = vector.broadcast %2277 : f32 to vector<1x128xf32>
    %2279 = arith.mulf %1665, %2278 : vector<1x128xf32>
    %2280 = arith.addf %2276, %2279 : vector<1x128xf32>
    %c389 = arith.constant 389 : index
    %2281 = memref.load %arg1[%c389] : memref<455xf32, #tpu.memory_space<smem>>
    %2282 = vector.broadcast %2281 : f32 to vector<1x128xf32>
    %2283 = arith.mulf %1717, %2282 : vector<1x128xf32>
    %2284 = arith.addf %2280, %2283 : vector<1x128xf32>
    %c399 = arith.constant 399 : index
    %2285 = memref.load %arg1[%c399] : memref<455xf32, #tpu.memory_space<smem>>
    %2286 = vector.broadcast %2285 : f32 to vector<1x128xf32>
    %2287 = arith.mulf %1769, %2286 : vector<1x128xf32>
    %2288 = arith.addf %2284, %2287 : vector<1x128xf32>
    %c409 = arith.constant 409 : index
    %2289 = memref.load %arg1[%c409] : memref<455xf32, #tpu.memory_space<smem>>
    %2290 = vector.broadcast %2289 : f32 to vector<1x128xf32>
    %2291 = arith.mulf %1821, %2290 : vector<1x128xf32>
    %2292 = arith.addf %2288, %2291 : vector<1x128xf32>
    %c419 = arith.constant 419 : index
    %2293 = memref.load %arg1[%c419] : memref<455xf32, #tpu.memory_space<smem>>
    %2294 = vector.broadcast %2293 : f32 to vector<1x128xf32>
    %2295 = arith.mulf %1873, %2294 : vector<1x128xf32>
    %2296 = arith.addf %2292, %2295 : vector<1x128xf32>
    %c429 = arith.constant 429 : index
    %2297 = memref.load %arg1[%c429] : memref<455xf32, #tpu.memory_space<smem>>
    %2298 = vector.broadcast %2297 : f32 to vector<1x128xf32>
    %2299 = arith.mulf %1925, %2298 : vector<1x128xf32>
    %2300 = arith.addf %2296, %2299 : vector<1x128xf32>
    %c439 = arith.constant 439 : index
    %2301 = memref.load %arg1[%c439] : memref<455xf32, #tpu.memory_space<smem>>
    %2302 = vector.broadcast %2301 : f32 to vector<1x128xf32>
    %2303 = arith.mulf %1977, %2302 : vector<1x128xf32>
    %2304 = arith.addf %2300, %2303 : vector<1x128xf32>
    %c449 = arith.constant 449 : index
    %2305 = memref.load %arg1[%c449] : memref<455xf32, #tpu.memory_space<smem>>
    %2306 = vector.broadcast %2305 : f32 to vector<1x128xf32>
    %2307 = arith.addf %2304, %2306 : vector<1x128xf32>
    %c290 = arith.constant 290 : index
    %2308 = memref.load %arg1[%c290] : memref<455xf32, #tpu.memory_space<smem>>
    %2309 = vector.broadcast %2308 : f32 to vector<1x128xf32>
    %2310 = arith.mulf %1197, %2309 : vector<1x128xf32>
    %c300 = arith.constant 300 : index
    %2311 = memref.load %arg1[%c300] : memref<455xf32, #tpu.memory_space<smem>>
    %2312 = vector.broadcast %2311 : f32 to vector<1x128xf32>
    %2313 = arith.mulf %1249, %2312 : vector<1x128xf32>
    %2314 = arith.addf %2310, %2313 : vector<1x128xf32>
    %c310 = arith.constant 310 : index
    %2315 = memref.load %arg1[%c310] : memref<455xf32, #tpu.memory_space<smem>>
    %2316 = vector.broadcast %2315 : f32 to vector<1x128xf32>
    %2317 = arith.mulf %1301, %2316 : vector<1x128xf32>
    %2318 = arith.addf %2314, %2317 : vector<1x128xf32>
    %c320 = arith.constant 320 : index
    %2319 = memref.load %arg1[%c320] : memref<455xf32, #tpu.memory_space<smem>>
    %2320 = vector.broadcast %2319 : f32 to vector<1x128xf32>
    %2321 = arith.mulf %1353, %2320 : vector<1x128xf32>
    %2322 = arith.addf %2318, %2321 : vector<1x128xf32>
    %c330 = arith.constant 330 : index
    %2323 = memref.load %arg1[%c330] : memref<455xf32, #tpu.memory_space<smem>>
    %2324 = vector.broadcast %2323 : f32 to vector<1x128xf32>
    %2325 = arith.mulf %1405, %2324 : vector<1x128xf32>
    %2326 = arith.addf %2322, %2325 : vector<1x128xf32>
    %c340 = arith.constant 340 : index
    %2327 = memref.load %arg1[%c340] : memref<455xf32, #tpu.memory_space<smem>>
    %2328 = vector.broadcast %2327 : f32 to vector<1x128xf32>
    %2329 = arith.mulf %1457, %2328 : vector<1x128xf32>
    %2330 = arith.addf %2326, %2329 : vector<1x128xf32>
    %c350 = arith.constant 350 : index
    %2331 = memref.load %arg1[%c350] : memref<455xf32, #tpu.memory_space<smem>>
    %2332 = vector.broadcast %2331 : f32 to vector<1x128xf32>
    %2333 = arith.mulf %1509, %2332 : vector<1x128xf32>
    %2334 = arith.addf %2330, %2333 : vector<1x128xf32>
    %c360 = arith.constant 360 : index
    %2335 = memref.load %arg1[%c360] : memref<455xf32, #tpu.memory_space<smem>>
    %2336 = vector.broadcast %2335 : f32 to vector<1x128xf32>
    %2337 = arith.mulf %1561, %2336 : vector<1x128xf32>
    %2338 = arith.addf %2334, %2337 : vector<1x128xf32>
    %c370 = arith.constant 370 : index
    %2339 = memref.load %arg1[%c370] : memref<455xf32, #tpu.memory_space<smem>>
    %2340 = vector.broadcast %2339 : f32 to vector<1x128xf32>
    %2341 = arith.mulf %1613, %2340 : vector<1x128xf32>
    %2342 = arith.addf %2338, %2341 : vector<1x128xf32>
    %c380 = arith.constant 380 : index
    %2343 = memref.load %arg1[%c380] : memref<455xf32, #tpu.memory_space<smem>>
    %2344 = vector.broadcast %2343 : f32 to vector<1x128xf32>
    %2345 = arith.mulf %1665, %2344 : vector<1x128xf32>
    %2346 = arith.addf %2342, %2345 : vector<1x128xf32>
    %c390 = arith.constant 390 : index
    %2347 = memref.load %arg1[%c390] : memref<455xf32, #tpu.memory_space<smem>>
    %2348 = vector.broadcast %2347 : f32 to vector<1x128xf32>
    %2349 = arith.mulf %1717, %2348 : vector<1x128xf32>
    %2350 = arith.addf %2346, %2349 : vector<1x128xf32>
    %c400 = arith.constant 400 : index
    %2351 = memref.load %arg1[%c400] : memref<455xf32, #tpu.memory_space<smem>>
    %2352 = vector.broadcast %2351 : f32 to vector<1x128xf32>
    %2353 = arith.mulf %1769, %2352 : vector<1x128xf32>
    %2354 = arith.addf %2350, %2353 : vector<1x128xf32>
    %c410 = arith.constant 410 : index
    %2355 = memref.load %arg1[%c410] : memref<455xf32, #tpu.memory_space<smem>>
    %2356 = vector.broadcast %2355 : f32 to vector<1x128xf32>
    %2357 = arith.mulf %1821, %2356 : vector<1x128xf32>
    %2358 = arith.addf %2354, %2357 : vector<1x128xf32>
    %c420 = arith.constant 420 : index
    %2359 = memref.load %arg1[%c420] : memref<455xf32, #tpu.memory_space<smem>>
    %2360 = vector.broadcast %2359 : f32 to vector<1x128xf32>
    %2361 = arith.mulf %1873, %2360 : vector<1x128xf32>
    %2362 = arith.addf %2358, %2361 : vector<1x128xf32>
    %c430 = arith.constant 430 : index
    %2363 = memref.load %arg1[%c430] : memref<455xf32, #tpu.memory_space<smem>>
    %2364 = vector.broadcast %2363 : f32 to vector<1x128xf32>
    %2365 = arith.mulf %1925, %2364 : vector<1x128xf32>
    %2366 = arith.addf %2362, %2365 : vector<1x128xf32>
    %c440 = arith.constant 440 : index
    %2367 = memref.load %arg1[%c440] : memref<455xf32, #tpu.memory_space<smem>>
    %2368 = vector.broadcast %2367 : f32 to vector<1x128xf32>
    %2369 = arith.mulf %1977, %2368 : vector<1x128xf32>
    %2370 = arith.addf %2366, %2369 : vector<1x128xf32>
    %c450 = arith.constant 450 : index
    %2371 = memref.load %arg1[%c450] : memref<455xf32, #tpu.memory_space<smem>>
    %2372 = vector.broadcast %2371 : f32 to vector<1x128xf32>
    %2373 = arith.addf %2370, %2372 : vector<1x128xf32>
    %c291 = arith.constant 291 : index
    %2374 = memref.load %arg1[%c291] : memref<455xf32, #tpu.memory_space<smem>>
    %2375 = vector.broadcast %2374 : f32 to vector<1x128xf32>
    %2376 = arith.mulf %1197, %2375 : vector<1x128xf32>
    %c301 = arith.constant 301 : index
    %2377 = memref.load %arg1[%c301] : memref<455xf32, #tpu.memory_space<smem>>
    %2378 = vector.broadcast %2377 : f32 to vector<1x128xf32>
    %2379 = arith.mulf %1249, %2378 : vector<1x128xf32>
    %2380 = arith.addf %2376, %2379 : vector<1x128xf32>
    %c311 = arith.constant 311 : index
    %2381 = memref.load %arg1[%c311] : memref<455xf32, #tpu.memory_space<smem>>
    %2382 = vector.broadcast %2381 : f32 to vector<1x128xf32>
    %2383 = arith.mulf %1301, %2382 : vector<1x128xf32>
    %2384 = arith.addf %2380, %2383 : vector<1x128xf32>
    %c321 = arith.constant 321 : index
    %2385 = memref.load %arg1[%c321] : memref<455xf32, #tpu.memory_space<smem>>
    %2386 = vector.broadcast %2385 : f32 to vector<1x128xf32>
    %2387 = arith.mulf %1353, %2386 : vector<1x128xf32>
    %2388 = arith.addf %2384, %2387 : vector<1x128xf32>
    %c331 = arith.constant 331 : index
    %2389 = memref.load %arg1[%c331] : memref<455xf32, #tpu.memory_space<smem>>
    %2390 = vector.broadcast %2389 : f32 to vector<1x128xf32>
    %2391 = arith.mulf %1405, %2390 : vector<1x128xf32>
    %2392 = arith.addf %2388, %2391 : vector<1x128xf32>
    %c341 = arith.constant 341 : index
    %2393 = memref.load %arg1[%c341] : memref<455xf32, #tpu.memory_space<smem>>
    %2394 = vector.broadcast %2393 : f32 to vector<1x128xf32>
    %2395 = arith.mulf %1457, %2394 : vector<1x128xf32>
    %2396 = arith.addf %2392, %2395 : vector<1x128xf32>
    %c351 = arith.constant 351 : index
    %2397 = memref.load %arg1[%c351] : memref<455xf32, #tpu.memory_space<smem>>
    %2398 = vector.broadcast %2397 : f32 to vector<1x128xf32>
    %2399 = arith.mulf %1509, %2398 : vector<1x128xf32>
    %2400 = arith.addf %2396, %2399 : vector<1x128xf32>
    %c361 = arith.constant 361 : index
    %2401 = memref.load %arg1[%c361] : memref<455xf32, #tpu.memory_space<smem>>
    %2402 = vector.broadcast %2401 : f32 to vector<1x128xf32>
    %2403 = arith.mulf %1561, %2402 : vector<1x128xf32>
    %2404 = arith.addf %2400, %2403 : vector<1x128xf32>
    %c371 = arith.constant 371 : index
    %2405 = memref.load %arg1[%c371] : memref<455xf32, #tpu.memory_space<smem>>
    %2406 = vector.broadcast %2405 : f32 to vector<1x128xf32>
    %2407 = arith.mulf %1613, %2406 : vector<1x128xf32>
    %2408 = arith.addf %2404, %2407 : vector<1x128xf32>
    %c381 = arith.constant 381 : index
    %2409 = memref.load %arg1[%c381] : memref<455xf32, #tpu.memory_space<smem>>
    %2410 = vector.broadcast %2409 : f32 to vector<1x128xf32>
    %2411 = arith.mulf %1665, %2410 : vector<1x128xf32>
    %2412 = arith.addf %2408, %2411 : vector<1x128xf32>
    %c391 = arith.constant 391 : index
    %2413 = memref.load %arg1[%c391] : memref<455xf32, #tpu.memory_space<smem>>
    %2414 = vector.broadcast %2413 : f32 to vector<1x128xf32>
    %2415 = arith.mulf %1717, %2414 : vector<1x128xf32>
    %2416 = arith.addf %2412, %2415 : vector<1x128xf32>
    %c401 = arith.constant 401 : index
    %2417 = memref.load %arg1[%c401] : memref<455xf32, #tpu.memory_space<smem>>
    %2418 = vector.broadcast %2417 : f32 to vector<1x128xf32>
    %2419 = arith.mulf %1769, %2418 : vector<1x128xf32>
    %2420 = arith.addf %2416, %2419 : vector<1x128xf32>
    %c411 = arith.constant 411 : index
    %2421 = memref.load %arg1[%c411] : memref<455xf32, #tpu.memory_space<smem>>
    %2422 = vector.broadcast %2421 : f32 to vector<1x128xf32>
    %2423 = arith.mulf %1821, %2422 : vector<1x128xf32>
    %2424 = arith.addf %2420, %2423 : vector<1x128xf32>
    %c421 = arith.constant 421 : index
    %2425 = memref.load %arg1[%c421] : memref<455xf32, #tpu.memory_space<smem>>
    %2426 = vector.broadcast %2425 : f32 to vector<1x128xf32>
    %2427 = arith.mulf %1873, %2426 : vector<1x128xf32>
    %2428 = arith.addf %2424, %2427 : vector<1x128xf32>
    %c431 = arith.constant 431 : index
    %2429 = memref.load %arg1[%c431] : memref<455xf32, #tpu.memory_space<smem>>
    %2430 = vector.broadcast %2429 : f32 to vector<1x128xf32>
    %2431 = arith.mulf %1925, %2430 : vector<1x128xf32>
    %2432 = arith.addf %2428, %2431 : vector<1x128xf32>
    %c441 = arith.constant 441 : index
    %2433 = memref.load %arg1[%c441] : memref<455xf32, #tpu.memory_space<smem>>
    %2434 = vector.broadcast %2433 : f32 to vector<1x128xf32>
    %2435 = arith.mulf %1977, %2434 : vector<1x128xf32>
    %2436 = arith.addf %2432, %2435 : vector<1x128xf32>
    %c451 = arith.constant 451 : index
    %2437 = memref.load %arg1[%c451] : memref<455xf32, #tpu.memory_space<smem>>
    %2438 = vector.broadcast %2437 : f32 to vector<1x128xf32>
    %2439 = arith.addf %2436, %2438 : vector<1x128xf32>
    %c292 = arith.constant 292 : index
    %2440 = memref.load %arg1[%c292] : memref<455xf32, #tpu.memory_space<smem>>
    %2441 = vector.broadcast %2440 : f32 to vector<1x128xf32>
    %2442 = arith.mulf %1197, %2441 : vector<1x128xf32>
    %c302 = arith.constant 302 : index
    %2443 = memref.load %arg1[%c302] : memref<455xf32, #tpu.memory_space<smem>>
    %2444 = vector.broadcast %2443 : f32 to vector<1x128xf32>
    %2445 = arith.mulf %1249, %2444 : vector<1x128xf32>
    %2446 = arith.addf %2442, %2445 : vector<1x128xf32>
    %c312 = arith.constant 312 : index
    %2447 = memref.load %arg1[%c312] : memref<455xf32, #tpu.memory_space<smem>>
    %2448 = vector.broadcast %2447 : f32 to vector<1x128xf32>
    %2449 = arith.mulf %1301, %2448 : vector<1x128xf32>
    %2450 = arith.addf %2446, %2449 : vector<1x128xf32>
    %c322 = arith.constant 322 : index
    %2451 = memref.load %arg1[%c322] : memref<455xf32, #tpu.memory_space<smem>>
    %2452 = vector.broadcast %2451 : f32 to vector<1x128xf32>
    %2453 = arith.mulf %1353, %2452 : vector<1x128xf32>
    %2454 = arith.addf %2450, %2453 : vector<1x128xf32>
    %c332 = arith.constant 332 : index
    %2455 = memref.load %arg1[%c332] : memref<455xf32, #tpu.memory_space<smem>>
    %2456 = vector.broadcast %2455 : f32 to vector<1x128xf32>
    %2457 = arith.mulf %1405, %2456 : vector<1x128xf32>
    %2458 = arith.addf %2454, %2457 : vector<1x128xf32>
    %c342 = arith.constant 342 : index
    %2459 = memref.load %arg1[%c342] : memref<455xf32, #tpu.memory_space<smem>>
    %2460 = vector.broadcast %2459 : f32 to vector<1x128xf32>
    %2461 = arith.mulf %1457, %2460 : vector<1x128xf32>
    %2462 = arith.addf %2458, %2461 : vector<1x128xf32>
    %c352 = arith.constant 352 : index
    %2463 = memref.load %arg1[%c352] : memref<455xf32, #tpu.memory_space<smem>>
    %2464 = vector.broadcast %2463 : f32 to vector<1x128xf32>
    %2465 = arith.mulf %1509, %2464 : vector<1x128xf32>
    %2466 = arith.addf %2462, %2465 : vector<1x128xf32>
    %c362 = arith.constant 362 : index
    %2467 = memref.load %arg1[%c362] : memref<455xf32, #tpu.memory_space<smem>>
    %2468 = vector.broadcast %2467 : f32 to vector<1x128xf32>
    %2469 = arith.mulf %1561, %2468 : vector<1x128xf32>
    %2470 = arith.addf %2466, %2469 : vector<1x128xf32>
    %c372 = arith.constant 372 : index
    %2471 = memref.load %arg1[%c372] : memref<455xf32, #tpu.memory_space<smem>>
    %2472 = vector.broadcast %2471 : f32 to vector<1x128xf32>
    %2473 = arith.mulf %1613, %2472 : vector<1x128xf32>
    %2474 = arith.addf %2470, %2473 : vector<1x128xf32>
    %c382 = arith.constant 382 : index
    %2475 = memref.load %arg1[%c382] : memref<455xf32, #tpu.memory_space<smem>>
    %2476 = vector.broadcast %2475 : f32 to vector<1x128xf32>
    %2477 = arith.mulf %1665, %2476 : vector<1x128xf32>
    %2478 = arith.addf %2474, %2477 : vector<1x128xf32>
    %c392 = arith.constant 392 : index
    %2479 = memref.load %arg1[%c392] : memref<455xf32, #tpu.memory_space<smem>>
    %2480 = vector.broadcast %2479 : f32 to vector<1x128xf32>
    %2481 = arith.mulf %1717, %2480 : vector<1x128xf32>
    %2482 = arith.addf %2478, %2481 : vector<1x128xf32>
    %c402 = arith.constant 402 : index
    %2483 = memref.load %arg1[%c402] : memref<455xf32, #tpu.memory_space<smem>>
    %2484 = vector.broadcast %2483 : f32 to vector<1x128xf32>
    %2485 = arith.mulf %1769, %2484 : vector<1x128xf32>
    %2486 = arith.addf %2482, %2485 : vector<1x128xf32>
    %c412 = arith.constant 412 : index
    %2487 = memref.load %arg1[%c412] : memref<455xf32, #tpu.memory_space<smem>>
    %2488 = vector.broadcast %2487 : f32 to vector<1x128xf32>
    %2489 = arith.mulf %1821, %2488 : vector<1x128xf32>
    %2490 = arith.addf %2486, %2489 : vector<1x128xf32>
    %c422 = arith.constant 422 : index
    %2491 = memref.load %arg1[%c422] : memref<455xf32, #tpu.memory_space<smem>>
    %2492 = vector.broadcast %2491 : f32 to vector<1x128xf32>
    %2493 = arith.mulf %1873, %2492 : vector<1x128xf32>
    %2494 = arith.addf %2490, %2493 : vector<1x128xf32>
    %c432 = arith.constant 432 : index
    %2495 = memref.load %arg1[%c432] : memref<455xf32, #tpu.memory_space<smem>>
    %2496 = vector.broadcast %2495 : f32 to vector<1x128xf32>
    %2497 = arith.mulf %1925, %2496 : vector<1x128xf32>
    %2498 = arith.addf %2494, %2497 : vector<1x128xf32>
    %c442 = arith.constant 442 : index
    %2499 = memref.load %arg1[%c442] : memref<455xf32, #tpu.memory_space<smem>>
    %2500 = vector.broadcast %2499 : f32 to vector<1x128xf32>
    %2501 = arith.mulf %1977, %2500 : vector<1x128xf32>
    %2502 = arith.addf %2498, %2501 : vector<1x128xf32>
    %c452 = arith.constant 452 : index
    %2503 = memref.load %arg1[%c452] : memref<455xf32, #tpu.memory_space<smem>>
    %2504 = vector.broadcast %2503 : f32 to vector<1x128xf32>
    %2505 = arith.addf %2502, %2504 : vector<1x128xf32>
    %c293 = arith.constant 293 : index
    %2506 = memref.load %arg1[%c293] : memref<455xf32, #tpu.memory_space<smem>>
    %2507 = vector.broadcast %2506 : f32 to vector<1x128xf32>
    %2508 = arith.mulf %1197, %2507 : vector<1x128xf32>
    %c303 = arith.constant 303 : index
    %2509 = memref.load %arg1[%c303] : memref<455xf32, #tpu.memory_space<smem>>
    %2510 = vector.broadcast %2509 : f32 to vector<1x128xf32>
    %2511 = arith.mulf %1249, %2510 : vector<1x128xf32>
    %2512 = arith.addf %2508, %2511 : vector<1x128xf32>
    %c313 = arith.constant 313 : index
    %2513 = memref.load %arg1[%c313] : memref<455xf32, #tpu.memory_space<smem>>
    %2514 = vector.broadcast %2513 : f32 to vector<1x128xf32>
    %2515 = arith.mulf %1301, %2514 : vector<1x128xf32>
    %2516 = arith.addf %2512, %2515 : vector<1x128xf32>
    %c323 = arith.constant 323 : index
    %2517 = memref.load %arg1[%c323] : memref<455xf32, #tpu.memory_space<smem>>
    %2518 = vector.broadcast %2517 : f32 to vector<1x128xf32>
    %2519 = arith.mulf %1353, %2518 : vector<1x128xf32>
    %2520 = arith.addf %2516, %2519 : vector<1x128xf32>
    %c333 = arith.constant 333 : index
    %2521 = memref.load %arg1[%c333] : memref<455xf32, #tpu.memory_space<smem>>
    %2522 = vector.broadcast %2521 : f32 to vector<1x128xf32>
    %2523 = arith.mulf %1405, %2522 : vector<1x128xf32>
    %2524 = arith.addf %2520, %2523 : vector<1x128xf32>
    %c343 = arith.constant 343 : index
    %2525 = memref.load %arg1[%c343] : memref<455xf32, #tpu.memory_space<smem>>
    %2526 = vector.broadcast %2525 : f32 to vector<1x128xf32>
    %2527 = arith.mulf %1457, %2526 : vector<1x128xf32>
    %2528 = arith.addf %2524, %2527 : vector<1x128xf32>
    %c353 = arith.constant 353 : index
    %2529 = memref.load %arg1[%c353] : memref<455xf32, #tpu.memory_space<smem>>
    %2530 = vector.broadcast %2529 : f32 to vector<1x128xf32>
    %2531 = arith.mulf %1509, %2530 : vector<1x128xf32>
    %2532 = arith.addf %2528, %2531 : vector<1x128xf32>
    %c363 = arith.constant 363 : index
    %2533 = memref.load %arg1[%c363] : memref<455xf32, #tpu.memory_space<smem>>
    %2534 = vector.broadcast %2533 : f32 to vector<1x128xf32>
    %2535 = arith.mulf %1561, %2534 : vector<1x128xf32>
    %2536 = arith.addf %2532, %2535 : vector<1x128xf32>
    %c373 = arith.constant 373 : index
    %2537 = memref.load %arg1[%c373] : memref<455xf32, #tpu.memory_space<smem>>
    %2538 = vector.broadcast %2537 : f32 to vector<1x128xf32>
    %2539 = arith.mulf %1613, %2538 : vector<1x128xf32>
    %2540 = arith.addf %2536, %2539 : vector<1x128xf32>
    %c383 = arith.constant 383 : index
    %2541 = memref.load %arg1[%c383] : memref<455xf32, #tpu.memory_space<smem>>
    %2542 = vector.broadcast %2541 : f32 to vector<1x128xf32>
    %2543 = arith.mulf %1665, %2542 : vector<1x128xf32>
    %2544 = arith.addf %2540, %2543 : vector<1x128xf32>
    %c393 = arith.constant 393 : index
    %2545 = memref.load %arg1[%c393] : memref<455xf32, #tpu.memory_space<smem>>
    %2546 = vector.broadcast %2545 : f32 to vector<1x128xf32>
    %2547 = arith.mulf %1717, %2546 : vector<1x128xf32>
    %2548 = arith.addf %2544, %2547 : vector<1x128xf32>
    %c403 = arith.constant 403 : index
    %2549 = memref.load %arg1[%c403] : memref<455xf32, #tpu.memory_space<smem>>
    %2550 = vector.broadcast %2549 : f32 to vector<1x128xf32>
    %2551 = arith.mulf %1769, %2550 : vector<1x128xf32>
    %2552 = arith.addf %2548, %2551 : vector<1x128xf32>
    %c413 = arith.constant 413 : index
    %2553 = memref.load %arg1[%c413] : memref<455xf32, #tpu.memory_space<smem>>
    %2554 = vector.broadcast %2553 : f32 to vector<1x128xf32>
    %2555 = arith.mulf %1821, %2554 : vector<1x128xf32>
    %2556 = arith.addf %2552, %2555 : vector<1x128xf32>
    %c423 = arith.constant 423 : index
    %2557 = memref.load %arg1[%c423] : memref<455xf32, #tpu.memory_space<smem>>
    %2558 = vector.broadcast %2557 : f32 to vector<1x128xf32>
    %2559 = arith.mulf %1873, %2558 : vector<1x128xf32>
    %2560 = arith.addf %2556, %2559 : vector<1x128xf32>
    %c433 = arith.constant 433 : index
    %2561 = memref.load %arg1[%c433] : memref<455xf32, #tpu.memory_space<smem>>
    %2562 = vector.broadcast %2561 : f32 to vector<1x128xf32>
    %2563 = arith.mulf %1925, %2562 : vector<1x128xf32>
    %2564 = arith.addf %2560, %2563 : vector<1x128xf32>
    %c443 = arith.constant 443 : index
    %2565 = memref.load %arg1[%c443] : memref<455xf32, #tpu.memory_space<smem>>
    %2566 = vector.broadcast %2565 : f32 to vector<1x128xf32>
    %2567 = arith.mulf %1977, %2566 : vector<1x128xf32>
    %2568 = arith.addf %2564, %2567 : vector<1x128xf32>
    %c453 = arith.constant 453 : index
    %2569 = memref.load %arg1[%c453] : memref<455xf32, #tpu.memory_space<smem>>
    %2570 = vector.broadcast %2569 : f32 to vector<1x128xf32>
    %2571 = arith.addf %2568, %2570 : vector<1x128xf32>
    %c294 = arith.constant 294 : index
    %2572 = memref.load %arg1[%c294] : memref<455xf32, #tpu.memory_space<smem>>
    %2573 = vector.broadcast %2572 : f32 to vector<1x128xf32>
    %2574 = arith.mulf %1197, %2573 : vector<1x128xf32>
    %c304 = arith.constant 304 : index
    %2575 = memref.load %arg1[%c304] : memref<455xf32, #tpu.memory_space<smem>>
    %2576 = vector.broadcast %2575 : f32 to vector<1x128xf32>
    %2577 = arith.mulf %1249, %2576 : vector<1x128xf32>
    %2578 = arith.addf %2574, %2577 : vector<1x128xf32>
    %c314 = arith.constant 314 : index
    %2579 = memref.load %arg1[%c314] : memref<455xf32, #tpu.memory_space<smem>>
    %2580 = vector.broadcast %2579 : f32 to vector<1x128xf32>
    %2581 = arith.mulf %1301, %2580 : vector<1x128xf32>
    %2582 = arith.addf %2578, %2581 : vector<1x128xf32>
    %c324 = arith.constant 324 : index
    %2583 = memref.load %arg1[%c324] : memref<455xf32, #tpu.memory_space<smem>>
    %2584 = vector.broadcast %2583 : f32 to vector<1x128xf32>
    %2585 = arith.mulf %1353, %2584 : vector<1x128xf32>
    %2586 = arith.addf %2582, %2585 : vector<1x128xf32>
    %c334 = arith.constant 334 : index
    %2587 = memref.load %arg1[%c334] : memref<455xf32, #tpu.memory_space<smem>>
    %2588 = vector.broadcast %2587 : f32 to vector<1x128xf32>
    %2589 = arith.mulf %1405, %2588 : vector<1x128xf32>
    %2590 = arith.addf %2586, %2589 : vector<1x128xf32>
    %c344 = arith.constant 344 : index
    %2591 = memref.load %arg1[%c344] : memref<455xf32, #tpu.memory_space<smem>>
    %2592 = vector.broadcast %2591 : f32 to vector<1x128xf32>
    %2593 = arith.mulf %1457, %2592 : vector<1x128xf32>
    %2594 = arith.addf %2590, %2593 : vector<1x128xf32>
    %c354 = arith.constant 354 : index
    %2595 = memref.load %arg1[%c354] : memref<455xf32, #tpu.memory_space<smem>>
    %2596 = vector.broadcast %2595 : f32 to vector<1x128xf32>
    %2597 = arith.mulf %1509, %2596 : vector<1x128xf32>
    %2598 = arith.addf %2594, %2597 : vector<1x128xf32>
    %c364 = arith.constant 364 : index
    %2599 = memref.load %arg1[%c364] : memref<455xf32, #tpu.memory_space<smem>>
    %2600 = vector.broadcast %2599 : f32 to vector<1x128xf32>
    %2601 = arith.mulf %1561, %2600 : vector<1x128xf32>
    %2602 = arith.addf %2598, %2601 : vector<1x128xf32>
    %c374 = arith.constant 374 : index
    %2603 = memref.load %arg1[%c374] : memref<455xf32, #tpu.memory_space<smem>>
    %2604 = vector.broadcast %2603 : f32 to vector<1x128xf32>
    %2605 = arith.mulf %1613, %2604 : vector<1x128xf32>
    %2606 = arith.addf %2602, %2605 : vector<1x128xf32>
    %c384 = arith.constant 384 : index
    %2607 = memref.load %arg1[%c384] : memref<455xf32, #tpu.memory_space<smem>>
    %2608 = vector.broadcast %2607 : f32 to vector<1x128xf32>
    %2609 = arith.mulf %1665, %2608 : vector<1x128xf32>
    %2610 = arith.addf %2606, %2609 : vector<1x128xf32>
    %c394 = arith.constant 394 : index
    %2611 = memref.load %arg1[%c394] : memref<455xf32, #tpu.memory_space<smem>>
    %2612 = vector.broadcast %2611 : f32 to vector<1x128xf32>
    %2613 = arith.mulf %1717, %2612 : vector<1x128xf32>
    %2614 = arith.addf %2610, %2613 : vector<1x128xf32>
    %c404 = arith.constant 404 : index
    %2615 = memref.load %arg1[%c404] : memref<455xf32, #tpu.memory_space<smem>>
    %2616 = vector.broadcast %2615 : f32 to vector<1x128xf32>
    %2617 = arith.mulf %1769, %2616 : vector<1x128xf32>
    %2618 = arith.addf %2614, %2617 : vector<1x128xf32>
    %c414 = arith.constant 414 : index
    %2619 = memref.load %arg1[%c414] : memref<455xf32, #tpu.memory_space<smem>>
    %2620 = vector.broadcast %2619 : f32 to vector<1x128xf32>
    %2621 = arith.mulf %1821, %2620 : vector<1x128xf32>
    %2622 = arith.addf %2618, %2621 : vector<1x128xf32>
    %c424 = arith.constant 424 : index
    %2623 = memref.load %arg1[%c424] : memref<455xf32, #tpu.memory_space<smem>>
    %2624 = vector.broadcast %2623 : f32 to vector<1x128xf32>
    %2625 = arith.mulf %1873, %2624 : vector<1x128xf32>
    %2626 = arith.addf %2622, %2625 : vector<1x128xf32>
    %c434 = arith.constant 434 : index
    %2627 = memref.load %arg1[%c434] : memref<455xf32, #tpu.memory_space<smem>>
    %2628 = vector.broadcast %2627 : f32 to vector<1x128xf32>
    %2629 = arith.mulf %1925, %2628 : vector<1x128xf32>
    %2630 = arith.addf %2626, %2629 : vector<1x128xf32>
    %c444 = arith.constant 444 : index
    %2631 = memref.load %arg1[%c444] : memref<455xf32, #tpu.memory_space<smem>>
    %2632 = vector.broadcast %2631 : f32 to vector<1x128xf32>
    %2633 = arith.mulf %1977, %2632 : vector<1x128xf32>
    %2634 = arith.addf %2630, %2633 : vector<1x128xf32>
    %c454 = arith.constant 454 : index
    %2635 = memref.load %arg1[%c454] : memref<455xf32, #tpu.memory_space<smem>>
    %2636 = vector.broadcast %2635 : f32 to vector<1x128xf32>
    %2637 = arith.addf %2634, %2636 : vector<1x128xf32>
    %2638 = tpu.concatenate %2043, %2109, %2175, %2241, %2307, %2373, %2439, %2505, %2571, %2637 in 0 : vector<1x128xf32>, vector<1x128xf32>, vector<1x128xf32>, vector<1x128xf32>, vector<1x128xf32>, vector<1x128xf32>, vector<1x128xf32>, vector<1x128xf32>, vector<1x128xf32>, vector<1x128xf32> -> vector<10x128xf32>
    %c0_203 = arith.constant 0 : index
    %c0_204 = arith.constant 0 : index
    %2639 = vector.load %arg3[%c0_203, %c0_204] : memref<10x128xf32, #tpu.memory_space<vmem>>, vector<10x128xf32>
    tpu.vector_store %arg3[%c0_203, %c0_204], %2638 {strides = array<i32>} : memref<10x128xf32, #tpu.memory_space<vmem>>, vector<10x128xf32>,
    return
  }
  func.func @transform_0(%arg0: i32) -> i32 {
    %c0_i32 = arith.constant 0 : i32
    %c0_i32_0 = arith.constant 0 : i32
    return %c0_i32 : i32
  }
  func.func @transform_1(%arg0: i32) -> (i32, i32, i32) {
    %c0_i32 = arith.constant 0 : i32
    %c0_i32_0 = arith.constant 0 : i32
    %c0_i32_1 = arith.constant 0 : i32
    return %c0_i32, %c0_i32_0, %arg0 : i32, i32, i32
  }
  func.func @transform_2(%arg0: i32) -> (i32, i32) {
    %c0_i32 = arith.constant 0 : i32
    %c0_i32_0 = arith.constant 0 : i32
    return %c0_i32, %arg0 : i32, i32
  }
}

</mosaic_0001>

<llo_original>
// kernel: tiny_cnn_forward.1
$region0: #{tiny_cnn_forward.1}
  #allocation0 [shape = 'u32[]', space=smem, size = 0x4, offset = 0x4, fixed_abs, tag = 'smem constant byte address 0x4 - core index']
  #allocation1 [shape = 'u32[72,128]{1,0:T(1,128)}', space=vmem, size = 0x9000, scoped, tag = 'internal scratch']
  %s0 = inlined_call_operand.vmem [shape: f32[455], index: 0, kind: input, shape index: {}]
  %s1 = inlined_call_operand.vmem [shape: f32[8,8,128], index: 1, kind: input, shape index: {}]
  %s2 = inlined_call_operand.vmem [shape: f32[10,128], index: 2, kind: output, shape index: {}]
  %s3 = sld [smem:[#allocation0]]
  $region22: #{tiny_cnn_forward.1} parent=0
    _
  %s5 = ssub.s32 1, %s3
  %s6 = scalar_select 0, %s5, %s3
  $region1: #{tiny_cnn_forward.1} parent=0
    #allocation2 [shape = 'u8[2048]{0}', space=smem, size = 0x800, scoped, tag = 'input window, operand 0, single buffered']
    #allocation3 [shape = 's32[1]{0}', space=sflag, size = 0x4, scoped, tag = 'scoped memory for tiny_cnn_forward.1']
    %7 = vsyncpa [#allocation3], 0
    // Predicated region
    $region2: #{tiny_cnn_forward.1} parent=1 // pred_check
      _
    $region3: #{tiny_cnn_forward.1} parent=1 // pred_check_branch
      %9 = sbr.rel (0) target = $region5
    $region4: #{tiny_cnn_forward.1} parent=1 // pred_region
      %11 = vsyncadd [#allocation3], 0
      %s13 = sshll.u32 %s0, 4
      %s14 = int_to_ptr.vmem [resolvable:$true] %s13
      %16 = dma.vmem_to_smem %s14, 64, [#allocation2], [#allocation3]
    $region5: #{tiny_cnn_forward.1} parent=1 // pred_fallthru
      _
    // Predicated region
    $region6: #{tiny_cnn_forward.1} parent=1 // pred_check
      _
    $region7: #{tiny_cnn_forward.1} parent=1 // pred_check_branch
      %18 = sbr.rel (0) target = $region9
    $region8: #{tiny_cnn_forward.1} parent=1 // pred_region
      _
    $region9: #{tiny_cnn_forward.1} parent=1 // pred_fallthru
      _
    // Predicated region
    $region10: #{tiny_cnn_forward.1} parent=1 // pred_check
      _
    $region11: #{tiny_cnn_forward.1} parent=1 // pred_check_branch
      %20 = sbr.rel (0) target = $region13
    $region12: #{tiny_cnn_forward.1} parent=1 // pred_region
      %22 = dma.done [#allocation3], 64
    $region13: #{tiny_cnn_forward.1} parent=1 // pred_fallthru
      _
    %23 = sfence
    %v24 = vld [vmem:[%s1] sm:$0xff]
    %v25 = vld [vmem:[%s1 + $0x8] sm:$0xff]
    %v26 = vld [vmem:[%s1 + $0x10] sm:$0xff]
    %v27 = vld [vmem:[%s1 + $0x18] sm:$0xff]
    %v28 = vld [vmem:[%s1 + $0x20] sm:$0xff]
    %v29 = vld [vmem:[%s1 + $0x28] sm:$0xff]
    %v30 = vld [vmem:[%s1 + $0x30] sm:$0xff]
    %s31 = sld [smem:[#allocation2]]
    %v32 = vstv %s31
    %v33 = vmul.f32 %v24, %v32
    %v34 = vmul.f32 %v25, %v32
    %v35 = vmul.f32 %v26, %v32
    %v36 = vmul.f32 %v27, %v32
    %v37 = vmul.f32 %v28, %v32
    %s38 = sld [smem:[#allocation2 + $0x1]]
    %v39 = vstv %s38
    %v40 = vmul.f32 %v24, %v39
    %v41 = vmul.f32 %v25, %v39
    %v42 = vmul.f32 %v26, %v39
    %v43 = vmul.f32 %v27, %v39
    %v44 = vmul.f32 %v28, %v39
    %s45 = sld [smem:[#allocation2 + $0x2]]
    %v46 = vstv %s45
    %v47 = vmul.f32 %v24, %v46
    %v48 = vmul.f32 %v25, %v46
    %v49 = vmul.f32 %v26, %v46
    %v50 = vmul.f32 %v27, %v46
    %v51 = vmul.f32 %v28, %v46
    %v57 = vrot.slane %v47, 1
    %v58 = vrot.slane %v48, 1
    %v59 = vrot.slane %v49, 1
    %v60 = vrot.slane %v50, 1
    %v61 = vrot.slane %v51, 1
    %v67 = vadd.f32 %v33, %v57
    %v68 = vadd.f32 %v34, %v58
    %v69 = vadd.f32 %v35, %v59
    %v70 = vadd.f32 %v36, %v60
    %v71 = vadd.f32 %v37, %v61
    %s72 = sld [smem:[#allocation2 + $0x3]]
    %v73 = vstv %s72
    %v74 = vmul.f32 %v24, %v73
    %v75 = vmul.f32 %v25, %v73
    %v76 = vmul.f32 %v26, %v73
    %v77 = vmul.f32 %v27, %v73
    %v78 = vmul.f32 %v28, %v73
    %v84 = vrot.slane %v74, 1
    %v85 = vrot.slane %v75, 1
    %v86 = vrot.slane %v76, 1
    %v87 = vrot.slane %v77, 1
    %v88 = vrot.slane %v78, 1
    %v94 = vadd.f32 %v40, %v84
    %v95 = vadd.f32 %v41, %v85
    %v96 = vadd.f32 %v42, %v86
    %v97 = vadd.f32 %v43, %v87
    %v98 = vadd.f32 %v44, %v88
    %s99 = sld [smem:[#allocation2 + $0x4]]
    %v100 = vstv %s99
    %v101 = vmul.f32 %v24, %v100
    %v102 = vmul.f32 %v25, %v100
    %v103 = vmul.f32 %v26, %v100
    %v104 = vmul.f32 %v27, %v100
    %v105 = vmul.f32 %v28, %v100
    %v111 = vrot.slane %v101, 2
    %v112 = vrot.slane %v102, 2
    %v113 = vrot.slane %v103, 2
    %v114 = vrot.slane %v104, 2
    %v115 = vrot.slane %v105, 2
    %v121 = vadd.f32 %v67, %v111
    %v122 = vadd.f32 %v68, %v112
    %v123 = vadd.f32 %v69, %v113
    %v124 = vadd.f32 %v70, %v114
    %v125 = vadd.f32 %v71, %v115
    %s126 = sld [smem:[#allocation2 + $0x5]]
    %v127 = vstv %s126
    %v128 = vmul.f32 %v24, %v127
    %v129 = vmul.f32 %v25, %v127
    %v130 = vmul.f32 %v26, %v127
    %v131 = vmul.f32 %v27, %v127
    %v132 = vmul.f32 %v28, %v127
    %v138 = vrot.slane %v128, 2
    %v139 = vrot.slane %v129, 2
    %v140 = vrot.slane %v130, 2
    %v141 = vrot.slane %v131, 2
    %v142 = vrot.slane %v132, 2
    %v148 = vadd.f32 %v94, %v138
    %v149 = vadd.f32 %v95, %v139
    %v150 = vadd.f32 %v96, %v140
    %v151 = vadd.f32 %v97, %v141
    %v152 = vadd.f32 %v98, %v142
    %s153 = sld [smem:[#allocation2 + $0x6]]
    %v154 = vstv %s153
    %v155 = vmul.f32 %v25, %v154
    %v156 = vmul.f32 %v26, %v154
    %v157 = vmul.f32 %v27, %v154
    %v158 = vmul.f32 %v28, %v154
    %v159 = vmul.f32 %v29, %v154
    %v160 = vadd.f32 %v121, %v155
    %v161 = vadd.f32 %v122, %v156
    %v162 = vadd.f32 %v123, %v157
    %v163 = vadd.f32 %v124, %v158
    %v164 = vadd.f32 %v125, %v159
    %s165 = sld [smem:[#allocation2 + $0x7]]
    %v166 = vstv %s165
    %v167 = vmul.f32 %v25, %v166
    %v168 = vmul.f32 %v26, %v166
    %v169 = vmul.f32 %v27, %v166
    %v170 = vmul.f32 %v28, %v166
    %v171 = vmul.f32 %v29, %v166
    %v172 = vadd.f32 %v148, %v167
    %v173 = vadd.f32 %v149, %v168
    %v174 = vadd.f32 %v150, %v169
    %v175 = vadd.f32 %v151, %v170
    %v176 = vadd.f32 %v152, %v171
    %s177 = sld [smem:[#allocation2 + $0x8]]
    %v178 = vstv %s177
    %v179 = vmul.f32 %v25, %v178
    %v180 = vmul.f32 %v26, %v178
    %v181 = vmul.f32 %v27, %v178
    %v182 = vmul.f32 %v28, %v178
    %v183 = vmul.f32 %v29, %v178
    %v189 = vrot.slane %v179, 1
    %v190 = vrot.slane %v180, 1
    %v191 = vrot.slane %v181, 1
    %v192 = vrot.slane %v182, 1
    %v193 = vrot.slane %v183, 1
    %v199 = vadd.f32 %v160, %v189
    %v200 = vadd.f32 %v161, %v190
    %v201 = vadd.f32 %v162, %v191
    %v202 = vadd.f32 %v163, %v192
    %v203 = vadd.f32 %v164, %v193
    %s204 = sld [smem:[#allocation2 + $0x9]]
    %v205 = vstv %s204
    %v206 = vmul.f32 %v25, %v205
    %v207 = vmul.f32 %v26, %v205
    %v208 = vmul.f32 %v27, %v205
    %v209 = vmul.f32 %v28, %v205
    %v210 = vmul.f32 %v29, %v205
    %v216 = vrot.slane %v206, 1
    %v217 = vrot.slane %v207, 1
    %v218 = vrot.slane %v208, 1
    %v219 = vrot.slane %v209, 1
    %v220 = vrot.slane %v210, 1
    %v226 = vadd.f32 %v172, %v216
    %v227 = vadd.f32 %v173, %v217
    %v228 = vadd.f32 %v174, %v218
    %v229 = vadd.f32 %v175, %v219
    %v230 = vadd.f32 %v176, %v220
    %s231 = sld [smem:[#allocation2 + $0xa]]
    %v232 = vstv %s231
    %v233 = vmul.f32 %v25, %v232
    %v234 = vmul.f32 %v26, %v232
    %v235 = vmul.f32 %v27, %v232
    %v236 = vmul.f32 %v28, %v232
    %v237 = vmul.f32 %v29, %v232
    %v243 = vrot.slane %v233, 2
    %v244 = vrot.slane %v234, 2
    %v245 = vrot.slane %v235, 2
    %v246 = vrot.slane %v236, 2
    %v247 = vrot.slane %v237, 2
    %v253 = vadd.f32 %v199, %v243
    %v254 = vadd.f32 %v200, %v244
    %v255 = vadd.f32 %v201, %v245
    %v256 = vadd.f32 %v202, %v246
    %v257 = vadd.f32 %v203, %v247
    %s258 = sld [smem:[#allocation2 + $0xb]]
    %v259 = vstv %s258
    %v260 = vmul.f32 %v25, %v259
    %v261 = vmul.f32 %v26, %v259
    %v262 = vmul.f32 %v27, %v259
    %v263 = vmul.f32 %v28, %v259
    %v264 = vmul.f32 %v29, %v259
    %v270 = vrot.slane %v260, 2
    %v271 = vrot.slane %v261, 2
    %v272 = vrot.slane %v262, 2
    %v273 = vrot.slane %v263, 2
    %v274 = vrot.slane %v264, 2
    %v280 = vadd.f32 %v226, %v270
    %v281 = vadd.f32 %v227, %v271
    %v282 = vadd.f32 %v228, %v272
    %v283 = vadd.f32 %v229, %v273
    %v284 = vadd.f32 %v230, %v274
    %s285 = sld [smem:[#allocation2 + $0xc]]
    %v286 = vstv %s285
    %v287 = vmul.f32 %v26, %v286
    %v288 = vmul.f32 %v27, %v286
    %v289 = vmul.f32 %v28, %v286
    %v290 = vmul.f32 %v29, %v286
    %v291 = vmul.f32 %v30, %v286
    %v292 = vadd.f32 %v253, %v287
    %v293 = vadd.f32 %v254, %v288
    %v294 = vadd.f32 %v255, %v289
    %v295 = vadd.f32 %v256, %v290
    %v296 = vadd.f32 %v257, %v291
    %s297 = sld [smem:[#allocation2 + $0xd]]
    %v298 = vstv %s297
    %v299 = vmul.f32 %v26, %v298
    %v300 = vmul.f32 %v27, %v298
    %v301 = vmul.f32 %v28, %v298
    %v302 = vmul.f32 %v29, %v298
    %v303 = vmul.f32 %v30, %v298
    %v304 = vadd.f32 %v280, %v299
    %v305 = vadd.f32 %v281, %v300
    %v306 = vadd.f32 %v282, %v301
    %v307 = vadd.f32 %v283, %v302
    %v308 = vadd.f32 %v284, %v303
    %s309 = sld [smem:[#allocation2 + $0xe]]
    %v310 = vstv %s309
    %v311 = vmul.f32 %v26, %v310
    %v312 = vmul.f32 %v27, %v310
    %v313 = vmul.f32 %v28, %v310
    %v314 = vmul.f32 %v29, %v310
    %v315 = vmul.f32 %v30, %v310
    %v321 = vrot.slane %v311, 1
    %v322 = vrot.slane %v312, 1
    %v323 = vrot.slane %v313, 1
    %v324 = vrot.slane %v314, 1
    %v325 = vrot.slane %v315, 1
    %v331 = vadd.f32 %v292, %v321
    %v332 = vadd.f32 %v293, %v322
    %v333 = vadd.f32 %v294, %v323
    %v334 = vadd.f32 %v295, %v324
    %v335 = vadd.f32 %v296, %v325
    %s336 = sld [smem:[#allocation2 + $0xf]]
    %v337 = vstv %s336
    %v338 = vmul.f32 %v26, %v337
    %v339 = vmul.f32 %v27, %v337
    %v340 = vmul.f32 %v28, %v337
    %v341 = vmul.f32 %v29, %v337
    %v342 = vmul.f32 %v30, %v337
    %v348 = vrot.slane %v338, 1
    %v349 = vrot.slane %v339, 1
    %v350 = vrot.slane %v340, 1
    %v351 = vrot.slane %v341, 1
    %v352 = vrot.slane %v342, 1
    %v358 = vadd.f32 %v304, %v348
    %v359 = vadd.f32 %v305, %v349
    %v360 = vadd.f32 %v306, %v350
    %v361 = vadd.f32 %v307, %v351
    %v362 = vadd.f32 %v308, %v352
    %s363 = sld [smem:[#allocation2 + $0x10]]
    %v364 = vstv %s363
    %v365 = vmul.f32 %v26, %v364
    %v366 = vmul.f32 %v27, %v364
    %v367 = vmul.f32 %v28, %v364
    %v368 = vmul.f32 %v29, %v364
    %v369 = vmul.f32 %v30, %v364
    %v375 = vrot.slane %v365, 2
    %v376 = vrot.slane %v366, 2
    %v377 = vrot.slane %v367, 2
    %v378 = vrot.slane %v368, 2
    %v379 = vrot.slane %v369, 2
    %v385 = vadd.f32 %v331, %v375
    %v386 = vadd.f32 %v332, %v376
    %v387 = vadd.f32 %v333, %v377
    %v388 = vadd.f32 %v334, %v378
    %v389 = vadd.f32 %v335, %v379
    %s390 = sld [smem:[#allocation2 + $0x11]]
    %v391 = vstv %s390
    %v392 = vmul.f32 %v26, %v391
    %v393 = vmul.f32 %v27, %v391
    %v394 = vmul.f32 %v28, %v391
    %v395 = vmul.f32 %v29, %v391
    %v396 = vmul.f32 %v30, %v391
    %v402 = vrot.slane %v392, 2
    %v403 = vrot.slane %v393, 2
    %v404 = vrot.slane %v394, 2
    %v405 = vrot.slane %v395, 2
    %v406 = vrot.slane %v396, 2
    %v412 = vadd.f32 %v358, %v402
    %v413 = vadd.f32 %v359, %v403
    %v414 = vadd.f32 %v360, %v404
    %v415 = vadd.f32 %v361, %v405
    %v416 = vadd.f32 %v362, %v406
    %s417 = sld [smem:[#allocation2 + $0x12]]
    %v418 = vstv %s417
    %v419 = vadd.f32 %v385, %v418
    %v420 = vadd.f32 %v386, %v418
    %v421 = vadd.f32 %v387, %v418
    %v422 = vadd.f32 %v388, %v418
    %v423 = vadd.f32 %v389, %v418
    %v424 = vmax.f32 %v419, 0.0
    %v425 = vmax.f32 %v420, 0.0
    %v426 = vmax.f32 %v421, 0.0
    %v427 = vmax.f32 %v422, 0.0
    %v428 = vmax.f32 %v423, 0.0
    %s429 = sld [smem:[#allocation2 + $0x13]]
    %v430 = vstv %s429
    %v431 = vadd.f32 %v412, %v430
    %v432 = vadd.f32 %v413, %v430
    %v433 = vadd.f32 %v414, %v430
    %v434 = vadd.f32 %v415, %v430
    %v435 = vadd.f32 %v416, %v430
    %v436 = vmax.f32 %v431, 0.0
    %v437 = vmax.f32 %v432, 0.0
    %v438 = vmax.f32 %v433, 0.0
    %v439 = vmax.f32 %v434, 0.0
    %v440 = vmax.f32 %v435, 0.0
    %s441 = sld [smem:[#allocation2 + $0x14]]
    %v442 = vstv %s441
    %v443 = vmul.f32 %v424, %v442
    %s444 = sld [smem:[#allocation2 + $0x15]]
    %v445 = vstv %s444
    %v446 = vmul.f32 %v424, %v445
    %s447 = sld [smem:[#allocation2 + $0x16]]
    %v448 = vstv %s447
    %v449 = vmul.f32 %v424, %v448
    %s450 = sld [smem:[#allocation2 + $0x17]]
    %v451 = vstv %s450
    %v452 = vmul.f32 %v436, %v451
    %v453 = vadd.f32 %v443, %v452
    %s454 = sld [smem:[#allocation2 + $0x18]]
    %v455 = vstv %s454
    %v456 = vmul.f32 %v436, %v455
    %v457 = vadd.f32 %v446, %v456
    %s458 = sld [smem:[#allocation2 + $0x19]]
    %v459 = vstv %s458
    %v460 = vmul.f32 %v436, %v459
    %v461 = vadd.f32 %v449, %v460
    %s462 = sld [smem:[#allocation2 + $0x1a]]
    %v463 = vstv %s462
    %v464 = vmul.f32 %v424, %v463
    %v466 = vrot.slane %v464, 1
    %v468 = vadd.f32 %v453, %v466
    %s469 = sld [smem:[#allocation2 + $0x1b]]
    %v470 = vstv %s469
    %v471 = vmul.f32 %v424, %v470
    %v473 = vrot.slane %v471, 1
    %v475 = vadd.f32 %v457, %v473
    %s476 = sld [smem:[#allocation2 + $0x1c]]
    %v477 = vstv %s476
    %v478 = vmul.f32 %v424, %v477
    %v480 = vrot.slane %v478, 1
    %v482 = vadd.f32 %v461, %v480
    %s483 = sld [smem:[#allocation2 + $0x1d]]
    %v484 = vstv %s483
    %v485 = vmul.f32 %v436, %v484
    %v487 = vrot.slane %v485, 1
    %v489 = vadd.f32 %v468, %v487
    %s490 = sld [smem:[#allocation2 + $0x1e]]
    %v491 = vstv %s490
    %v492 = vmul.f32 %v436, %v491
    %v494 = vrot.slane %v492, 1
    %v496 = vadd.f32 %v475, %v494
    %s497 = sld [smem:[#allocation2 + $0x1f]]
    %v498 = vstv %s497
    %v499 = vmul.f32 %v436, %v498
    %v501 = vrot.slane %v499, 1
    %v503 = vadd.f32 %v482, %v501
    %s504 = sld [smem:[#allocation2 + $0x20]]
    %v505 = vstv %s504
    %v506 = vmul.f32 %v424, %v505
    %v508 = vrot.slane %v506, 2
    %v510 = vadd.f32 %v489, %v508
    %s511 = sld [smem:[#allocation2 + $0x21]]
    %v512 = vstv %s511
    %v513 = vmul.f32 %v424, %v512
    %v515 = vrot.slane %v513, 2
    %v517 = vadd.f32 %v496, %v515
    %s518 = sld [smem:[#allocation2 + $0x22]]
    %v519 = vstv %s518
    %v520 = vmul.f32 %v424, %v519
    %v522 = vrot.slane %v520, 2
    %v524 = vadd.f32 %v503, %v522
    %s525 = sld [smem:[#allocation2 + $0x23]]
    %v526 = vstv %s525
    %v527 = vmul.f32 %v436, %v526
    %v529 = vrot.slane %v527, 2
    %v531 = vadd.f32 %v510, %v529
    %s532 = sld [smem:[#allocation2 + $0x24]]
    %v533 = vstv %s532
    %v534 = vmul.f32 %v436, %v533
    %v536 = vrot.slane %v534, 2
    %v538 = vadd.f32 %v517, %v536
    %s539 = sld [smem:[#allocation2 + $0x25]]
    %v540 = vstv %s539
    %v541 = vmul.f32 %v436, %v540
    %v543 = vrot.slane %v541, 2
    %v545 = vadd.f32 %v524, %v543
    %s546 = sld [smem:[#allocation2 + $0x26]]
    %v547 = vstv %s546
    %v548 = vmul.f32 %v425, %v547
    %v549 = vadd.f32 %v531, %v548
    %s550 = sld [smem:[#allocation2 + $0x27]]
    %v551 = vstv %s550
    %v552 = vmul.f32 %v425, %v551
    %v553 = vadd.f32 %v538, %v552
    %s554 = sld [smem:[#allocation2 + $0x28]]
    %v555 = vstv %s554
    %v556 = vmul.f32 %v425, %v555
    %v557 = vadd.f32 %v545, %v556
    %s558 = sld [smem:[#allocation2 + $0x29]]
    %v559 = vstv %s558
    %v560 = vmul.f32 %v437, %v559
    %v561 = vadd.f32 %v549, %v560
    %s562 = sld [smem:[#allocation2 + $0x2a]]
    %v563 = vstv %s562
    %v564 = vmul.f32 %v437, %v563
    %v565 = vadd.f32 %v553, %v564
    %s566 = sld [smem:[#allocation2 + $0x2b]]
    %v567 = vstv %s566
    %v568 = vmul.f32 %v437, %v567
    %v569 = vadd.f32 %v557, %v568
    %s570 = sld [smem:[#allocation2 + $0x2c]]
    %v571 = vstv %s570
    %v572 = vmul.f32 %v425, %v571
    %v574 = vrot.slane %v572, 1
    %v576 = vadd.f32 %v561, %v574
    %s577 = sld [smem:[#allocation2 + $0x2d]]
    %v578 = vstv %s577
    %v579 = vmul.f32 %v425, %v578
    %v581 = vrot.slane %v579, 1
    %v583 = vadd.f32 %v565, %v581
    %s584 = sld [smem:[#allocation2 + $0x2e]]
    %v585 = vstv %s584
    %v586 = vmul.f32 %v425, %v585
    %v588 = vrot.slane %v586, 1
    %v590 = vadd.f32 %v569, %v588
    %s591 = sld [smem:[#allocation2 + $0x2f]]
    %v592 = vstv %s591
    %v593 = vmul.f32 %v437, %v592
    %v595 = vrot.slane %v593, 1
    %v597 = vadd.f32 %v576, %v595
    %s598 = sld [smem:[#allocation2 + $0x30]]
    %v599 = vstv %s598
    %v600 = vmul.f32 %v437, %v599
    %v602 = vrot.slane %v600, 1
    %v604 = vadd.f32 %v583, %v602
    %s605 = sld [smem:[#allocation2 + $0x31]]
    %v606 = vstv %s605
    %v607 = vmul.f32 %v437, %v606
    %v609 = vrot.slane %v607, 1
    %v611 = vadd.f32 %v590, %v609
    %s612 = sld [smem:[#allocation2 + $0x32]]
    %v613 = vstv %s612
    %v614 = vmul.f32 %v425, %v613
    %v616 = vrot.slane %v614, 2
    %v618 = vadd.f32 %v597, %v616
    %s619 = sld [smem:[#allocation2 + $0x33]]
    %v620 = vstv %s619
    %v621 = vmul.f32 %v425, %v620
    %v623 = vrot.slane %v621, 2
    %v625 = vadd.f32 %v604, %v623
    %s626 = sld [smem:[#allocation2 + $0x34]]
    %v627 = vstv %s626
    %v628 = vmul.f32 %v425, %v627
    %v630 = vrot.slane %v628, 2
    %v632 = vadd.f32 %v611, %v630
    %s633 = sld [smem:[#allocation2 + $0x35]]
    %v634 = vstv %s633
    %v635 = vmul.f32 %v437, %v634
    %v637 = vrot.slane %v635, 2
    %v639 = vadd.f32 %v618, %v637
    %s640 = sld [smem:[#allocation2 + $0x36]]
    %v641 = vstv %s640
    %v642 = vmul.f32 %v437, %v641
    %v644 = vrot.slane %v642, 2
    %v646 = vadd.f32 %v625, %v644
    %s647 = sld [smem:[#allocation2 + $0x37]]
    %v648 = vstv %s647
    %v649 = vmul.f32 %v437, %v648
    %v651 = vrot.slane %v649, 2
    %v653 = vadd.f32 %v632, %v651
    %s654 = sld [smem:[#allocation2 + $0x38]]
    %v655 = vstv %s654
    %v656 = vmul.f32 %v426, %v655
    %v657 = vadd.f32 %v639, %v656
    %s658 = sld [smem:[#allocation2 + $0x39]]
    %v659 = vstv %s658
    %v660 = vmul.f32 %v426, %v659
    %v661 = vadd.f32 %v646, %v660
    %s662 = sld [smem:[#allocation2 + $0x3a]]
    %v663 = vstv %s662
    %v664 = vmul.f32 %v426, %v663
    %v665 = vadd.f32 %v653, %v664
    %s666 = sld [smem:[#allocation2 + $0x3b]]
    %v667 = vstv %s666
    %v668 = vmul.f32 %v438, %v667
    %v669 = vadd.f32 %v657, %v668
    %s670 = sld [smem:[#allocation2 + $0x3c]]
    %v671 = vstv %s670
    %v672 = vmul.f32 %v438, %v671
    %v673 = vadd.f32 %v661, %v672
    %s674 = sld [smem:[#allocation2 + $0x3d]]
    %v675 = vstv %s674
    %v676 = vmul.f32 %v438, %v675
    %v677 = vadd.f32 %v665, %v676
    %s678 = sld [smem:[#allocation2 + $0x3e]]
    %v679 = vstv %s678
    %v680 = vmul.f32 %v426, %v679
    %v682 = vrot.slane %v680, 1
    %v684 = vadd.f32 %v669, %v682
    %s685 = sld [smem:[#allocation2 + $0x3f]]
    %v686 = vstv %s685
    %v687 = vmul.f32 %v426, %v686
    %v689 = vrot.slane %v687, 1
    %v691 = vadd.f32 %v673, %v689
    %s692 = sld [smem:[#allocation2 + $0x40]]
    %v693 = vstv %s692
    %v694 = vmul.f32 %v426, %v693
    %v696 = vrot.slane %v694, 1
    %v698 = vadd.f32 %v677, %v696
    %s699 = sld [smem:[#allocation2 + $0x41]]
    %v700 = vstv %s699
    %v701 = vmul.f32 %v438, %v700
    %v703 = vrot.slane %v701, 1
    %v705 = vadd.f32 %v684, %v703
    %s706 = sld [smem:[#allocation2 + $0x42]]
    %v707 = vstv %s706
    %v708 = vmul.f32 %v438, %v707
    %v710 = vrot.slane %v708, 1
    %v712 = vadd.f32 %v691, %v710
    %s713 = sld [smem:[#allocation2 + $0x43]]
    %v714 = vstv %s713
    %v715 = vmul.f32 %v438, %v714
    %v717 = vrot.slane %v715, 1
    %v719 = vadd.f32 %v698, %v717
    %s720 = sld [smem:[#allocation2 + $0x44]]
    %v721 = vstv %s720
    %v722 = vmul.f32 %v426, %v721
    %v724 = vrot.slane %v722, 2
    %v726 = vadd.f32 %v705, %v724
    %s727 = sld [smem:[#allocation2 + $0x45]]
    %v728 = vstv %s727
    %v729 = vmul.f32 %v426, %v728
    %v731 = vrot.slane %v729, 2
    %v733 = vadd.f32 %v712, %v731
    %s734 = sld [smem:[#allocation2 + $0x46]]
    %v735 = vstv %s734
    %v736 = vmul.f32 %v426, %v735
    %v738 = vrot.slane %v736, 2
    %v740 = vadd.f32 %v719, %v738
    %s741 = sld [smem:[#allocation2 + $0x47]]
    %v742 = vstv %s741
    %v743 = vmul.f32 %v438, %v742
    %v745 = vrot.slane %v743, 2
    %v747 = vadd.f32 %v726, %v745
    %s748 = sld [smem:[#allocation2 + $0x48]]
    %v749 = vstv %s748
    %v750 = vmul.f32 %v438, %v749
    %v752 = vrot.slane %v750, 2
    %v754 = vadd.f32 %v733, %v752
    %s755 = sld [smem:[#allocation2 + $0x49]]
    %v756 = vstv %s755
    %v757 = vmul.f32 %v438, %v756
    %v759 = vrot.slane %v757, 2
    %v761 = vadd.f32 %v740, %v759
    %s762 = sld [smem:[#allocation2 + $0x4a]]
    %v763 = vstv %s762
    %v764 = vadd.f32 %v747, %v763
    %v765 = vmax.f32 %v764, 0.0
    %s766 = sld [smem:[#allocation2 + $0x4b]]
    %v767 = vstv %s766
    %v768 = vadd.f32 %v754, %v767
    %v769 = vmax.f32 %v768, 0.0
    %s770 = sld [smem:[#allocation2 + $0x4c]]
    %v771 = vstv %s770
    %v772 = vadd.f32 %v761, %v771
    %v773 = vmax.f32 %v772, 0.0
    %v774 = vmul.f32 %v426, %v442
    %v775 = vmul.f32 %v426, %v445
    %v776 = vmul.f32 %v426, %v448
    %v777 = vmul.f32 %v438, %v451
    %v778 = vadd.f32 %v774, %v777
    %v779 = vmul.f32 %v438, %v455
    %v780 = vadd.f32 %v775, %v779
    %v781 = vmul.f32 %v438, %v459
    %v782 = vadd.f32 %v776, %v781
    %v783 = vmul.f32 %v426, %v463
    %v785 = vrot.slane %v783, 1
    %v787 = vadd.f32 %v778, %v785
    %v788 = vmul.f32 %v426, %v470
    %v790 = vrot.slane %v788, 1
    %v792 = vadd.f32 %v780, %v790
    %v793 = vmul.f32 %v426, %v477
    %v795 = vrot.slane %v793, 1
    %v797 = vadd.f32 %v782, %v795
    %v798 = vmul.f32 %v438, %v484
    %v800 = vrot.slane %v798, 1
    %v802 = vadd.f32 %v787, %v800
    %v803 = vmul.f32 %v438, %v491
    %v805 = vrot.slane %v803, 1
    %v807 = vadd.f32 %v792, %v805
    %v808 = vmul.f32 %v438, %v498
    %v810 = vrot.slane %v808, 1
    %v812 = vadd.f32 %v797, %v810
    %v813 = vmul.f32 %v426, %v505
    %v815 = vrot.slane %v813, 2
    %v817 = vadd.f32 %v802, %v815
    %v818 = vmul.f32 %v426, %v512
    %v820 = vrot.slane %v818, 2
    %v822 = vadd.f32 %v807, %v820
    %v823 = vmul.f32 %v426, %v519
    %v825 = vrot.slane %v823, 2
    %v827 = vadd.f32 %v812, %v825
    %v828 = vmul.f32 %v438, %v526
    %v830 = vrot.slane %v828, 2
    %v832 = vadd.f32 %v817, %v830
    %v833 = vmul.f32 %v438, %v533
    %v835 = vrot.slane %v833, 2
    %v837 = vadd.f32 %v822, %v835
    %v838 = vmul.f32 %v438, %v540
    %v840 = vrot.slane %v838, 2
    %v842 = vadd.f32 %v827, %v840
    %v843 = vmul.f32 %v427, %v547
    %v844 = vadd.f32 %v832, %v843
    %v845 = vmul.f32 %v427, %v551
    %v846 = vadd.f32 %v837, %v845
    %v847 = vmul.f32 %v427, %v555
    %v848 = vadd.f32 %v842, %v847
    %v849 = vmul.f32 %v439, %v559
    %v850 = vadd.f32 %v844, %v849
    %v851 = vmul.f32 %v439, %v563
    %v852 = vadd.f32 %v846, %v851
    %v853 = vmul.f32 %v439, %v567
    %v854 = vadd.f32 %v848, %v853
    %v855 = vmul.f32 %v427, %v571
    %v857 = vrot.slane %v855, 1
    %v859 = vadd.f32 %v850, %v857
    %v860 = vmul.f32 %v427, %v578
    %v862 = vrot.slane %v860, 1
    %v864 = vadd.f32 %v852, %v862
    %v865 = vmul.f32 %v427, %v585
    %v867 = vrot.slane %v865, 1
    %v869 = vadd.f32 %v854, %v867
    %v870 = vmul.f32 %v439, %v592
    %v872 = vrot.slane %v870, 1
    %v874 = vadd.f32 %v859, %v872
    %v875 = vmul.f32 %v439, %v599
    %v877 = vrot.slane %v875, 1
    %v879 = vadd.f32 %v864, %v877
    %v880 = vmul.f32 %v439, %v606
    %v882 = vrot.slane %v880, 1
    %v884 = vadd.f32 %v869, %v882
    %v885 = vmul.f32 %v427, %v613
    %v887 = vrot.slane %v885, 2
    %v889 = vadd.f32 %v874, %v887
    %v890 = vmul.f32 %v427, %v620
    %v892 = vrot.slane %v890, 2
    %v894 = vadd.f32 %v879, %v892
    %v895 = vmul.f32 %v427, %v627
    %v897 = vrot.slane %v895, 2
    %v899 = vadd.f32 %v884, %v897
    %v900 = vmul.f32 %v439, %v634
    %v902 = vrot.slane %v900, 2
    %v904 = vadd.f32 %v889, %v902
    %v905 = vmul.f32 %v439, %v641
    %v907 = vrot.slane %v905, 2
    %v909 = vadd.f32 %v894, %v907
    %v910 = vmul.f32 %v439, %v648
    %v912 = vrot.slane %v910, 2
    %v914 = vadd.f32 %v899, %v912
    %v915 = vmul.f32 %v428, %v655
    %v916 = vadd.f32 %v904, %v915
    %v917 = vmul.f32 %v428, %v659
    %v918 = vadd.f32 %v909, %v917
    %v919 = vmul.f32 %v428, %v663
    %v920 = vadd.f32 %v914, %v919
    %v921 = vmul.f32 %v440, %v667
    %v922 = vadd.f32 %v916, %v921
    %v923 = vmul.f32 %v440, %v671
    %v924 = vadd.f32 %v918, %v923
    %v925 = vmul.f32 %v440, %v675
    %v926 = vadd.f32 %v920, %v925
    %v927 = vmul.f32 %v428, %v679
    %v929 = vrot.slane %v927, 1
    %v931 = vadd.f32 %v922, %v929
    %v932 = vmul.f32 %v428, %v686
    %v934 = vrot.slane %v932, 1
    %v936 = vadd.f32 %v924, %v934
    %v937 = vmul.f32 %v428, %v693
    %v939 = vrot.slane %v937, 1
    %v941 = vadd.f32 %v926, %v939
    %v942 = vmul.f32 %v440, %v700
    %v944 = vrot.slane %v942, 1
    %v946 = vadd.f32 %v931, %v944
    %v947 = vmul.f32 %v440, %v707
    %v949 = vrot.slane %v947, 1
    %v951 = vadd.f32 %v936, %v949
    %v952 = vmul.f32 %v440, %v714
    %v954 = vrot.slane %v952, 1
    %v956 = vadd.f32 %v941, %v954
    %v957 = vmul.f32 %v428, %v721
    %v959 = vrot.slane %v957, 2
    %v961 = vadd.f32 %v946, %v959
    %v962 = vmul.f32 %v428, %v728
    %v964 = vrot.slane %v962, 2
    %v966 = vadd.f32 %v951, %v964
    %v967 = vmul.f32 %v428, %v735
    %v969 = vrot.slane %v967, 2
    %v971 = vadd.f32 %v956, %v969
    %v972 = vmul.f32 %v440, %v742
    %v974 = vrot.slane %v972, 2
    %v976 = vadd.f32 %v961, %v974
    %v977 = vmul.f32 %v440, %v749
    %v979 = vrot.slane %v977, 2
    %v981 = vadd.f32 %v966, %v979
    %v982 = vmul.f32 %v440, %v756
    %v984 = vrot.slane %v982, 2
    %v986 = vadd.f32 %v971, %v984
    %v987 = vadd.f32 %v976, %v763
    %v988 = vmax.f32 %v987, 0.0
    %v989 = vadd.f32 %v981, %v767
    %v990 = vmax.f32 %v989, 0.0
    %v991 = vadd.f32 %v986, %v771
    %v992 = vmax.f32 %v991, 0.0
    %s993 = sld [smem:[#allocation2 + $0x4d]]
    %v994 = vstv %s993
    %v995 = vmul.f32 %v765, %v994
    %s996 = sld [smem:[#allocation2 + $0x5d]]
    %v997 = vstv %s996
    %v998 = vmul.f32 %v769, %v997
    %v999 = vadd.f32 %v995, %v998
    %s1000 = sld [smem:[#allocation2 + $0x6d]]
    %v1001 = vstv %s1000
    %v1002 = vmul.f32 %v773, %v1001
    %v1003 = vadd.f32 %v999, %v1002
    %s1004 = sld [smem:[#allocation2 + $0x7d]]
    %v1005 = vstv %s1004
    %v1006 = vmul.f32 %v765, %v1005
    %v1008 = vrot.slane %v1006, 2
    %v1010 = vadd.f32 %v1003, %v1008
    %s1011 = sld [smem:[#allocation2 + $0x8d]]
    %v1012 = vstv %s1011
    %v1013 = vmul.f32 %v769, %v1012
    %v1015 = vrot.slane %v1013, 2
    %v1017 = vadd.f32 %v1010, %v1015
    %s1018 = sld [smem:[#allocation2 + $0x9d]]
    %v1019 = vstv %s1018
    %v1020 = vmul.f32 %v773, %v1019
    %v1022 = vrot.slane %v1020, 2
    %v1024 = vadd.f32 %v1017, %v1022
    %s1025 = sld [smem:[#allocation2 + $0xad]]
    %v1026 = vstv %s1025
    %v1027 = vmul.f32 %v988, %v1026
    %v1028 = vadd.f32 %v1024, %v1027
    %s1029 = sld [smem:[#allocation2 + $0xbd]]
    %v1030 = vstv %s1029
    %v1031 = vmul.f32 %v990, %v1030
    %v1032 = vadd.f32 %v1028, %v1031
    %s1033 = sld [smem:[#allocation2 + $0xcd]]
    %v1034 = vstv %s1033
    %v1035 = vmul.f32 %v992, %v1034
    %v1036 = vadd.f32 %v1032, %v1035
    %s1037 = sld [smem:[#allocation2 + $0xdd]]
    %v1038 = vstv %s1037
    %v1039 = vmul.f32 %v988, %v1038
    %v1041 = vrot.slane %v1039, 2
    %v1043 = vadd.f32 %v1036, %v1041
    %s1044 = sld [smem:[#allocation2 + $0xed]]
    %v1045 = vstv %s1044
    %v1046 = vmul.f32 %v990, %v1045
    %v1048 = vrot.slane %v1046, 2
    %v1050 = vadd.f32 %v1043, %v1048
    %s1051 = sld [smem:[#allocation2 + $0xfd]]
    %v1052 = vstv %s1051
    %v1053 = vmul.f32 %v992, %v1052
    %v1055 = vrot.slane %v1053, 2
    %v1057 = vadd.f32 %v1050, %v1055
    %s1058 = sld [smem:[#allocation2 + $0x10d]]
    %v1059 = vstv %s1058
    %v1060 = vadd.f32 %v1057, %v1059
    %v1061 = vmax.f32 %v1060, 0.0
    %s1062 = sld [smem:[#allocation2 + $0x4e]]
    %v1063 = vstv %s1062
    %v1064 = vmul.f32 %v765, %v1063
    %s1065 = sld [smem:[#allocation2 + $0x5e]]
    %v1066 = vstv %s1065
    %v1067 = vmul.f32 %v769, %v1066
    %v1068 = vadd.f32 %v1064, %v1067
    %s1069 = sld [smem:[#allocation2 + $0x6e]]
    %v1070 = vstv %s1069
    %v1071 = vmul.f32 %v773, %v1070
    %v1072 = vadd.f32 %v1068, %v1071
    %s1073 = sld [smem:[#allocation2 + $0x7e]]
    %v1074 = vstv %s1073
    %v1075 = vmul.f32 %v765, %v1074
    %v1077 = vrot.slane %v1075, 2
    %v1079 = vadd.f32 %v1072, %v1077
    %s1080 = sld [smem:[#allocation2 + $0x8e]]
    %v1081 = vstv %s1080
    %v1082 = vmul.f32 %v769, %v1081
    %v1084 = vrot.slane %v1082, 2
    %v1086 = vadd.f32 %v1079, %v1084
    %s1087 = sld [smem:[#allocation2 + $0x9e]]
    %v1088 = vstv %s1087
    %v1089 = vmul.f32 %v773, %v1088
    %v1091 = vrot.slane %v1089, 2
    %v1093 = vadd.f32 %v1086, %v1091
    %s1094 = sld [smem:[#allocation2 + $0xae]]
    %v1095 = vstv %s1094
    %v1096 = vmul.f32 %v988, %v1095
    %v1097 = vadd.f32 %v1093, %v1096
    %s1098 = sld [smem:[#allocation2 + $0xbe]]
    %v1099 = vstv %s1098
    %v1100 = vmul.f32 %v990, %v1099
    %v1101 = vadd.f32 %v1097, %v1100
    %s1102 = sld [smem:[#allocation2 + $0xce]]
    %v1103 = vstv %s1102
    %v1104 = vmul.f32 %v992, %v1103
    %v1105 = vadd.f32 %v1101, %v1104
    %s1106 = sld [smem:[#allocation2 + $0xde]]
    %v1107 = vstv %s1106
    %v1108 = vmul.f32 %v988, %v1107
    %v1110 = vrot.slane %v1108, 2
    %v1112 = vadd.f32 %v1105, %v1110
    %s1113 = sld [smem:[#allocation2 + $0xee]]
    %v1114 = vstv %s1113
    %v1115 = vmul.f32 %v990, %v1114
    %v1117 = vrot.slane %v1115, 2
    %v1119 = vadd.f32 %v1112, %v1117
    %s1120 = sld [smem:[#allocation2 + $0xfe]]
    %v1121 = vstv %s1120
    %v1122 = vmul.f32 %v992, %v1121
    %v1124 = vrot.slane %v1122, 2
    %v1126 = vadd.f32 %v1119, %v1124
    %s1127 = sld [smem:[#allocation2 + $0x10e]]
    %v1128 = vstv %s1127
    %v1129 = vadd.f32 %v1126, %v1128
    %v1130 = vmax.f32 %v1129, 0.0
    %s1131 = sld [smem:[#allocation2 + $0x4f]]
    %v1132 = vstv %s1131
    %v1133 = vmul.f32 %v765, %v1132
    %s1134 = sld [smem:[#allocation2 + $0x5f]]
    %v1135 = vstv %s1134
    %v1136 = vmul.f32 %v769, %v1135
    %v1137 = vadd.f32 %v1133, %v1136
    %s1138 = sld [smem:[#allocation2 + $0x6f]]
    %v1139 = vstv %s1138
    %v1140 = vmul.f32 %v773, %v1139
    %v1141 = vadd.f32 %v1137, %v1140
    %s1142 = sld [smem:[#allocation2 + $0x7f]]
    %v1143 = vstv %s1142
    %v1144 = vmul.f32 %v765, %v1143
    %v1146 = vrot.slane %v1144, 2
    %v1148 = vadd.f32 %v1141, %v1146
    %s1149 = sld [smem:[#allocation2 + $0x8f]]
    %v1150 = vstv %s1149
    %v1151 = vmul.f32 %v769, %v1150
    %v1153 = vrot.slane %v1151, 2
    %v1155 = vadd.f32 %v1148, %v1153
    %s1156 = sld [smem:[#allocation2 + $0x9f]]
    %v1157 = vstv %s1156
    %v1158 = vmul.f32 %v773, %v1157
    %v1160 = vrot.slane %v1158, 2
    %v1162 = vadd.f32 %v1155, %v1160
    %s1163 = sld [smem:[#allocation2 + $0xaf]]
    %v1164 = vstv %s1163
    %v1165 = vmul.f32 %v988, %v1164
    %v1166 = vadd.f32 %v1162, %v1165
    %s1167 = sld [smem:[#allocation2 + $0xbf]]
    %v1168 = vstv %s1167
    %v1169 = vmul.f32 %v990, %v1168
    %v1170 = vadd.f32 %v1166, %v1169
    %s1171 = sld [smem:[#allocation2 + $0xcf]]
    %v1172 = vstv %s1171
    %v1173 = vmul.f32 %v992, %v1172
    %v1174 = vadd.f32 %v1170, %v1173
    %s1175 = sld [smem:[#allocation2 + $0xdf]]
    %v1176 = vstv %s1175
    %v1177 = vmul.f32 %v988, %v1176
    %v1179 = vrot.slane %v1177, 2
    %v1181 = vadd.f32 %v1174, %v1179
    %s1182 = sld [smem:[#allocation2 + $0xef]]
    %v1183 = vstv %s1182
    %v1184 = vmul.f32 %v990, %v1183
    %v1186 = vrot.slane %v1184, 2
    %v1188 = vadd.f32 %v1181, %v1186
    %s1189 = sld [smem:[#allocation2 + $0xff]]
    %v1190 = vstv %s1189
    %v1191 = vmul.f32 %v992, %v1190
    %v1193 = vrot.slane %v1191, 2
    %v1195 = vadd.f32 %v1188, %v1193
    %s1196 = sld [smem:[#allocation2 + $0x10f]]
    %v1197 = vstv %s1196
    %v1198 = vadd.f32 %v1195, %v1197
    %v1199 = vmax.f32 %v1198, 0.0
    %s1200 = sld [smem:[#allocation2 + $0x50]]
    %v1201 = vstv %s1200
    %v1202 = vmul.f32 %v765, %v1201
    %s1203 = sld [smem:[#allocation2 + $0x60]]
    %v1204 = vstv %s1203
    %v1205 = vmul.f32 %v769, %v1204
    %v1206 = vadd.f32 %v1202, %v1205
    %s1207 = sld [smem:[#allocation2 + $0x70]]
    %v1208 = vstv %s1207
    %v1209 = vmul.f32 %v773, %v1208
    %v1210 = vadd.f32 %v1206, %v1209
    %s1211 = sld [smem:[#allocation2 + $0x80]]
    %v1212 = vstv %s1211
    %v1213 = vmul.f32 %v765, %v1212
    %v1215 = vrot.slane %v1213, 2
    %v1217 = vadd.f32 %v1210, %v1215
    %s1218 = sld [smem:[#allocation2 + $0x90]]
    %v1219 = vstv %s1218
    %v1220 = vmul.f32 %v769, %v1219
    %v1222 = vrot.slane %v1220, 2
    %v1224 = vadd.f32 %v1217, %v1222
    %s1225 = sld [smem:[#allocation2 + $0xa0]]
    %v1226 = vstv %s1225
    %v1227 = vmul.f32 %v773, %v1226
    %v1229 = vrot.slane %v1227, 2
    %v1231 = vadd.f32 %v1224, %v1229
    %s1232 = sld [smem:[#allocation2 + $0xb0]]
    %v1233 = vstv %s1232
    %v1234 = vmul.f32 %v988, %v1233
    %v1235 = vadd.f32 %v1231, %v1234
    %s1236 = sld [smem:[#allocation2 + $0xc0]]
    %v1237 = vstv %s1236
    %v1238 = vmul.f32 %v990, %v1237
    %v1239 = vadd.f32 %v1235, %v1238
    %s1240 = sld [smem:[#allocation2 + $0xd0]]
    %v1241 = vstv %s1240
    %v1242 = vmul.f32 %v992, %v1241
    %v1243 = vadd.f32 %v1239, %v1242
    %s1244 = sld [smem:[#allocation2 + $0xe0]]
    %v1245 = vstv %s1244
    %v1246 = vmul.f32 %v988, %v1245
    %v1248 = vrot.slane %v1246, 2
    %v1250 = vadd.f32 %v1243, %v1248
    %s1251 = sld [smem:[#allocation2 + $0xf0]]
    %v1252 = vstv %s1251
    %v1253 = vmul.f32 %v990, %v1252
    %v1255 = vrot.slane %v1253, 2
    %v1257 = vadd.f32 %v1250, %v1255
    %s1258 = sld [smem:[#allocation2 + $0x100]]
    %v1259 = vstv %s1258
    %v1260 = vmul.f32 %v992, %v1259
    %v1262 = vrot.slane %v1260, 2
    %v1264 = vadd.f32 %v1257, %v1262
    %s1265 = sld [smem:[#allocation2 + $0x110]]
    %v1266 = vstv %s1265
    %v1267 = vadd.f32 %v1264, %v1266
    %v1268 = vmax.f32 %v1267, 0.0
    %s1269 = sld [smem:[#allocation2 + $0x51]]
    %v1270 = vstv %s1269
    %v1271 = vmul.f32 %v765, %v1270
    %s1272 = sld [smem:[#allocation2 + $0x61]]
    %v1273 = vstv %s1272
    %v1274 = vmul.f32 %v769, %v1273
    %v1275 = vadd.f32 %v1271, %v1274
    %s1276 = sld [smem:[#allocation2 + $0x71]]
    %v1277 = vstv %s1276
    %v1278 = vmul.f32 %v773, %v1277
    %v1279 = vadd.f32 %v1275, %v1278
    %s1280 = sld [smem:[#allocation2 + $0x81]]
    %v1281 = vstv %s1280
    %v1282 = vmul.f32 %v765, %v1281
    %v1284 = vrot.slane %v1282, 2
    %v1286 = vadd.f32 %v1279, %v1284
    %s1287 = sld [smem:[#allocation2 + $0x91]]
    %v1288 = vstv %s1287
    %v1289 = vmul.f32 %v769, %v1288
    %v1291 = vrot.slane %v1289, 2
    %v1293 = vadd.f32 %v1286, %v1291
    %s1294 = sld [smem:[#allocation2 + $0xa1]]
    %v1295 = vstv %s1294
    %v1296 = vmul.f32 %v773, %v1295
    %v1298 = vrot.slane %v1296, 2
    %v1300 = vadd.f32 %v1293, %v1298
    %s1301 = sld [smem:[#allocation2 + $0xb1]]
    %v1302 = vstv %s1301
    %v1303 = vmul.f32 %v988, %v1302
    %v1304 = vadd.f32 %v1300, %v1303
    %s1305 = sld [smem:[#allocation2 + $0xc1]]
    %v1306 = vstv %s1305
    %v1307 = vmul.f32 %v990, %v1306
    %v1308 = vadd.f32 %v1304, %v1307
    %s1309 = sld [smem:[#allocation2 + $0xd1]]
    %v1310 = vstv %s1309
    %v1311 = vmul.f32 %v992, %v1310
    %v1312 = vadd.f32 %v1308, %v1311
    %s1313 = sld [smem:[#allocation2 + $0xe1]]
    %v1314 = vstv %s1313
    %v1315 = vmul.f32 %v988, %v1314
    %v1317 = vrot.slane %v1315, 2
    %v1319 = vadd.f32 %v1312, %v1317
    %s1320 = sld [smem:[#allocation2 + $0xf1]]
    %v1321 = vstv %s1320
    %v1322 = vmul.f32 %v990, %v1321
    %v1324 = vrot.slane %v1322, 2
    %v1326 = vadd.f32 %v1319, %v1324
    %s1327 = sld [smem:[#allocation2 + $0x101]]
    %v1328 = vstv %s1327
    %v1329 = vmul.f32 %v992, %v1328
    %v1331 = vrot.slane %v1329, 2
    %v1333 = vadd.f32 %v1326, %v1331
    %s1334 = sld [smem:[#allocation2 + $0x111]]
    %v1335 = vstv %s1334
    %v1336 = vadd.f32 %v1333, %v1335
    %v1337 = vmax.f32 %v1336, 0.0
    %s1338 = sld [smem:[#allocation2 + $0x52]]
    %v1339 = vstv %s1338
    %v1340 = vmul.f32 %v765, %v1339
    %s1341 = sld [smem:[#allocation2 + $0x62]]
    %v1342 = vstv %s1341
    %v1343 = vmul.f32 %v769, %v1342
    %v1344 = vadd.f32 %v1340, %v1343
    %s1345 = sld [smem:[#allocation2 + $0x72]]
    %v1346 = vstv %s1345
    %v1347 = vmul.f32 %v773, %v1346
    %v1348 = vadd.f32 %v1344, %v1347
    %s1349 = sld [smem:[#allocation2 + $0x82]]
    %v1350 = vstv %s1349
    %v1351 = vmul.f32 %v765, %v1350
    %v1353 = vrot.slane %v1351, 2
    %v1355 = vadd.f32 %v1348, %v1353
    %s1356 = sld [smem:[#allocation2 + $0x92]]
    %v1357 = vstv %s1356
    %v1358 = vmul.f32 %v769, %v1357
    %v1360 = vrot.slane %v1358, 2
    %v1362 = vadd.f32 %v1355, %v1360
    %s1363 = sld [smem:[#allocation2 + $0xa2]]
    %v1364 = vstv %s1363
    %v1365 = vmul.f32 %v773, %v1364
    %v1367 = vrot.slane %v1365, 2
    %v1369 = vadd.f32 %v1362, %v1367
    %s1370 = sld [smem:[#allocation2 + $0xb2]]
    %v1371 = vstv %s1370
    %v1372 = vmul.f32 %v988, %v1371
    %v1373 = vadd.f32 %v1369, %v1372
    %s1374 = sld [smem:[#allocation2 + $0xc2]]
    %v1375 = vstv %s1374
    %v1376 = vmul.f32 %v990, %v1375
    %v1377 = vadd.f32 %v1373, %v1376
    %s1378 = sld [smem:[#allocation2 + $0xd2]]
    %v1379 = vstv %s1378
    %v1380 = vmul.f32 %v992, %v1379
    %v1381 = vadd.f32 %v1377, %v1380
    %s1382 = sld [smem:[#allocation2 + $0xe2]]
    %v1383 = vstv %s1382
    %v1384 = vmul.f32 %v988, %v1383
    %v1386 = vrot.slane %v1384, 2
    %v1388 = vadd.f32 %v1381, %v1386
    %s1389 = sld [smem:[#allocation2 + $0xf2]]
    %v1390 = vstv %s1389
    %v1391 = vmul.f32 %v990, %v1390
    %v1393 = vrot.slane %v1391, 2
    %v1395 = vadd.f32 %v1388, %v1393
    %s1396 = sld [smem:[#allocation2 + $0x102]]
    %v1397 = vstv %s1396
    %v1398 = vmul.f32 %v992, %v1397
    %v1400 = vrot.slane %v1398, 2
    %v1402 = vadd.f32 %v1395, %v1400
    %s1403 = sld [smem:[#allocation2 + $0x112]]
    %v1404 = vstv %s1403
    %v1405 = vadd.f32 %v1402, %v1404
    %v1406 = vmax.f32 %v1405, 0.0
    %s1407 = sld [smem:[#allocation2 + $0x53]]
    %v1408 = vstv %s1407
    %v1409 = vmul.f32 %v765, %v1408
    %s1410 = sld [smem:[#allocation2 + $0x63]]
    %v1411 = vstv %s1410
    %v1412 = vmul.f32 %v769, %v1411
    %v1413 = vadd.f32 %v1409, %v1412
    %s1414 = sld [smem:[#allocation2 + $0x73]]
    %v1415 = vstv %s1414
    %v1416 = vmul.f32 %v773, %v1415
    %v1417 = vadd.f32 %v1413, %v1416
    %s1418 = sld [smem:[#allocation2 + $0x83]]
    %v1419 = vstv %s1418
    %v1420 = vmul.f32 %v765, %v1419
    %v1422 = vrot.slane %v1420, 2
    %v1424 = vadd.f32 %v1417, %v1422
    %s1425 = sld [smem:[#allocation2 + $0x93]]
    %v1426 = vstv %s1425
    %v1427 = vmul.f32 %v769, %v1426
    %v1429 = vrot.slane %v1427, 2
    %v1431 = vadd.f32 %v1424, %v1429
    %s1432 = sld [smem:[#allocation2 + $0xa3]]
    %v1433 = vstv %s1432
    %v1434 = vmul.f32 %v773, %v1433
    %v1436 = vrot.slane %v1434, 2
    %v1438 = vadd.f32 %v1431, %v1436
    %s1439 = sld [smem:[#allocation2 + $0xb3]]
    %v1440 = vstv %s1439
    %v1441 = vmul.f32 %v988, %v1440
    %v1442 = vadd.f32 %v1438, %v1441
    %s1443 = sld [smem:[#allocation2 + $0xc3]]
    %v1444 = vstv %s1443
    %v1445 = vmul.f32 %v990, %v1444
    %v1446 = vadd.f32 %v1442, %v1445
    %s1447 = sld [smem:[#allocation2 + $0xd3]]
    %v1448 = vstv %s1447
    %v1449 = vmul.f32 %v992, %v1448
    %v1450 = vadd.f32 %v1446, %v1449
    %s1451 = sld [smem:[#allocation2 + $0xe3]]
    %v1452 = vstv %s1451
    %v1453 = vmul.f32 %v988, %v1452
    %v1455 = vrot.slane %v1453, 2
    %v1457 = vadd.f32 %v1450, %v1455
    %s1458 = sld [smem:[#allocation2 + $0xf3]]
    %v1459 = vstv %s1458
    %v1460 = vmul.f32 %v990, %v1459
    %v1462 = vrot.slane %v1460, 2
    %v1464 = vadd.f32 %v1457, %v1462
    %s1465 = sld [smem:[#allocation2 + $0x103]]
    %v1466 = vstv %s1465
    %v1467 = vmul.f32 %v992, %v1466
    %v1469 = vrot.slane %v1467, 2
    %v1471 = vadd.f32 %v1464, %v1469
    %s1472 = sld [smem:[#allocation2 + $0x113]]
    %v1473 = vstv %s1472
    %v1474 = vadd.f32 %v1471, %v1473
    %v1475 = vmax.f32 %v1474, 0.0
    %s1476 = sld [smem:[#allocation2 + $0x54]]
    %v1477 = vstv %s1476
    %v1478 = vmul.f32 %v765, %v1477
    %s1479 = sld [smem:[#allocation2 + $0x64]]
    %v1480 = vstv %s1479
    %v1481 = vmul.f32 %v769, %v1480
    %v1482 = vadd.f32 %v1478, %v1481
    %s1483 = sld [smem:[#allocation2 + $0x74]]
    %v1484 = vstv %s1483
    %v1485 = vmul.f32 %v773, %v1484
    %v1486 = vadd.f32 %v1482, %v1485
    %s1487 = sld [smem:[#allocation2 + $0x84]]
    %v1488 = vstv %s1487
    %v1489 = vmul.f32 %v765, %v1488
    %v1491 = vrot.slane %v1489, 2
    %v1493 = vadd.f32 %v1486, %v1491
    %s1494 = sld [smem:[#allocation2 + $0x94]]
    %v1495 = vstv %s1494
    %v1496 = vmul.f32 %v769, %v1495
    %v1498 = vrot.slane %v1496, 2
    %v1500 = vadd.f32 %v1493, %v1498
    %s1501 = sld [smem:[#allocation2 + $0xa4]]
    %v1502 = vstv %s1501
    %v1503 = vmul.f32 %v773, %v1502
    %v1505 = vrot.slane %v1503, 2
    %v1507 = vadd.f32 %v1500, %v1505
    %s1508 = sld [smem:[#allocation2 + $0xb4]]
    %v1509 = vstv %s1508
    %v1510 = vmul.f32 %v988, %v1509
    %v1511 = vadd.f32 %v1507, %v1510
    %s1512 = sld [smem:[#allocation2 + $0xc4]]
    %v1513 = vstv %s1512
    %v1514 = vmul.f32 %v990, %v1513
    %v1515 = vadd.f32 %v1511, %v1514
    %s1516 = sld [smem:[#allocation2 + $0xd4]]
    %v1517 = vstv %s1516
    %v1518 = vmul.f32 %v992, %v1517
    %v1519 = vadd.f32 %v1515, %v1518
    %s1520 = sld [smem:[#allocation2 + $0xe4]]
    %v1521 = vstv %s1520
    %v1522 = vmul.f32 %v988, %v1521
    %v1524 = vrot.slane %v1522, 2
    %v1526 = vadd.f32 %v1519, %v1524
    %s1527 = sld [smem:[#allocation2 + $0xf4]]
    %v1528 = vstv %s1527
    %v1529 = vmul.f32 %v990, %v1528
    %v1531 = vrot.slane %v1529, 2
    %v1533 = vadd.f32 %v1526, %v1531
    %s1534 = sld [smem:[#allocation2 + $0x104]]
    %v1535 = vstv %s1534
    %v1536 = vmul.f32 %v992, %v1535
    %v1538 = vrot.slane %v1536, 2
    %v1540 = vadd.f32 %v1533, %v1538
    %s1541 = sld [smem:[#allocation2 + $0x114]]
    %v1542 = vstv %s1541
    %v1543 = vadd.f32 %v1540, %v1542
    %v1544 = vmax.f32 %v1543, 0.0
    %s1545 = sld [smem:[#allocation2 + $0x55]]
    %v1546 = vstv %s1545
    %v1547 = vmul.f32 %v765, %v1546
    %s1548 = sld [smem:[#allocation2 + $0x65]]
    %v1549 = vstv %s1548
    %v1550 = vmul.f32 %v769, %v1549
    %v1551 = vadd.f32 %v1547, %v1550
    %s1552 = sld [smem:[#allocation2 + $0x75]]
    %v1553 = vstv %s1552
    %v1554 = vmul.f32 %v773, %v1553
    %v1555 = vadd.f32 %v1551, %v1554
    %s1556 = sld [smem:[#allocation2 + $0x85]]
    %v1557 = vstv %s1556
    %v1558 = vmul.f32 %v765, %v1557
    %v1560 = vrot.slane %v1558, 2
    %v1562 = vadd.f32 %v1555, %v1560
    %s1563 = sld [smem:[#allocation2 + $0x95]]
    %v1564 = vstv %s1563
    %v1565 = vmul.f32 %v769, %v1564
    %v1567 = vrot.slane %v1565, 2
    %v1569 = vadd.f32 %v1562, %v1567
    %s1570 = sld [smem:[#allocation2 + $0xa5]]
    %v1571 = vstv %s1570
    %v1572 = vmul.f32 %v773, %v1571
    %v1574 = vrot.slane %v1572, 2
    %v1576 = vadd.f32 %v1569, %v1574
    %s1577 = sld [smem:[#allocation2 + $0xb5]]
    %v1578 = vstv %s1577
    %v1579 = vmul.f32 %v988, %v1578
    %v1580 = vadd.f32 %v1576, %v1579
    %s1581 = sld [smem:[#allocation2 + $0xc5]]
    %v1582 = vstv %s1581
    %v1583 = vmul.f32 %v990, %v1582
    %v1584 = vadd.f32 %v1580, %v1583
    %s1585 = sld [smem:[#allocation2 + $0xd5]]
    %v1586 = vstv %s1585
    %v1587 = vmul.f32 %v992, %v1586
    %v1588 = vadd.f32 %v1584, %v1587
    %s1589 = sld [smem:[#allocation2 + $0xe5]]
    %v1590 = vstv %s1589
    %v1591 = vmul.f32 %v988, %v1590
    %v1593 = vrot.slane %v1591, 2
    %v1595 = vadd.f32 %v1588, %v1593
    %s1596 = sld [smem:[#allocation2 + $0xf5]]
    %v1597 = vstv %s1596
    %v1598 = vmul.f32 %v990, %v1597
    %v1600 = vrot.slane %v1598, 2
    %v1602 = vadd.f32 %v1595, %v1600
    %s1603 = sld [smem:[#allocation2 + $0x105]]
    %v1604 = vstv %s1603
    %v1605 = vmul.f32 %v992, %v1604
    %v1607 = vrot.slane %v1605, 2
    %v1609 = vadd.f32 %v1602, %v1607
    %s1610 = sld [smem:[#allocation2 + $0x115]]
    %v1611 = vstv %s1610
    %v1612 = vadd.f32 %v1609, %v1611
    %v1613 = vmax.f32 %v1612, 0.0
    %s1614 = sld [smem:[#allocation2 + $0x56]]
    %v1615 = vstv %s1614
    %v1616 = vmul.f32 %v765, %v1615
    %s1617 = sld [smem:[#allocation2 + $0x66]]
    %v1618 = vstv %s1617
    %v1619 = vmul.f32 %v769, %v1618
    %v1620 = vadd.f32 %v1616, %v1619
    %s1621 = sld [smem:[#allocation2 + $0x76]]
    %v1622 = vstv %s1621
    %v1623 = vmul.f32 %v773, %v1622
    %v1624 = vadd.f32 %v1620, %v1623
    %s1625 = sld [smem:[#allocation2 + $0x86]]
    %v1626 = vstv %s1625
    %v1627 = vmul.f32 %v765, %v1626
    %v1629 = vrot.slane %v1627, 2
    %v1631 = vadd.f32 %v1624, %v1629
    %s1632 = sld [smem:[#allocation2 + $0x96]]
    %v1633 = vstv %s1632
    %v1634 = vmul.f32 %v769, %v1633
    %v1636 = vrot.slane %v1634, 2
    %v1638 = vadd.f32 %v1631, %v1636
    %s1639 = sld [smem:[#allocation2 + $0xa6]]
    %v1640 = vstv %s1639
    %v1641 = vmul.f32 %v773, %v1640
    %v1643 = vrot.slane %v1641, 2
    %v1645 = vadd.f32 %v1638, %v1643
    %s1646 = sld [smem:[#allocation2 + $0xb6]]
    %v1647 = vstv %s1646
    %v1648 = vmul.f32 %v988, %v1647
    %v1649 = vadd.f32 %v1645, %v1648
    %s1650 = sld [smem:[#allocation2 + $0xc6]]
    %v1651 = vstv %s1650
    %v1652 = vmul.f32 %v990, %v1651
    %v1653 = vadd.f32 %v1649, %v1652
    %s1654 = sld [smem:[#allocation2 + $0xd6]]
    %v1655 = vstv %s1654
    %v1656 = vmul.f32 %v992, %v1655
    %v1657 = vadd.f32 %v1653, %v1656
    %s1658 = sld [smem:[#allocation2 + $0xe6]]
    %v1659 = vstv %s1658
    %v1660 = vmul.f32 %v988, %v1659
    %v1662 = vrot.slane %v1660, 2
    %v1664 = vadd.f32 %v1657, %v1662
    %s1665 = sld [smem:[#allocation2 + $0xf6]]
    %v1666 = vstv %s1665
    %v1667 = vmul.f32 %v990, %v1666
    %v1669 = vrot.slane %v1667, 2
    %v1671 = vadd.f32 %v1664, %v1669
    %s1672 = sld [smem:[#allocation2 + $0x106]]
    %v1673 = vstv %s1672
    %v1674 = vmul.f32 %v992, %v1673
    %v1676 = vrot.slane %v1674, 2
    %v1678 = vadd.f32 %v1671, %v1676
    %s1679 = sld [smem:[#allocation2 + $0x116]]
    %v1680 = vstv %s1679
    %v1681 = vadd.f32 %v1678, %v1680
    %v1682 = vmax.f32 %v1681, 0.0
    %s1683 = sld [smem:[#allocation2 + $0x57]]
    %v1684 = vstv %s1683
    %v1685 = vmul.f32 %v765, %v1684
    %s1686 = sld [smem:[#allocation2 + $0x67]]
    %v1687 = vstv %s1686
    %v1688 = vmul.f32 %v769, %v1687
    %v1689 = vadd.f32 %v1685, %v1688
    %s1690 = sld [smem:[#allocation2 + $0x77]]
    %v1691 = vstv %s1690
    %v1692 = vmul.f32 %v773, %v1691
    %v1693 = vadd.f32 %v1689, %v1692
    %s1694 = sld [smem:[#allocation2 + $0x87]]
    %v1695 = vstv %s1694
    %v1696 = vmul.f32 %v765, %v1695
    %v1698 = vrot.slane %v1696, 2
    %v1700 = vadd.f32 %v1693, %v1698
    %s1701 = sld [smem:[#allocation2 + $0x97]]
    %v1702 = vstv %s1701
    %v1703 = vmul.f32 %v769, %v1702
    %v1705 = vrot.slane %v1703, 2
    %v1707 = vadd.f32 %v1700, %v1705
    %s1708 = sld [smem:[#allocation2 + $0xa7]]
    %v1709 = vstv %s1708
    %v1710 = vmul.f32 %v773, %v1709
    %v1712 = vrot.slane %v1710, 2
    %v1714 = vadd.f32 %v1707, %v1712
    %s1715 = sld [smem:[#allocation2 + $0xb7]]
    %v1716 = vstv %s1715
    %v1717 = vmul.f32 %v988, %v1716
    %v1718 = vadd.f32 %v1714, %v1717
    %s1719 = sld [smem:[#allocation2 + $0xc7]]
    %v1720 = vstv %s1719
    %v1721 = vmul.f32 %v990, %v1720
    %v1722 = vadd.f32 %v1718, %v1721
    %s1723 = sld [smem:[#allocation2 + $0xd7]]
    %v1724 = vstv %s1723
    %v1725 = vmul.f32 %v992, %v1724
    %v1726 = vadd.f32 %v1722, %v1725
    %s1727 = sld [smem:[#allocation2 + $0xe7]]
    %v1728 = vstv %s1727
    %v1729 = vmul.f32 %v988, %v1728
    %v1731 = vrot.slane %v1729, 2
    %v1733 = vadd.f32 %v1726, %v1731
    %s1734 = sld [smem:[#allocation2 + $0xf7]]
    %v1735 = vstv %s1734
    %v1736 = vmul.f32 %v990, %v1735
    %v1738 = vrot.slane %v1736, 2
    %v1740 = vadd.f32 %v1733, %v1738
    %s1741 = sld [smem:[#allocation2 + $0x107]]
    %v1742 = vstv %s1741
    %v1743 = vmul.f32 %v992, %v1742
    %v1745 = vrot.slane %v1743, 2
    %v1747 = vadd.f32 %v1740, %v1745
    %s1748 = sld [smem:[#allocation2 + $0x117]]
    %v1749 = vstv %s1748
    %v1750 = vadd.f32 %v1747, %v1749
    %v1751 = vmax.f32 %v1750, 0.0
    %s1752 = sld [smem:[#allocation2 + $0x58]]
    %v1753 = vstv %s1752
    %v1754 = vmul.f32 %v765, %v1753
    %s1755 = sld [smem:[#allocation2 + $0x68]]
    %v1756 = vstv %s1755
    %v1757 = vmul.f32 %v769, %v1756
    %v1758 = vadd.f32 %v1754, %v1757
    %s1759 = sld [smem:[#allocation2 + $0x78]]
    %v1760 = vstv %s1759
    %v1761 = vmul.f32 %v773, %v1760
    %v1762 = vadd.f32 %v1758, %v1761
    %s1763 = sld [smem:[#allocation2 + $0x88]]
    %v1764 = vstv %s1763
    %v1765 = vmul.f32 %v765, %v1764
    %v1767 = vrot.slane %v1765, 2
    %v1769 = vadd.f32 %v1762, %v1767
    %s1770 = sld [smem:[#allocation2 + $0x98]]
    %v1771 = vstv %s1770
    %v1772 = vmul.f32 %v769, %v1771
    %v1774 = vrot.slane %v1772, 2
    %v1776 = vadd.f32 %v1769, %v1774
    %s1777 = sld [smem:[#allocation2 + $0xa8]]
    %v1778 = vstv %s1777
    %v1779 = vmul.f32 %v773, %v1778
    %v1781 = vrot.slane %v1779, 2
    %v1783 = vadd.f32 %v1776, %v1781
    %s1784 = sld [smem:[#allocation2 + $0xb8]]
    %v1785 = vstv %s1784
    %v1786 = vmul.f32 %v988, %v1785
    %v1787 = vadd.f32 %v1783, %v1786
    %s1788 = sld [smem:[#allocation2 + $0xc8]]
    %v1789 = vstv %s1788
    %v1790 = vmul.f32 %v990, %v1789
    %v1791 = vadd.f32 %v1787, %v1790
    %s1792 = sld [smem:[#allocation2 + $0xd8]]
    %v1793 = vstv %s1792
    %v1794 = vmul.f32 %v992, %v1793
    %v1795 = vadd.f32 %v1791, %v1794
    %s1796 = sld [smem:[#allocation2 + $0xe8]]
    %v1797 = vstv %s1796
    %v1798 = vmul.f32 %v988, %v1797
    %v1800 = vrot.slane %v1798, 2
    %v1802 = vadd.f32 %v1795, %v1800
    %s1803 = sld [smem:[#allocation2 + $0xf8]]
    %v1804 = vstv %s1803
    %v1805 = vmul.f32 %v990, %v1804
    %v1807 = vrot.slane %v1805, 2
    %v1809 = vadd.f32 %v1802, %v1807
    %s1810 = sld [smem:[#allocation2 + $0x108]]
    %v1811 = vstv %s1810
    %v1812 = vmul.f32 %v992, %v1811
    %v1814 = vrot.slane %v1812, 2
    %v1816 = vadd.f32 %v1809, %v1814
    %s1817 = sld [smem:[#allocation2 + $0x118]]
    %v1818 = vstv %s1817
    %v1819 = vadd.f32 %v1816, %v1818
    %v1820 = vmax.f32 %v1819, 0.0
    %s1821 = sld [smem:[#allocation2 + $0x59]]
    %v1822 = vstv %s1821
    %v1823 = vmul.f32 %v765, %v1822
    %s1824 = sld [smem:[#allocation2 + $0x69]]
    %v1825 = vstv %s1824
    %v1826 = vmul.f32 %v769, %v1825
    %v1827 = vadd.f32 %v1823, %v1826
    %s1828 = sld [smem:[#allocation2 + $0x79]]
    %v1829 = vstv %s1828
    %v1830 = vmul.f32 %v773, %v1829
    %v1831 = vadd.f32 %v1827, %v1830
    %s1832 = sld [smem:[#allocation2 + $0x89]]
    %v1833 = vstv %s1832
    %v1834 = vmul.f32 %v765, %v1833
    %v1836 = vrot.slane %v1834, 2
    %v1838 = vadd.f32 %v1831, %v1836
    %s1839 = sld [smem:[#allocation2 + $0x99]]
    %v1840 = vstv %s1839
    %v1841 = vmul.f32 %v769, %v1840
    %v1843 = vrot.slane %v1841, 2
    %v1845 = vadd.f32 %v1838, %v1843
    %s1846 = sld [smem:[#allocation2 + $0xa9]]
    %v1847 = vstv %s1846
    %v1848 = vmul.f32 %v773, %v1847
    %v1850 = vrot.slane %v1848, 2
    %v1852 = vadd.f32 %v1845, %v1850
    %s1853 = sld [smem:[#allocation2 + $0xb9]]
    %v1854 = vstv %s1853
    %v1855 = vmul.f32 %v988, %v1854
    %v1856 = vadd.f32 %v1852, %v1855
    %s1857 = sld [smem:[#allocation2 + $0xc9]]
    %v1858 = vstv %s1857
    %v1859 = vmul.f32 %v990, %v1858
    %v1860 = vadd.f32 %v1856, %v1859
    %s1861 = sld [smem:[#allocation2 + $0xd9]]
    %v1862 = vstv %s1861
    %v1863 = vmul.f32 %v992, %v1862
    %v1864 = vadd.f32 %v1860, %v1863
    %s1865 = sld [smem:[#allocation2 + $0xe9]]
    %v1866 = vstv %s1865
    %v1867 = vmul.f32 %v988, %v1866
    %v1869 = vrot.slane %v1867, 2
    %v1871 = vadd.f32 %v1864, %v1869
    %s1872 = sld [smem:[#allocation2 + $0xf9]]
    %v1873 = vstv %s1872
    %v1874 = vmul.f32 %v990, %v1873
    %v1876 = vrot.slane %v1874, 2
    %v1878 = vadd.f32 %v1871, %v1876
    %s1879 = sld [smem:[#allocation2 + $0x109]]
    %v1880 = vstv %s1879
    %v1881 = vmul.f32 %v992, %v1880
    %v1883 = vrot.slane %v1881, 2
    %v1885 = vadd.f32 %v1878, %v1883
    %s1886 = sld [smem:[#allocation2 + $0x119]]
    %v1887 = vstv %s1886
    %v1888 = vadd.f32 %v1885, %v1887
    %v1889 = vmax.f32 %v1888, 0.0
    %s1890 = sld [smem:[#allocation2 + $0x5a]]
    %v1891 = vstv %s1890
    %v1892 = vmul.f32 %v765, %v1891
    %s1893 = sld [smem:[#allocation2 + $0x6a]]
    %v1894 = vstv %s1893
    %v1895 = vmul.f32 %v769, %v1894
    %v1896 = vadd.f32 %v1892, %v1895
    %s1897 = sld [smem:[#allocation2 + $0x7a]]
    %v1898 = vstv %s1897
    %v1899 = vmul.f32 %v773, %v1898
    %v1900 = vadd.f32 %v1896, %v1899
    %s1901 = sld [smem:[#allocation2 + $0x8a]]
    %v1902 = vstv %s1901
    %v1903 = vmul.f32 %v765, %v1902
    %v1905 = vrot.slane %v1903, 2
    %v1907 = vadd.f32 %v1900, %v1905
    %s1908 = sld [smem:[#allocation2 + $0x9a]]
    %v1909 = vstv %s1908
    %v1910 = vmul.f32 %v769, %v1909
    %v1912 = vrot.slane %v1910, 2
    %v1914 = vadd.f32 %v1907, %v1912
    %s1915 = sld [smem:[#allocation2 + $0xaa]]
    %v1916 = vstv %s1915
    %v1917 = vmul.f32 %v773, %v1916
    %v1919 = vrot.slane %v1917, 2
    %v1921 = vadd.f32 %v1914, %v1919
    %s1922 = sld [smem:[#allocation2 + $0xba]]
    %v1923 = vstv %s1922
    %v1924 = vmul.f32 %v988, %v1923
    %v1925 = vadd.f32 %v1921, %v1924
    %s1926 = sld [smem:[#allocation2 + $0xca]]
    %v1927 = vstv %s1926
    %v1928 = vmul.f32 %v990, %v1927
    %v1929 = vadd.f32 %v1925, %v1928
    %s1930 = sld [smem:[#allocation2 + $0xda]]
    %v1931 = vstv %s1930
    %v1932 = vmul.f32 %v992, %v1931
    %v1933 = vadd.f32 %v1929, %v1932
    %s1934 = sld [smem:[#allocation2 + $0xea]]
    %v1935 = vstv %s1934
    %v1936 = vmul.f32 %v988, %v1935
    %v1938 = vrot.slane %v1936, 2
    %v1940 = vadd.f32 %v1933, %v1938
    %s1941 = sld [smem:[#allocation2 + $0xfa]]
    %v1942 = vstv %s1941
    %v1943 = vmul.f32 %v990, %v1942
    %v1945 = vrot.slane %v1943, 2
    %v1947 = vadd.f32 %v1940, %v1945
    %s1948 = sld [smem:[#allocation2 + $0x10a]]
    %v1949 = vstv %s1948
    %v1950 = vmul.f32 %v992, %v1949
    %v1952 = vrot.slane %v1950, 2
    %v1954 = vadd.f32 %v1947, %v1952
    %s1955 = sld [smem:[#allocation2 + $0x11a]]
    %v1956 = vstv %s1955
    %v1957 = vadd.f32 %v1954, %v1956
    %v1958 = vmax.f32 %v1957, 0.0
    %s1959 = sld [smem:[#allocation2 + $0x5b]]
    %v1960 = vstv %s1959
    %v1961 = vmul.f32 %v765, %v1960
    %s1962 = sld [smem:[#allocation2 + $0x6b]]
    %v1963 = vstv %s1962
    %v1964 = vmul.f32 %v769, %v1963
    %v1965 = vadd.f32 %v1961, %v1964
    %s1966 = sld [smem:[#allocation2 + $0x7b]]
    %v1967 = vstv %s1966
    %v1968 = vmul.f32 %v773, %v1967
    %v1969 = vadd.f32 %v1965, %v1968
    %s1970 = sld [smem:[#allocation2 + $0x8b]]
    %v1971 = vstv %s1970
    %v1972 = vmul.f32 %v765, %v1971
    %v1974 = vrot.slane %v1972, 2
    %v1976 = vadd.f32 %v1969, %v1974
    %s1977 = sld [smem:[#allocation2 + $0x9b]]
    %v1978 = vstv %s1977
    %v1979 = vmul.f32 %v769, %v1978
    %v1981 = vrot.slane %v1979, 2
    %v1983 = vadd.f32 %v1976, %v1981
    %s1984 = sld [smem:[#allocation2 + $0xab]]
    %v1985 = vstv %s1984
    %v1986 = vmul.f32 %v773, %v1985
    %v1988 = vrot.slane %v1986, 2
    %v1990 = vadd.f32 %v1983, %v1988
    %s1991 = sld [smem:[#allocation2 + $0xbb]]
    %v1992 = vstv %s1991
    %v1993 = vmul.f32 %v988, %v1992
    %v1994 = vadd.f32 %v1990, %v1993
    %s1995 = sld [smem:[#allocation2 + $0xcb]]
    %v1996 = vstv %s1995
    %v1997 = vmul.f32 %v990, %v1996
    %v1998 = vadd.f32 %v1994, %v1997
    %s1999 = sld [smem:[#allocation2 + $0xdb]]
    %v2000 = vstv %s1999
    %v2001 = vmul.f32 %v992, %v2000
    %v2002 = vadd.f32 %v1998, %v2001
    %s2003 = sld [smem:[#allocation2 + $0xeb]]
    %v2004 = vstv %s2003
    %v2005 = vmul.f32 %v988, %v2004
    %v2007 = vrot.slane %v2005, 2
    %v2009 = vadd.f32 %v2002, %v2007
    %s2010 = sld [smem:[#allocation2 + $0xfb]]
    %v2011 = vstv %s2010
    %v2012 = vmul.f32 %v990, %v2011
    %v2014 = vrot.slane %v2012, 2
    %v2016 = vadd.f32 %v2009, %v2014
    %s2017 = sld [smem:[#allocation2 + $0x10b]]
    %v2018 = vstv %s2017
    %v2019 = vmul.f32 %v992, %v2018
    %v2021 = vrot.slane %v2019, 2
    %v2023 = vadd.f32 %v2016, %v2021
    %s2024 = sld [smem:[#allocation2 + $0x11b]]
    %v2025 = vstv %s2024
    %v2026 = vadd.f32 %v2023, %v2025
    %v2027 = vmax.f32 %v2026, 0.0
    %s2028 = sld [smem:[#allocation2 + $0x5c]]
    %v2029 = vstv %s2028
    %v2030 = vmul.f32 %v765, %v2029
    %s2031 = sld [smem:[#allocation2 + $0x6c]]
    %v2032 = vstv %s2031
    %v2033 = vmul.f32 %v769, %v2032
    %v2034 = vadd.f32 %v2030, %v2033
    %s2035 = sld [smem:[#allocation2 + $0x7c]]
    %v2036 = vstv %s2035
    %v2037 = vmul.f32 %v773, %v2036
    %v2038 = vadd.f32 %v2034, %v2037
    %s2039 = sld [smem:[#allocation2 + $0x8c]]
    %v2040 = vstv %s2039
    %v2041 = vmul.f32 %v765, %v2040
    %v2043 = vrot.slane %v2041, 2
    %v2045 = vadd.f32 %v2038, %v2043
    %s2046 = sld [smem:[#allocation2 + $0x9c]]
    %v2047 = vstv %s2046
    %v2048 = vmul.f32 %v769, %v2047
    %v2050 = vrot.slane %v2048, 2
    %v2052 = vadd.f32 %v2045, %v2050
    %s2053 = sld [smem:[#allocation2 + $0xac]]
    %v2054 = vstv %s2053
    %v2055 = vmul.f32 %v773, %v2054
    %v2057 = vrot.slane %v2055, 2
    %v2059 = vadd.f32 %v2052, %v2057
    %s2060 = sld [smem:[#allocation2 + $0xbc]]
    %v2061 = vstv %s2060
    %v2062 = vmul.f32 %v988, %v2061
    %v2063 = vadd.f32 %v2059, %v2062
    %s2064 = sld [smem:[#allocation2 + $0xcc]]
    %v2065 = vstv %s2064
    %v2066 = vmul.f32 %v990, %v2065
    %v2067 = vadd.f32 %v2063, %v2066
    %s2068 = sld [smem:[#allocation2 + $0xdc]]
    %v2069 = vstv %s2068
    %v2070 = vmul.f32 %v992, %v2069
    %v2071 = vadd.f32 %v2067, %v2070
    %s2072 = sld [smem:[#allocation2 + $0xec]]
    %v2073 = vstv %s2072
    %v2074 = vmul.f32 %v988, %v2073
    %v2076 = vrot.slane %v2074, 2
    %v2078 = vadd.f32 %v2071, %v2076
    %s2079 = sld [smem:[#allocation2 + $0xfc]]
    %v2080 = vstv %s2079
    %v2081 = vmul.f32 %v990, %v2080
    %v2083 = vrot.slane %v2081, 2
    %v2085 = vadd.f32 %v2078, %v2083
    %s2086 = sld [smem:[#allocation2 + $0x10c]]
    %v2087 = vstv %s2086
    %v2088 = vmul.f32 %v992, %v2087
    %v2090 = vrot.slane %v2088, 2
    %v2092 = vadd.f32 %v2085, %v2090
    %s2093 = sld [smem:[#allocation2 + $0x11c]]
    %v2094 = vstv %s2093
    %v2095 = vadd.f32 %v2092, %v2094
    %v2096 = vmax.f32 %v2095, 0.0
    %s2097 = sld [smem:[#allocation2 + $0x11d]]
    %v2098 = vstv %s2097
    %v2099 = vmul.f32 %v1061, %v2098
    %s2100 = sld [smem:[#allocation2 + $0x127]]
    %v2101 = vstv %s2100
    %v2102 = vmul.f32 %v1130, %v2101
    %v2103 = vadd.f32 %v2099, %v2102
    %s2104 = sld [smem:[#allocation2 + $0x131]]
    %v2105 = vstv %s2104
    %v2106 = vmul.f32 %v1199, %v2105
    %v2107 = vadd.f32 %v2103, %v2106
    %s2108 = sld [smem:[#allocation2 + $0x13b]]
    %v2109 = vstv %s2108
    %v2110 = vmul.f32 %v1268, %v2109
    %v2111 = vadd.f32 %v2107, %v2110
    %s2112 = sld [smem:[#allocation2 + $0x145]]
    %v2113 = vstv %s2112
    %v2114 = vmul.f32 %v1337, %v2113
    %v2115 = vadd.f32 %v2111, %v2114
    %s2116 = sld [smem:[#allocation2 + $0x14f]]
    %v2117 = vstv %s2116
    %v2118 = vmul.f32 %v1406, %v2117
    %v2119 = vadd.f32 %v2115, %v2118
    %s2120 = sld [smem:[#allocation2 + $0x159]]
    %v2121 = vstv %s2120
    %v2122 = vmul.f32 %v1475, %v2121
    %v2123 = vadd.f32 %v2119, %v2122
    %s2124 = sld [smem:[#allocation2 + $0x163]]
    %v2125 = vstv %s2124
    %v2126 = vmul.f32 %v1544, %v2125
    %v2127 = vadd.f32 %v2123, %v2126
    %s2128 = sld [smem:[#allocation2 + $0x16d]]
    %v2129 = vstv %s2128
    %v2130 = vmul.f32 %v1613, %v2129
    %v2131 = vadd.f32 %v2127, %v2130
    %s2132 = sld [smem:[#allocation2 + $0x177]]
    %v2133 = vstv %s2132
    %v2134 = vmul.f32 %v1682, %v2133
    %v2135 = vadd.f32 %v2131, %v2134
    %s2136 = sld [smem:[#allocation2 + $0x181]]
    %v2137 = vstv %s2136
    %v2138 = vmul.f32 %v1751, %v2137
    %v2139 = vadd.f32 %v2135, %v2138
    %s2140 = sld [smem:[#allocation2 + $0x18b]]
    %v2141 = vstv %s2140
    %v2142 = vmul.f32 %v1820, %v2141
    %v2143 = vadd.f32 %v2139, %v2142
    %s2144 = sld [smem:[#allocation2 + $0x195]]
    %v2145 = vstv %s2144
    %v2146 = vmul.f32 %v1889, %v2145
    %v2147 = vadd.f32 %v2143, %v2146
    %s2148 = sld [smem:[#allocation2 + $0x19f]]
    %v2149 = vstv %s2148
    %v2150 = vmul.f32 %v1958, %v2149
    %v2151 = vadd.f32 %v2147, %v2150
    %s2152 = sld [smem:[#allocation2 + $0x1a9]]
    %v2153 = vstv %s2152
    %v2154 = vmul.f32 %v2027, %v2153
    %v2155 = vadd.f32 %v2151, %v2154
    %s2156 = sld [smem:[#allocation2 + $0x1b3]]
    %v2157 = vstv %s2156
    %v2158 = vmul.f32 %v2096, %v2157
    %v2159 = vadd.f32 %v2155, %v2158
    %s2160 = sld [smem:[#allocation2 + $0x1bd]]
    %v2161 = vstv %s2160
    %v2162 = vadd.f32 %v2159, %v2161
    %s2163 = sld [smem:[#allocation2 + $0x11e]]
    %v2164 = vstv %s2163
    %v2165 = vmul.f32 %v1061, %v2164
    %s2166 = sld [smem:[#allocation2 + $0x128]]
    %v2167 = vstv %s2166
    %v2168 = vmul.f32 %v1130, %v2167
    %v2169 = vadd.f32 %v2165, %v2168
    %s2170 = sld [smem:[#allocation2 + $0x132]]
    %v2171 = vstv %s2170
    %v2172 = vmul.f32 %v1199, %v2171
    %v2173 = vadd.f32 %v2169, %v2172
    %s2174 = sld [smem:[#allocation2 + $0x13c]]
    %v2175 = vstv %s2174
    %v2176 = vmul.f32 %v1268, %v2175
    %v2177 = vadd.f32 %v2173, %v2176
    %s2178 = sld [smem:[#allocation2 + $0x146]]
    %v2179 = vstv %s2178
    %v2180 = vmul.f32 %v1337, %v2179
    %v2181 = vadd.f32 %v2177, %v2180
    %s2182 = sld [smem:[#allocation2 + $0x150]]
    %v2183 = vstv %s2182
    %v2184 = vmul.f32 %v1406, %v2183
    %v2185 = vadd.f32 %v2181, %v2184
    %s2186 = sld [smem:[#allocation2 + $0x15a]]
    %v2187 = vstv %s2186
    %v2188 = vmul.f32 %v1475, %v2187
    %v2189 = vadd.f32 %v2185, %v2188
    %s2190 = sld [smem:[#allocation2 + $0x164]]
    %v2191 = vstv %s2190
    %v2192 = vmul.f32 %v1544, %v2191
    %v2193 = vadd.f32 %v2189, %v2192
    %s2194 = sld [smem:[#allocation2 + $0x16e]]
    %v2195 = vstv %s2194
    %v2196 = vmul.f32 %v1613, %v2195
    %v2197 = vadd.f32 %v2193, %v2196
    %s2198 = sld [smem:[#allocation2 + $0x178]]
    %v2199 = vstv %s2198
    %v2200 = vmul.f32 %v1682, %v2199
    %v2201 = vadd.f32 %v2197, %v2200
    %s2202 = sld [smem:[#allocation2 + $0x182]]
    %v2203 = vstv %s2202
    %v2204 = vmul.f32 %v1751, %v2203
    %v2205 = vadd.f32 %v2201, %v2204
    %s2206 = sld [smem:[#allocation2 + $0x18c]]
    %v2207 = vstv %s2206
    %v2208 = vmul.f32 %v1820, %v2207
    %v2209 = vadd.f32 %v2205, %v2208
    %s2210 = sld [smem:[#allocation2 + $0x196]]
    %v2211 = vstv %s2210
    %v2212 = vmul.f32 %v1889, %v2211
    %v2213 = vadd.f32 %v2209, %v2212
    %s2214 = sld [smem:[#allocation2 + $0x1a0]]
    %v2215 = vstv %s2214
    %v2216 = vmul.f32 %v1958, %v2215
    %v2217 = vadd.f32 %v2213, %v2216
    %s2218 = sld [smem:[#allocation2 + $0x1aa]]
    %v2219 = vstv %s2218
    %v2220 = vmul.f32 %v2027, %v2219
    %v2221 = vadd.f32 %v2217, %v2220
    %s2222 = sld [smem:[#allocation2 + $0x1b4]]
    %v2223 = vstv %s2222
    %v2224 = vmul.f32 %v2096, %v2223
    %v2225 = vadd.f32 %v2221, %v2224
    %s2226 = sld [smem:[#allocation2 + $0x1be]]
    %v2227 = vstv %s2226
    %v2228 = vadd.f32 %v2225, %v2227
    %s2229 = sld [smem:[#allocation2 + $0x11f]]
    %v2230 = vstv %s2229
    %v2231 = vmul.f32 %v1061, %v2230
    %s2232 = sld [smem:[#allocation2 + $0x129]]
    %v2233 = vstv %s2232
    %v2234 = vmul.f32 %v1130, %v2233
    %v2235 = vadd.f32 %v2231, %v2234
    %s2236 = sld [smem:[#allocation2 + $0x133]]
    %v2237 = vstv %s2236
    %v2238 = vmul.f32 %v1199, %v2237
    %v2239 = vadd.f32 %v2235, %v2238
    %s2240 = sld [smem:[#allocation2 + $0x13d]]
    %v2241 = vstv %s2240
    %v2242 = vmul.f32 %v1268, %v2241
    %v2243 = vadd.f32 %v2239, %v2242
    %s2244 = sld [smem:[#allocation2 + $0x147]]
    %v2245 = vstv %s2244
    %v2246 = vmul.f32 %v1337, %v2245
    %v2247 = vadd.f32 %v2243, %v2246
    %s2248 = sld [smem:[#allocation2 + $0x151]]
    %v2249 = vstv %s2248
    %v2250 = vmul.f32 %v1406, %v2249
    %v2251 = vadd.f32 %v2247, %v2250
    %s2252 = sld [smem:[#allocation2 + $0x15b]]
    %v2253 = vstv %s2252
    %v2254 = vmul.f32 %v1475, %v2253
    %v2255 = vadd.f32 %v2251, %v2254
    %s2256 = sld [smem:[#allocation2 + $0x165]]
    %v2257 = vstv %s2256
    %v2258 = vmul.f32 %v1544, %v2257
    %v2259 = vadd.f32 %v2255, %v2258
    %s2260 = sld [smem:[#allocation2 + $0x16f]]
    %v2261 = vstv %s2260
    %v2262 = vmul.f32 %v1613, %v2261
    %v2263 = vadd.f32 %v2259, %v2262
    %s2264 = sld [smem:[#allocation2 + $0x179]]
    %v2265 = vstv %s2264
    %v2266 = vmul.f32 %v1682, %v2265
    %v2267 = vadd.f32 %v2263, %v2266
    %s2268 = sld [smem:[#allocation2 + $0x183]]
    %v2269 = vstv %s2268
    %v2270 = vmul.f32 %v1751, %v2269
    %v2271 = vadd.f32 %v2267, %v2270
    %s2272 = sld [smem:[#allocation2 + $0x18d]]
    %v2273 = vstv %s2272
    %v2274 = vmul.f32 %v1820, %v2273
    %v2275 = vadd.f32 %v2271, %v2274
    %s2276 = sld [smem:[#allocation2 + $0x197]]
    %v2277 = vstv %s2276
    %v2278 = vmul.f32 %v1889, %v2277
    %v2279 = vadd.f32 %v2275, %v2278
    %s2280 = sld [smem:[#allocation2 + $0x1a1]]
    %v2281 = vstv %s2280
    %v2282 = vmul.f32 %v1958, %v2281
    %v2283 = vadd.f32 %v2279, %v2282
    %s2284 = sld [smem:[#allocation2 + $0x1ab]]
    %v2285 = vstv %s2284
    %v2286 = vmul.f32 %v2027, %v2285
    %v2287 = vadd.f32 %v2283, %v2286
    %s2288 = sld [smem:[#allocation2 + $0x1b5]]
    %v2289 = vstv %s2288
    %v2290 = vmul.f32 %v2096, %v2289
    %v2291 = vadd.f32 %v2287, %v2290
    %s2292 = sld [smem:[#allocation2 + $0x1bf]]
    %v2293 = vstv %s2292
    %v2294 = vadd.f32 %v2291, %v2293
    %s2295 = sld [smem:[#allocation2 + $0x120]]
    %v2296 = vstv %s2295
    %v2297 = vmul.f32 %v1061, %v2296
    %s2298 = sld [smem:[#allocation2 + $0x12a]]
    %v2299 = vstv %s2298
    %v2300 = vmul.f32 %v1130, %v2299
    %v2301 = vadd.f32 %v2297, %v2300
    %s2302 = sld [smem:[#allocation2 + $0x134]]
    %v2303 = vstv %s2302
    %v2304 = vmul.f32 %v1199, %v2303
    %v2305 = vadd.f32 %v2301, %v2304
    %s2306 = sld [smem:[#allocation2 + $0x13e]]
    %v2307 = vstv %s2306
    %v2308 = vmul.f32 %v1268, %v2307
    %v2309 = vadd.f32 %v2305, %v2308
    %s2310 = sld [smem:[#allocation2 + $0x148]]
    %v2311 = vstv %s2310
    %v2312 = vmul.f32 %v1337, %v2311
    %v2313 = vadd.f32 %v2309, %v2312
    %s2314 = sld [smem:[#allocation2 + $0x152]]
    %v2315 = vstv %s2314
    %v2316 = vmul.f32 %v1406, %v2315
    %v2317 = vadd.f32 %v2313, %v2316
    %s2318 = sld [smem:[#allocation2 + $0x15c]]
    %v2319 = vstv %s2318
    %v2320 = vmul.f32 %v1475, %v2319
    %v2321 = vadd.f32 %v2317, %v2320
    %s2322 = sld [smem:[#allocation2 + $0x166]]
    %v2323 = vstv %s2322
    %v2324 = vmul.f32 %v1544, %v2323
    %v2325 = vadd.f32 %v2321, %v2324
    %s2326 = sld [smem:[#allocation2 + $0x170]]
    %v2327 = vstv %s2326
    %v2328 = vmul.f32 %v1613, %v2327
    %v2329 = vadd.f32 %v2325, %v2328
    %s2330 = sld [smem:[#allocation2 + $0x17a]]
    %v2331 = vstv %s2330
    %v2332 = vmul.f32 %v1682, %v2331
    %v2333 = vadd.f32 %v2329, %v2332
    %s2334 = sld [smem:[#allocation2 + $0x184]]
    %v2335 = vstv %s2334
    %v2336 = vmul.f32 %v1751, %v2335
    %v2337 = vadd.f32 %v2333, %v2336
    %s2338 = sld [smem:[#allocation2 + $0x18e]]
    %v2339 = vstv %s2338
    %v2340 = vmul.f32 %v1820, %v2339
    %v2341 = vadd.f32 %v2337, %v2340
    %s2342 = sld [smem:[#allocation2 + $0x198]]
    %v2343 = vstv %s2342
    %v2344 = vmul.f32 %v1889, %v2343
    %v2345 = vadd.f32 %v2341, %v2344
    %s2346 = sld [smem:[#allocation2 + $0x1a2]]
    %v2347 = vstv %s2346
    %v2348 = vmul.f32 %v1958, %v2347
    %v2349 = vadd.f32 %v2345, %v2348
    %s2350 = sld [smem:[#allocation2 + $0x1ac]]
    %v2351 = vstv %s2350
    %v2352 = vmul.f32 %v2027, %v2351
    %v2353 = vadd.f32 %v2349, %v2352
    %s2354 = sld [smem:[#allocation2 + $0x1b6]]
    %v2355 = vstv %s2354
    %v2356 = vmul.f32 %v2096, %v2355
    %v2357 = vadd.f32 %v2353, %v2356
    %s2358 = sld [smem:[#allocation2 + $0x1c0]]
    %v2359 = vstv %s2358
    %v2360 = vadd.f32 %v2357, %v2359
    %s2361 = sld [smem:[#allocation2 + $0x121]]
    %v2362 = vstv %s2361
    %v2363 = vmul.f32 %v1061, %v2362
    %s2364 = sld [smem:[#allocation2 + $0x12b]]
    %v2365 = vstv %s2364
    %v2366 = vmul.f32 %v1130, %v2365
    %v2367 = vadd.f32 %v2363, %v2366
    %s2368 = sld [smem:[#allocation2 + $0x135]]
    %v2369 = vstv %s2368
    %v2370 = vmul.f32 %v1199, %v2369
    %v2371 = vadd.f32 %v2367, %v2370
    %s2372 = sld [smem:[#allocation2 + $0x13f]]
    %v2373 = vstv %s2372
    %v2374 = vmul.f32 %v1268, %v2373
    %v2375 = vadd.f32 %v2371, %v2374
    %s2376 = sld [smem:[#allocation2 + $0x149]]
    %v2377 = vstv %s2376
    %v2378 = vmul.f32 %v1337, %v2377
    %v2379 = vadd.f32 %v2375, %v2378
    %s2380 = sld [smem:[#allocation2 + $0x153]]
    %v2381 = vstv %s2380
    %v2382 = vmul.f32 %v1406, %v2381
    %v2383 = vadd.f32 %v2379, %v2382
    %s2384 = sld [smem:[#allocation2 + $0x15d]]
    %v2385 = vstv %s2384
    %v2386 = vmul.f32 %v1475, %v2385
    %v2387 = vadd.f32 %v2383, %v2386
    %s2388 = sld [smem:[#allocation2 + $0x167]]
    %v2389 = vstv %s2388
    %v2390 = vmul.f32 %v1544, %v2389
    %v2391 = vadd.f32 %v2387, %v2390
    %s2392 = sld [smem:[#allocation2 + $0x171]]
    %v2393 = vstv %s2392
    %v2394 = vmul.f32 %v1613, %v2393
    %v2395 = vadd.f32 %v2391, %v2394
    %s2396 = sld [smem:[#allocation2 + $0x17b]]
    %v2397 = vstv %s2396
    %v2398 = vmul.f32 %v1682, %v2397
    %v2399 = vadd.f32 %v2395, %v2398
    %s2400 = sld [smem:[#allocation2 + $0x185]]
    %v2401 = vstv %s2400
    %v2402 = vmul.f32 %v1751, %v2401
    %v2403 = vadd.f32 %v2399, %v2402
    %s2404 = sld [smem:[#allocation2 + $0x18f]]
    %v2405 = vstv %s2404
    %v2406 = vmul.f32 %v1820, %v2405
    %v2407 = vadd.f32 %v2403, %v2406
    %s2408 = sld [smem:[#allocation2 + $0x199]]
    %v2409 = vstv %s2408
    %v2410 = vmul.f32 %v1889, %v2409
    %v2411 = vadd.f32 %v2407, %v2410
    %s2412 = sld [smem:[#allocation2 + $0x1a3]]
    %v2413 = vstv %s2412
    %v2414 = vmul.f32 %v1958, %v2413
    %v2415 = vadd.f32 %v2411, %v2414
    %s2416 = sld [smem:[#allocation2 + $0x1ad]]
    %v2417 = vstv %s2416
    %v2418 = vmul.f32 %v2027, %v2417
    %v2419 = vadd.f32 %v2415, %v2418
    %s2420 = sld [smem:[#allocation2 + $0x1b7]]
    %v2421 = vstv %s2420
    %v2422 = vmul.f32 %v2096, %v2421
    %v2423 = vadd.f32 %v2419, %v2422
    %s2424 = sld [smem:[#allocation2 + $0x1c1]]
    %v2425 = vstv %s2424
    %v2426 = vadd.f32 %v2423, %v2425
    %s2427 = sld [smem:[#allocation2 + $0x122]]
    %v2428 = vstv %s2427
    %v2429 = vmul.f32 %v1061, %v2428
    %s2430 = sld [smem:[#allocation2 + $0x12c]]
    %v2431 = vstv %s2430
    %v2432 = vmul.f32 %v1130, %v2431
    %v2433 = vadd.f32 %v2429, %v2432
    %s2434 = sld [smem:[#allocation2 + $0x136]]
    %v2435 = vstv %s2434
    %v2436 = vmul.f32 %v1199, %v2435
    %v2437 = vadd.f32 %v2433, %v2436
    %s2438 = sld [smem:[#allocation2 + $0x140]]
    %v2439 = vstv %s2438
    %v2440 = vmul.f32 %v1268, %v2439
    %v2441 = vadd.f32 %v2437, %v2440
    %s2442 = sld [smem:[#allocation2 + $0x14a]]
    %v2443 = vstv %s2442
    %v2444 = vmul.f32 %v1337, %v2443
    %v2445 = vadd.f32 %v2441, %v2444
    %s2446 = sld [smem:[#allocation2 + $0x154]]
    %v2447 = vstv %s2446
    %v2448 = vmul.f32 %v1406, %v2447
    %v2449 = vadd.f32 %v2445, %v2448
    %s2450 = sld [smem:[#allocation2 + $0x15e]]
    %v2451 = vstv %s2450
    %v2452 = vmul.f32 %v1475, %v2451
    %v2453 = vadd.f32 %v2449, %v2452
    %s2454 = sld [smem:[#allocation2 + $0x168]]
    %v2455 = vstv %s2454
    %v2456 = vmul.f32 %v1544, %v2455
    %v2457 = vadd.f32 %v2453, %v2456
    %s2458 = sld [smem:[#allocation2 + $0x172]]
    %v2459 = vstv %s2458
    %v2460 = vmul.f32 %v1613, %v2459
    %v2461 = vadd.f32 %v2457, %v2460
    %s2462 = sld [smem:[#allocation2 + $0x17c]]
    %v2463 = vstv %s2462
    %v2464 = vmul.f32 %v1682, %v2463
    %v2465 = vadd.f32 %v2461, %v2464
    %s2466 = sld [smem:[#allocation2 + $0x186]]
    %v2467 = vstv %s2466
    %v2468 = vmul.f32 %v1751, %v2467
    %v2469 = vadd.f32 %v2465, %v2468
    %s2470 = sld [smem:[#allocation2 + $0x190]]
    %v2471 = vstv %s2470
    %v2472 = vmul.f32 %v1820, %v2471
    %v2473 = vadd.f32 %v2469, %v2472
    %s2474 = sld [smem:[#allocation2 + $0x19a]]
    %v2475 = vstv %s2474
    %v2476 = vmul.f32 %v1889, %v2475
    %v2477 = vadd.f32 %v2473, %v2476
    %s2478 = sld [smem:[#allocation2 + $0x1a4]]
    %v2479 = vstv %s2478
    %v2480 = vmul.f32 %v1958, %v2479
    %v2481 = vadd.f32 %v2477, %v2480
    %s2482 = sld [smem:[#allocation2 + $0x1ae]]
    %v2483 = vstv %s2482
    %v2484 = vmul.f32 %v2027, %v2483
    %v2485 = vadd.f32 %v2481, %v2484
    %s2486 = sld [smem:[#allocation2 + $0x1b8]]
    %v2487 = vstv %s2486
    %v2488 = vmul.f32 %v2096, %v2487
    %v2489 = vadd.f32 %v2485, %v2488
    %s2490 = sld [smem:[#allocation2 + $0x1c2]]
    %v2491 = vstv %s2490
    %v2492 = vadd.f32 %v2489, %v2491
    %s2493 = sld [smem:[#allocation2 + $0x123]]
    %v2494 = vstv %s2493
    %v2495 = vmul.f32 %v1061, %v2494
    %s2496 = sld [smem:[#allocation2 + $0x12d]]
    %v2497 = vstv %s2496
    %v2498 = vmul.f32 %v1130, %v2497
    %v2499 = vadd.f32 %v2495, %v2498
    %s2500 = sld [smem:[#allocation2 + $0x137]]
    %v2501 = vstv %s2500
    %v2502 = vmul.f32 %v1199, %v2501
    %v2503 = vadd.f32 %v2499, %v2502
    %s2504 = sld [smem:[#allocation2 + $0x141]]
    %v2505 = vstv %s2504
    %v2506 = vmul.f32 %v1268, %v2505
    %v2507 = vadd.f32 %v2503, %v2506
    %s2508 = sld [smem:[#allocation2 + $0x14b]]
    %v2509 = vstv %s2508
    %v2510 = vmul.f32 %v1337, %v2509
    %v2511 = vadd.f32 %v2507, %v2510
    %s2512 = sld [smem:[#allocation2 + $0x155]]
    %v2513 = vstv %s2512
    %v2514 = vmul.f32 %v1406, %v2513
    %v2515 = vadd.f32 %v2511, %v2514
    %s2516 = sld [smem:[#allocation2 + $0x15f]]
    %v2517 = vstv %s2516
    %v2518 = vmul.f32 %v1475, %v2517
    %v2519 = vadd.f32 %v2515, %v2518
    %s2520 = sld [smem:[#allocation2 + $0x169]]
    %v2521 = vstv %s2520
    %v2522 = vmul.f32 %v1544, %v2521
    %v2523 = vadd.f32 %v2519, %v2522
    %s2524 = sld [smem:[#allocation2 + $0x173]]
    %v2525 = vstv %s2524
    %v2526 = vmul.f32 %v1613, %v2525
    %v2527 = vadd.f32 %v2523, %v2526
    %s2528 = sld [smem:[#allocation2 + $0x17d]]
    %v2529 = vstv %s2528
    %v2530 = vmul.f32 %v1682, %v2529
    %v2531 = vadd.f32 %v2527, %v2530
    %s2532 = sld [smem:[#allocation2 + $0x187]]
    %v2533 = vstv %s2532
    %v2534 = vmul.f32 %v1751, %v2533
    %v2535 = vadd.f32 %v2531, %v2534
    %s2536 = sld [smem:[#allocation2 + $0x191]]
    %v2537 = vstv %s2536
    %v2538 = vmul.f32 %v1820, %v2537
    %v2539 = vadd.f32 %v2535, %v2538
    %s2540 = sld [smem:[#allocation2 + $0x19b]]
    %v2541 = vstv %s2540
    %v2542 = vmul.f32 %v1889, %v2541
    %v2543 = vadd.f32 %v2539, %v2542
    %s2544 = sld [smem:[#allocation2 + $0x1a5]]
    %v2545 = vstv %s2544
    %v2546 = vmul.f32 %v1958, %v2545
    %v2547 = vadd.f32 %v2543, %v2546
    %s2548 = sld [smem:[#allocation2 + $0x1af]]
    %v2549 = vstv %s2548
    %v2550 = vmul.f32 %v2027, %v2549
    %v2551 = vadd.f32 %v2547, %v2550
    %s2552 = sld [smem:[#allocation2 + $0x1b9]]
    %v2553 = vstv %s2552
    %v2554 = vmul.f32 %v2096, %v2553
    %v2555 = vadd.f32 %v2551, %v2554
    %s2556 = sld [smem:[#allocation2 + $0x1c3]]
    %v2557 = vstv %s2556
    %v2558 = vadd.f32 %v2555, %v2557
    %s2559 = sld [smem:[#allocation2 + $0x124]]
    %v2560 = vstv %s2559
    %v2561 = vmul.f32 %v1061, %v2560
    %s2562 = sld [smem:[#allocation2 + $0x12e]]
    %v2563 = vstv %s2562
    %v2564 = vmul.f32 %v1130, %v2563
    %v2565 = vadd.f32 %v2561, %v2564
    %s2566 = sld [smem:[#allocation2 + $0x138]]
    %v2567 = vstv %s2566
    %v2568 = vmul.f32 %v1199, %v2567
    %v2569 = vadd.f32 %v2565, %v2568
    %s2570 = sld [smem:[#allocation2 + $0x142]]
    %v2571 = vstv %s2570
    %v2572 = vmul.f32 %v1268, %v2571
    %v2573 = vadd.f32 %v2569, %v2572
    %s2574 = sld [smem:[#allocation2 + $0x14c]]
    %v2575 = vstv %s2574
    %v2576 = vmul.f32 %v1337, %v2575
    %v2577 = vadd.f32 %v2573, %v2576
    %s2578 = sld [smem:[#allocation2 + $0x156]]
    %v2579 = vstv %s2578
    %v2580 = vmul.f32 %v1406, %v2579
    %v2581 = vadd.f32 %v2577, %v2580
    %s2582 = sld [smem:[#allocation2 + $0x160]]
    %v2583 = vstv %s2582
    %v2584 = vmul.f32 %v1475, %v2583
    %v2585 = vadd.f32 %v2581, %v2584
    %s2586 = sld [smem:[#allocation2 + $0x16a]]
    %v2587 = vstv %s2586
    %v2588 = vmul.f32 %v1544, %v2587
    %v2589 = vadd.f32 %v2585, %v2588
    %s2590 = sld [smem:[#allocation2 + $0x174]]
    %v2591 = vstv %s2590
    %v2592 = vmul.f32 %v1613, %v2591
    %v2593 = vadd.f32 %v2589, %v2592
    %s2594 = sld [smem:[#allocation2 + $0x17e]]
    %v2595 = vstv %s2594
    %v2596 = vmul.f32 %v1682, %v2595
    %v2597 = vadd.f32 %v2593, %v2596
    %s2598 = sld [smem:[#allocation2 + $0x188]]
    %v2599 = vstv %s2598
    %v2600 = vmul.f32 %v1751, %v2599
    %v2601 = vadd.f32 %v2597, %v2600
    %s2602 = sld [smem:[#allocation2 + $0x192]]
    %v2603 = vstv %s2602
    %v2604 = vmul.f32 %v1820, %v2603
    %v2605 = vadd.f32 %v2601, %v2604
    %s2606 = sld [smem:[#allocation2 + $0x19c]]
    %v2607 = vstv %s2606
    %v2608 = vmul.f32 %v1889, %v2607
    %v2609 = vadd.f32 %v2605, %v2608
    %s2610 = sld [smem:[#allocation2 + $0x1a6]]
    %v2611 = vstv %s2610
    %v2612 = vmul.f32 %v1958, %v2611
    %v2613 = vadd.f32 %v2609, %v2612
    %s2614 = sld [smem:[#allocation2 + $0x1b0]]
    %v2615 = vstv %s2614
    %v2616 = vmul.f32 %v2027, %v2615
    %v2617 = vadd.f32 %v2613, %v2616
    %s2618 = sld [smem:[#allocation2 + $0x1ba]]
    %v2619 = vstv %s2618
    %v2620 = vmul.f32 %v2096, %v2619
    %v2621 = vadd.f32 %v2617, %v2620
    %s2622 = sld [smem:[#allocation2 + $0x1c4]]
    %v2623 = vstv %s2622
    %v2624 = vadd.f32 %v2621, %v2623
    %s2625 = sld [smem:[#allocation2 + $0x125]]
    %v2626 = vstv %s2625
    %v2627 = vmul.f32 %v1061, %v2626
    %s2628 = sld [smem:[#allocation2 + $0x12f]]
    %v2629 = vstv %s2628
    %v2630 = vmul.f32 %v1130, %v2629
    %v2631 = vadd.f32 %v2627, %v2630
    %s2632 = sld [smem:[#allocation2 + $0x139]]
    %v2633 = vstv %s2632
    %v2634 = vmul.f32 %v1199, %v2633
    %v2635 = vadd.f32 %v2631, %v2634
    %s2636 = sld [smem:[#allocation2 + $0x143]]
    %v2637 = vstv %s2636
    %v2638 = vmul.f32 %v1268, %v2637
    %v2639 = vadd.f32 %v2635, %v2638
    %s2640 = sld [smem:[#allocation2 + $0x14d]]
    %v2641 = vstv %s2640
    %v2642 = vmul.f32 %v1337, %v2641
    %v2643 = vadd.f32 %v2639, %v2642
    %s2644 = sld [smem:[#allocation2 + $0x157]]
    %v2645 = vstv %s2644
    %v2646 = vmul.f32 %v1406, %v2645
    %v2647 = vadd.f32 %v2643, %v2646
    %s2648 = sld [smem:[#allocation2 + $0x161]]
    %v2649 = vstv %s2648
    %v2650 = vmul.f32 %v1475, %v2649
    %v2651 = vadd.f32 %v2647, %v2650
    %s2652 = sld [smem:[#allocation2 + $0x16b]]
    %v2653 = vstv %s2652
    %v2654 = vmul.f32 %v1544, %v2653
    %v2655 = vadd.f32 %v2651, %v2654
    %s2656 = sld [smem:[#allocation2 + $0x175]]
    %v2657 = vstv %s2656
    %v2658 = vmul.f32 %v1613, %v2657
    %v2659 = vadd.f32 %v2655, %v2658
    %s2660 = sld [smem:[#allocation2 + $0x17f]]
    %v2661 = vstv %s2660
    %v2662 = vmul.f32 %v1682, %v2661
    %v2663 = vadd.f32 %v2659, %v2662
    %s2664 = sld [smem:[#allocation2 + $0x189]]
    %v2665 = vstv %s2664
    %v2666 = vmul.f32 %v1751, %v2665
    %v2667 = vadd.f32 %v2663, %v2666
    %s2668 = sld [smem:[#allocation2 + $0x193]]
    %v2669 = vstv %s2668
    %v2670 = vmul.f32 %v1820, %v2669
    %v2671 = vadd.f32 %v2667, %v2670
    %s2672 = sld [smem:[#allocation2 + $0x19d]]
    %v2673 = vstv %s2672
    %v2674 = vmul.f32 %v1889, %v2673
    %v2675 = vadd.f32 %v2671, %v2674
    %s2676 = sld [smem:[#allocation2 + $0x1a7]]
    %v2677 = vstv %s2676
    %v2678 = vmul.f32 %v1958, %v2677
    %v2679 = vadd.f32 %v2675, %v2678
    %s2680 = sld [smem:[#allocation2 + $0x1b1]]
    %v2681 = vstv %s2680
    %v2682 = vmul.f32 %v2027, %v2681
    %v2683 = vadd.f32 %v2679, %v2682
    %s2684 = sld [smem:[#allocation2 + $0x1bb]]
    %v2685 = vstv %s2684
    %v2686 = vmul.f32 %v2096, %v2685
    %v2687 = vadd.f32 %v2683, %v2686
    %s2688 = sld [smem:[#allocation2 + $0x1c5]]
    %v2689 = vstv %s2688
    %v2690 = vadd.f32 %v2687, %v2689
    %s2691 = sld [smem:[#allocation2 + $0x126]]
    %v2692 = vstv %s2691
    %v2693 = vmul.f32 %v1061, %v2692
    %s2694 = sld [smem:[#allocation2 + $0x130]]
    %v2695 = vstv %s2694
    %v2696 = vmul.f32 %v1130, %v2695
    %v2697 = vadd.f32 %v2693, %v2696
    %s2698 = sld [smem:[#allocation2 + $0x13a]]
    %v2699 = vstv %s2698
    %v2700 = vmul.f32 %v1199, %v2699
    %v2701 = vadd.f32 %v2697, %v2700
    %s2702 = sld [smem:[#allocation2 + $0x144]]
    %v2703 = vstv %s2702
    %v2704 = vmul.f32 %v1268, %v2703
    %v2705 = vadd.f32 %v2701, %v2704
    %s2706 = sld [smem:[#allocation2 + $0x14e]]
    %v2707 = vstv %s2706
    %v2708 = vmul.f32 %v1337, %v2707
    %v2709 = vadd.f32 %v2705, %v2708
    %s2710 = sld [smem:[#allocation2 + $0x158]]
    %v2711 = vstv %s2710
    %v2712 = vmul.f32 %v1406, %v2711
    %v2713 = vadd.f32 %v2709, %v2712
    %s2714 = sld [smem:[#allocation2 + $0x162]]
    %v2715 = vstv %s2714
    %v2716 = vmul.f32 %v1475, %v2715
    %v2717 = vadd.f32 %v2713, %v2716
    %s2718 = sld [smem:[#allocation2 + $0x16c]]
    %v2719 = vstv %s2718
    %v2720 = vmul.f32 %v1544, %v2719
    %v2721 = vadd.f32 %v2717, %v2720
    %s2722 = sld [smem:[#allocation2 + $0x176]]
    %v2723 = vstv %s2722
    %v2724 = vmul.f32 %v1613, %v2723
    %v2725 = vadd.f32 %v2721, %v2724
    %s2726 = sld [smem:[#allocation2 + $0x180]]
    %v2727 = vstv %s2726
    %v2728 = vmul.f32 %v1682, %v2727
    %v2729 = vadd.f32 %v2725, %v2728
    %s2730 = sld [smem:[#allocation2 + $0x18a]]
    %v2731 = vstv %s2730
    %v2732 = vmul.f32 %v1751, %v2731
    %v2733 = vadd.f32 %v2729, %v2732
    %s2734 = sld [smem:[#allocation2 + $0x194]]
    %v2735 = vstv %s2734
    %v2736 = vmul.f32 %v1820, %v2735
    %v2737 = vadd.f32 %v2733, %v2736
    %s2738 = sld [smem:[#allocation2 + $0x19e]]
    %v2739 = vstv %s2738
    %v2740 = vmul.f32 %v1889, %v2739
    %v2741 = vadd.f32 %v2737, %v2740
    %s2742 = sld [smem:[#allocation2 + $0x1a8]]
    %v2743 = vstv %s2742
    %v2744 = vmul.f32 %v1958, %v2743
    %v2745 = vadd.f32 %v2741, %v2744
    %s2746 = sld [smem:[#allocation2 + $0x1b2]]
    %v2747 = vstv %s2746
    %v2748 = vmul.f32 %v2027, %v2747
    %v2749 = vadd.f32 %v2745, %v2748
    %s2750 = sld [smem:[#allocation2 + $0x1bc]]
    %v2751 = vstv %s2750
    %v2752 = vmul.f32 %v2096, %v2751
    %v2753 = vadd.f32 %v2749, %v2752
    %s2754 = sld [smem:[#allocation2 + $0x1c6]]
    %v2755 = vstv %s2754
    %v2756 = vadd.f32 %v2753, %v2755
    %v2758 = vrot.slane %v2228, 7
    %v2761 = vrot.slane %v2294, 6
    %v2764 = vrot.slane %v2360, 5
    %v2767 = vrot.slane %v2426, 4
    %v2770 = vrot.slane %v2492, 3
    %v2773 = vrot.slane %v2558, 2
    %v2776 = vrot.slane %v2624, 1
    %v2779 = vrot.slane %v2756, 7
    %vm2781 = vcmask 1040384
    %v2782 = vsel %vm2781, %v2162, %v2758
    %vm2783 = vcmask 1041408
    %v2784 = vsel %vm2783, %v2782, %v2761
    %vm2785 = vcmask 1042432
    %v2786 = vsel %vm2785, %v2784, %v2764
    %vm2787 = vcmask 1043456
    %v2788 = vsel %vm2787, %v2786, %v2767
    %vm2789 = vcmask 1044480
    %v2790 = vsel %vm2789, %v2788, %v2770
    %vm2791 = vcmask 1045504
    %v2792 = vsel %vm2791, %v2790, %v2773
    %vm2793 = vcmask 1046528
    %v2794 = vsel %vm2793, %v2792, %v2776
    %v2795 = vsel %vm2781, %v2690, %v2779
    %2796 = vst [vmem:[%s2] sm:$0xff] %v2794
    %2797 = vst [vmem:[%s2 + $0x8] sm:$0x3] %v2795
    // Predicated region
    $region14: #{tiny_cnn_forward.1} parent=1 // pred_check
      _
    $region15: #{tiny_cnn_forward.1} parent=1 // pred_check_branch
      %2799 = sbr.rel (0) target = $region17
    $region16: #{tiny_cnn_forward.1} parent=1 // pred_region
      _
    $region17: #{tiny_cnn_forward.1} parent=1 // pred_fallthru
      _
    // Predicated region
    $region18: #{tiny_cnn_forward.1} parent=1 // pred_check
      _
    $region19: #{tiny_cnn_forward.1} parent=1 // pred_check_branch
      %2801 = sbr.rel (0) target = $region21
    $region20: #{tiny_cnn_forward.1} parent=1 // pred_region
      _
    $region21: #{tiny_cnn_forward.1} parent=1 // pred_fallthru
      _
    %2802 = vsyncpa [#allocation3], 1

</llo_original>
